<compile_context>
chip_gen: v6e
topology: v6e:2x2x1
jax: 0.10.0
libtpu: 0.0.40
codegen_flags: <defaults>
</compile_context>

<pallas_src>
import functools

import jax
import jax.numpy as jnp
from jax.experimental import pallas as pl
from jax.experimental.pallas import tpu as pltpu


def _round_up(x: int, m: int) -> int:
    return (x + m - 1) // m * m


# ---------------------------------------------------------------------------
# Fused kernel: all conv layers for the whole batch, layout (channels, N*H*W).
# ---------------------------------------------------------------------------
def _fused_cnn_kernel(x_ref, m_ref, *refs, W, L, layer_meta, exact):
    """refs = (w_packed_0, ..., w_packed_{n-1}, out_ref, scratch_ref).

    layer_meta: tuple of (cin_pad, apply_relu) per layer (static Python).
    """
    scratch = refs[-1]                    # (K_max, L) VMEM, compute dtype
    o_ref = refs[-2]
    w_refs = refs[:-2]
    cdt = scratch.dtype
    prec = jax.lax.Precision.HIGHEST if exact else None

    # Rows 0..7 of the stacked operand: row 0 is the constant "ones" row that
    # carries the bias (fused into the matmul), rows 1..7 are zero padding.
    # Written once; tap blocks start at row 8 and never touch these rows.
    sub = jax.lax.broadcasted_iota(jnp.int32, (8, L), 0)
    scratch[0:8, :] = jnp.where(sub == 0, 1.0, 0.0).astype(cdt)

    a = x_ref[...]                        # (cin_pad0, L) f32 activations
    for (cin_k, relu), w_ref in zip(layer_meta, w_refs):
        # Build the (8 + 9*cin_k, L) stacked im2col operand in VMEM scratch.
        for tap in range(9):
            dh, dw = tap // 3 - 1, tap % 3 - 1
            s = dh * W + dw               # flat source offset for this tap
            if s == 0:                    # center tap: no shift, always valid
                blk = a
            else:
                # pltpu.roll follows the np.roll convention:
                #   out[j] = in[(j - shift) % L]; we need out[g] = in[g + s].
                shifted = pltpu.roll(a, shift=(-s) % L, axis=1)
                blk = shifted * m_ref[tap][:cin_k]   # zero invalid borders
            scratch[8 + tap * cin_k:8 + (tap + 1) * cin_k, :] = blk.astype(cdt)

        # One MXU matmul per layer: (cout_pad, 8+9*cin_k) x (8+9*cin_k, L).
        # Bias is included via the ones row / bias column; f32 accumulation.
        k_dot = 8 + 9 * cin_k
        acc = jnp.dot(w_ref[...], scratch[0:k_dot, :],
                      preferred_element_type=jnp.float32, precision=prec)
        if relu:
            acc = jnp.maximum(acc, 0.0)
        a = acc                           # stays resident in VMEM/vregs (f32)

    o_ref[...] = a.astype(o_ref.dtype)


# ---------------------------------------------------------------------------
# Wrapper: one pallas_call (grid=()) for the whole network.
# ---------------------------------------------------------------------------
def forward_pallas(x_nchw, layers, *, exact=False):
    """layers: list of (conv_weight_OIHW, bias, apply_relu)."""
    N, Cin, H, W = x_nchw.shape
    HW, L = H * W, N * H * W
    cdt = jnp.float32 if exact else jnp.bfloat16

    # Per-layer in-kernel channel counts, zero-padded to sublane multiples.
    couts = [int(w.shape[0]) for (w, _, _) in layers]
    cins = [Cin] + couts[:-1]
    cin_ks = [_round_up(c, 8) for c in cins]
    cout_ks = [_round_up(c, 8) for c in couts]
    cmax = max(cin_ks)
    k_max = 8 + 9 * cmax

    # Input: (N, Cin, H, W) -> (cin_pad0, N*H*W) f32 with zero channel pad.
    # (Kept f32 so all in-kernel rolls/masking run on the f32 VPU path.)
    x2 = jnp.pad(x_nchw.astype(jnp.float32),
                 ((0, 0), (0, cin_ks[0] - Cin), (0, 0), (0, 0)))
    x2 = jnp.transpose(x2, (1, 0, 2, 3)).reshape(cin_ks[0], L)

    # 9 border-validity masks in {0,1}, pre-broadcast to cmax sublanes, built
    # from the per-image flat index so cross-image roll wraparound is zeroed.
    g = jnp.arange(L, dtype=jnp.int32)
    r = g % HW
    hh, ww = r // W, r % W
    rows = []
    for tap in range(9):
        dh, dw = tap // 3 - 1, tap % 3 - 1
        ok = ((hh + dh >= 0) & (hh + dh < H) & (ww + dw >= 0) & (ww + dw < W))
        rows.append(jnp.broadcast_to(ok.astype(jnp.float32)[None, :], (cmax, L)))
    masks = jnp.stack(rows)                               # (9, cmax, L) f32

    # Pack each layer's weight as (cout_pad, 8 + 9*cin_pad):
    #   column 0 = bias, columns 1..7 = 0,
    #   column 8 + tap*cin_pad + i = w[:, i, tap//3, tap%3].
    w_args, metas = [], []
    for (w, b, relu), cin_k, cout_k in zip(layers, cin_ks, cout_ks):
        cout, cin = int(w.shape[0]), int(w.shape[1])
        wt = jnp.transpose(w.astype(jnp.float32), (0, 2, 3, 1))   # (O,3,3,I)
        wt = jnp.pad(wt, ((0, cout_k - cout), (0, 0), (0, 0), (0, cin_k - cin)))
        wt = wt.reshape(cout_k, 9 * cin_k)
        bias = jnp.pad(b.astype(jnp.float32), (0, cout_k - cout)).reshape(cout_k, 1)
        packed = jnp.concatenate(
            [bias, jnp.zeros((cout_k, 7), jnp.float32), wt], axis=1)
        w_args.append(packed.astype(cdt))
        metas.append((cin_k, bool(relu)))

    kernel = functools.partial(_fused_cnn_kernel, W=W, L=L,
                               layer_meta=tuple(metas), exact=exact)
    out = pl.pallas_call(
        kernel,
        out_shape=jax.ShapeDtypeStruct((cout_ks[-1], L), jnp.float32),
        scratch_shapes=[pltpu.VMEM((k_max, L), cdt)],
    )(x2, masks, *w_args)

    out = out.reshape(cout_ks[-1], N, H, W).transpose(1, 0, 2, 3)
    return out[:, :couts[-1]]


# ---------------------------------------------------------------------------
# Weight construction / conversion (plain JAX, outside the kernel)
# ---------------------------------------------------------------------------
def convtranspose_to_conv_weight(w_iohw):
    """ConvTranspose2d weight (Cin, Cout, 3, 3) -> equivalent Conv2d weight
    (Cout, Cin, 3, 3) for stride=1, padding=1."""
    return jnp.transpose(jnp.flip(w_iohw, axis=(2, 3)), (1, 0, 2, 3))


def _init_conv(key, cout, cin):
    kw, kb = jax.random.split(key)
    bound = 1.0 / jnp.sqrt(cin * 9.0)
    w = jax.random.uniform(kw, (cout, cin, 3, 3), jnp.float32, -bound, bound)
    b = jax.random.uniform(kb, (cout,), jnp.float32, -bound, bound)
    return w, b


def _init_convtranspose(key, cin, cout):
    kw, kb = jax.random.split(key)
    bound = 1.0 / jnp.sqrt(cin * 9.0)
    w = jax.random.uniform(kw, (cin, cout, 3, 3), jnp.float32, -bound, bound)
    b = jax.random.uniform(kb, (cout,), jnp.float32, -bound, bound)
    return w, b


def build_params(key, in_channels, encoder_channels, decoder_channels):
    """Returns list of (conv_weight_OIHW, bias, apply_relu)."""
    n_layers = len(encoder_channels) + len(decoder_channels) + 1
    keys = jax.random.split(key, n_layers)
    layers, ki, c = [], 0, in_channels
    # encoder: Conv2d + ReLU (+ Dropout p=0 -> identity)
    for h in encoder_channels:
        w, b = _init_conv(keys[ki], h, c); ki += 1
        layers.append((w, b, True)); c = h
    # decoder: ConvTranspose2d + ReLU (converted to equivalent conv)
    for h in decoder_channels:
        wT, b = _init_convtranspose(keys[ki], c, h); ki += 1
        layers.append((convtranspose_to_conv_weight(wT), b, True)); c = h
    # final Conv2d back to in_channels, no activation
    w, b = _init_conv(keys[ki], in_channels, c); ki += 1
    layers.append((w, b, False))
    return layers
    # TODO(synk): the classifier head (Flatten/Linear) exists in __init__ but
    # is never used in forward(), so it is intentionally not built here.


# ---------------------------------------------------------------------------
# Pure-JAX reference (for validation only)
# ---------------------------------------------------------------------------
def forward_reference(x_nchw, layers):
    x = x_nchw
    for w, b, relu in layers:
        y = jax.lax.conv_general_dilated(
            x, w, window_strides=(1, 1), padding=((1, 1), (1, 1)),
            dimension_numbers=("NCHW", "OIHW", "NCHW"),
            precision=jax.lax.Precision.HIGHEST)
        y = y + b[None, :, None, None]
        x = jnp.maximum(y, 0.0) if relu else y
    return x


# ---------------------------------------------------------------------------
if __name__ == "__main__":
    in_channels = 4
    encoder_channels = [8, 16]
    decoder_channels = [16, 8]
    N, H, W = 2, 16, 16

    root = jax.random.PRNGKey(0)
    k_x, k_p = jax.random.split(root)
    x = jax.random.normal(k_x, (N, in_channels, H, W), jnp.float32)
    layers = build_params(k_p, in_channels, encoder_channels, decoder_channels)

    # Production path: fused kernel, bf16 MXU operands, f32 accumulation.
    out = jax.block_until_ready(forward_pallas(x, layers, exact=False))
    assert out.shape == (N, in_channels, H, W), out.shape

    ref = jax.block_until_ready(forward_reference(x, layers))

    # Tight semantic/numeric check with the f32/HIGHEST variant of the kernel.
    out_exact = jax.block_until_ready(forward_pallas(x, layers, exact=True))
    assert jnp.allclose(out_exact, ref, atol=1e-4, rtol=1e-4), (
        float(jnp.max(jnp.abs(out_exact - ref))))
    # bf16 path: looser tolerance (bf16 weight/activation rounding, 5 layers).
    assert jnp.allclose(out, ref, atol=3e-2, rtol=3e-2), (
        float(jnp.max(jnp.abs(out - ref))))

    print("KERNEL_OK")
</pallas_src>

<mosaic_0001>
module attributes {stable_mosaic.version = 11 : i64} {
  func.func @_fused_cnn_kernel(%arg0: memref<8x512xf32, #tpu.memory_space<vmem>>, %arg1: memref<9x16x512xf32, #tpu.memory_space<vmem>>, %arg2: memref<8x80xbf16, #tpu.memory_space<vmem>>, %arg3: memref<16x80xbf16, #tpu.memory_space<vmem>>, %arg4: memref<16x152xbf16, #tpu.memory_space<vmem>>, %arg5: memref<8x152xbf16, #tpu.memory_space<vmem>>, %arg6: memref<8x80xbf16, #tpu.memory_space<vmem>>, %arg7: memref<8x512xf32, #tpu.memory_space<vmem>>, %arg8: memref<152x512xbf16, #tpu.memory_space<vmem>>) attributes {dimension_semantics = [], scalar_prefetch = 0 : i64, scratch_operands = 1 : i64, tpu.core_type = #tpu.core_type<tc>} {
    %0 = tpu.iota {dimensions = array<i32: 0>} : vector<8x512xi32>
    %c0_i32 = arith.constant 0 : i32
    %1 = vector.broadcast %c0_i32 : i32 to vector<8x512xi32>
    %2 = arith.cmpi eq, %0, %1 : vector<8x512xi32>
    %cst = arith.constant 1.000000e+00 : f32
    %cst_0 = arith.constant 0.000000e+00 : f32
    %3 = vector.broadcast %cst : f32 to vector<8x512xf32>
    %4 = vector.broadcast %cst_0 : f32 to vector<8x512xf32>
    %5 = arith.select %2, %3, %4 : vector<8x512xi1>, vector<8x512xf32>
    %6 = arith.truncf %5 : vector<8x512xf32> to vector<8x512xbf16>
    %c0 = arith.constant 0 : index
    %c0_1 = arith.constant 0 : index
    %7 = vector.load %arg8[%c0, %c0_1] : memref<152x512xbf16, #tpu.memory_space<vmem>>, vector<8x512xbf16>
    tpu.vector_store %arg8[%c0, %c0_1], %6 {strides = array<i32>} : memref<152x512xbf16, #tpu.memory_space<vmem>>, vector<8x512xbf16>,
    %c0_2 = arith.constant 0 : index
    %c0_3 = arith.constant 0 : index
    %8 = vector.load %arg0[%c0_2, %c0_3] : memref<8x512xf32, #tpu.memory_space<vmem>>, vector<8x512xf32>
    %c17_i32 = arith.constant 17 : i32
    %9 = tpu.dynamic_rotate %8 by %c17_i32 dim 1 : vector<8x512xf32>, i32 -> vector<8x512xf32>
    %c0_4 = arith.constant 0 : index
    %c0_5 = arith.constant 0 : index
    %c0_6 = arith.constant 0 : index
    %10 = vector.load %arg1[%c0_4, %c0_5, %c0_6] : memref<9x16x512xf32, #tpu.memory_space<vmem>>, vector<1x16x512xf32>
    %11 = vector.shape_cast %10 : vector<1x16x512xf32> to vector<16x512xf32>
    %12 = vector.extract_strided_slice %11 {offsets = [0, 0], sizes = [8, 512], strides = [1, 1]} : vector<16x512xf32> to vector<8x512xf32>
    %13 = arith.mulf %9, %12 : vector<8x512xf32>
    %14 = arith.truncf %13 : vector<8x512xf32> to vector<8x512xbf16>
    %c8 = arith.constant 8 : index
    %c0_7 = arith.constant 0 : index
    %15 = vector.load %arg8[%c8, %c0_7] : memref<152x512xbf16, #tpu.memory_space<vmem>>, vector<8x512xbf16>
    tpu.vector_store %arg8[%c8, %c0_7], %14 {strides = array<i32>} : memref<152x512xbf16, #tpu.memory_space<vmem>>, vector<8x512xbf16>,
    %c16_i32 = arith.constant 16 : i32
    %16 = tpu.dynamic_rotate %8 by %c16_i32 dim 1 : vector<8x512xf32>, i32 -> vector<8x512xf32>
    %c1 = arith.constant 1 : index
    %c0_8 = arith.constant 0 : index
    %c0_9 = arith.constant 0 : index
    %17 = vector.load %arg1[%c1, %c0_8, %c0_9] : memref<9x16x512xf32, #tpu.memory_space<vmem>>, vector<1x16x512xf32>
    %18 = vector.shape_cast %17 : vector<1x16x512xf32> to vector<16x512xf32>
    %19 = vector.extract_strided_slice %18 {offsets = [0, 0], sizes = [8, 512], strides = [1, 1]} : vector<16x512xf32> to vector<8x512xf32>
    %20 = arith.mulf %16, %19 : vector<8x512xf32>
    %21 = arith.truncf %20 : vector<8x512xf32> to vector<8x512xbf16>
    %c16 = arith.constant 16 : index
    %c0_10 = arith.constant 0 : index
    %22 = vector.load %arg8[%c16, %c0_10] : memref<152x512xbf16, #tpu.memory_space<vmem>>, vector<8x512xbf16>
    tpu.vector_store %arg8[%c16, %c0_10], %21 {strides = array<i32>} : memref<152x512xbf16, #tpu.memory_space<vmem>>, vector<8x512xbf16>,
    %c15_i32 = arith.constant 15 : i32
    %23 = tpu.dynamic_rotate %8 by %c15_i32 dim 1 : vector<8x512xf32>, i32 -> vector<8x512xf32>
    %c2 = arith.constant 2 : index
    %c0_11 = arith.constant 0 : index
    %c0_12 = arith.constant 0 : index
    %24 = vector.load %arg1[%c2, %c0_11, %c0_12] : memref<9x16x512xf32, #tpu.memory_space<vmem>>, vector<1x16x512xf32>
    %25 = vector.shape_cast %24 : vector<1x16x512xf32> to vector<16x512xf32>
    %26 = vector.extract_strided_slice %25 {offsets = [0, 0], sizes = [8, 512], strides = [1, 1]} : vector<16x512xf32> to vector<8x512xf32>
    %27 = arith.mulf %23, %26 : vector<8x512xf32>
    %28 = arith.truncf %27 : vector<8x512xf32> to vector<8x512xbf16>
    %c24 = arith.constant 24 : index
    %c0_13 = arith.constant 0 : index
    %29 = vector.load %arg8[%c24, %c0_13] : memref<152x512xbf16, #tpu.memory_space<vmem>>, vector<8x512xbf16>
    tpu.vector_store %arg8[%c24, %c0_13], %28 {strides = array<i32>} : memref<152x512xbf16, #tpu.memory_space<vmem>>, vector<8x512xbf16>,
    %c1_i32 = arith.constant 1 : i32
    %30 = tpu.dynamic_rotate %8 by %c1_i32 dim 1 : vector<8x512xf32>, i32 -> vector<8x512xf32>
    %c3 = arith.constant 3 : index
    %c0_14 = arith.constant 0 : index
    %c0_15 = arith.constant 0 : index
    %31 = vector.load %arg1[%c3, %c0_14, %c0_15] : memref<9x16x512xf32, #tpu.memory_space<vmem>>, vector<1x16x512xf32>
    %32 = vector.shape_cast %31 : vector<1x16x512xf32> to vector<16x512xf32>
    %33 = vector.extract_strided_slice %32 {offsets = [0, 0], sizes = [8, 512], strides = [1, 1]} : vector<16x512xf32> to vector<8x512xf32>
    %34 = arith.mulf %30, %33 : vector<8x512xf32>
    %35 = arith.truncf %34 : vector<8x512xf32> to vector<8x512xbf16>
    %c32 = arith.constant 32 : index
    %c0_16 = arith.constant 0 : index
    %36 = vector.load %arg8[%c32, %c0_16] : memref<152x512xbf16, #tpu.memory_space<vmem>>, vector<8x512xbf16>
    tpu.vector_store %arg8[%c32, %c0_16], %35 {strides = array<i32>} : memref<152x512xbf16, #tpu.memory_space<vmem>>, vector<8x512xbf16>,
    %37 = arith.truncf %8 : vector<8x512xf32> to vector<8x512xbf16>
    %c40 = arith.constant 40 : index
    %c0_17 = arith.constant 0 : index
    %38 = vector.load %arg8[%c40, %c0_17] : memref<152x512xbf16, #tpu.memory_space<vmem>>, vector<8x512xbf16>
    tpu.vector_store %arg8[%c40, %c0_17], %37 {strides = array<i32>} : memref<152x512xbf16, #tpu.memory_space<vmem>>, vector<8x512xbf16>,
    %c511_i32 = arith.constant 511 : i32
    %39 = tpu.dynamic_rotate %8 by %c511_i32 dim 1 : vector<8x512xf32>, i32 -> vector<8x512xf32>
    %c5 = arith.constant 5 : index
    %c0_18 = arith.constant 0 : index
    %c0_19 = arith.constant 0 : index
    %40 = vector.load %arg1[%c5, %c0_18, %c0_19] : memref<9x16x512xf32, #tpu.memory_space<vmem>>, vector<1x16x512xf32>
    %41 = vector.shape_cast %40 : vector<1x16x512xf32> to vector<16x512xf32>
    %42 = vector.extract_strided_slice %41 {offsets = [0, 0], sizes = [8, 512], strides = [1, 1]} : vector<16x512xf32> to vector<8x512xf32>
    %43 = arith.mulf %39, %42 : vector<8x512xf32>
    %44 = arith.truncf %43 : vector<8x512xf32> to vector<8x512xbf16>
    %c48 = arith.constant 48 : index
    %c0_20 = arith.constant 0 : index
    %45 = vector.load %arg8[%c48, %c0_20] : memref<152x512xbf16, #tpu.memory_space<vmem>>, vector<8x512xbf16>
    tpu.vector_store %arg8[%c48, %c0_20], %44 {strides = array<i32>} : memref<152x512xbf16, #tpu.memory_space<vmem>>, vector<8x512xbf16>,
    %c497_i32 = arith.constant 497 : i32
    %46 = tpu.dynamic_rotate %8 by %c497_i32 dim 1 : vector<8x512xf32>, i32 -> vector<8x512xf32>
    %c6 = arith.constant 6 : index
    %c0_21 = arith.constant 0 : index
    %c0_22 = arith.constant 0 : index
    %47 = vector.load %arg1[%c6, %c0_21, %c0_22] : memref<9x16x512xf32, #tpu.memory_space<vmem>>, vector<1x16x512xf32>
    %48 = vector.shape_cast %47 : vector<1x16x512xf32> to vector<16x512xf32>
    %49 = vector.extract_strided_slice %48 {offsets = [0, 0], sizes = [8, 512], strides = [1, 1]} : vector<16x512xf32> to vector<8x512xf32>
    %50 = arith.mulf %46, %49 : vector<8x512xf32>
    %51 = arith.truncf %50 : vector<8x512xf32> to vector<8x512xbf16>
    %c56 = arith.constant 56 : index
    %c0_23 = arith.constant 0 : index
    %52 = vector.load %arg8[%c56, %c0_23] : memref<152x512xbf16, #tpu.memory_space<vmem>>, vector<8x512xbf16>
    tpu.vector_store %arg8[%c56, %c0_23], %51 {strides = array<i32>} : memref<152x512xbf16, #tpu.memory_space<vmem>>, vector<8x512xbf16>,
    %c496_i32 = arith.constant 496 : i32
    %53 = tpu.dynamic_rotate %8 by %c496_i32 dim 1 : vector<8x512xf32>, i32 -> vector<8x512xf32>
    %c7 = arith.constant 7 : index
    %c0_24 = arith.constant 0 : index
    %c0_25 = arith.constant 0 : index
    %54 = vector.load %arg1[%c7, %c0_24, %c0_25] : memref<9x16x512xf32, #tpu.memory_space<vmem>>, vector<1x16x512xf32>
    %55 = vector.shape_cast %54 : vector<1x16x512xf32> to vector<16x512xf32>
    %56 = vector.extract_strided_slice %55 {offsets = [0, 0], sizes = [8, 512], strides = [1, 1]} : vector<16x512xf32> to vector<8x512xf32>
    %57 = arith.mulf %53, %56 : vector<8x512xf32>
    %58 = arith.truncf %57 : vector<8x512xf32> to vector<8x512xbf16>
    %c64 = arith.constant 64 : index
    %c0_26 = arith.constant 0 : index
    %59 = vector.load %arg8[%c64, %c0_26] : memref<152x512xbf16, #tpu.memory_space<vmem>>, vector<8x512xbf16>
    tpu.vector_store %arg8[%c64, %c0_26], %58 {strides = array<i32>} : memref<152x512xbf16, #tpu.memory_space<vmem>>, vector<8x512xbf16>,
    %c495_i32 = arith.constant 495 : i32
    %60 = tpu.dynamic_rotate %8 by %c495_i32 dim 1 : vector<8x512xf32>, i32 -> vector<8x512xf32>
    %c8_27 = arith.constant 8 : index
    %c0_28 = arith.constant 0 : index
    %c0_29 = arith.constant 0 : index
    %61 = vector.load %arg1[%c8_27, %c0_28, %c0_29] : memref<9x16x512xf32, #tpu.memory_space<vmem>>, vector<1x16x512xf32>
    %62 = vector.shape_cast %61 : vector<1x16x512xf32> to vector<16x512xf32>
    %63 = vector.extract_strided_slice %62 {offsets = [0, 0], sizes = [8, 512], strides = [1, 1]} : vector<16x512xf32> to vector<8x512xf32>
    %64 = arith.mulf %60, %63 : vector<8x512xf32>
    %65 = arith.truncf %64 : vector<8x512xf32> to vector<8x512xbf16>
    %c72 = arith.constant 72 : index
    %c0_30 = arith.constant 0 : index
    %66 = vector.load %arg8[%c72, %c0_30] : memref<152x512xbf16, #tpu.memory_space<vmem>>, vector<8x512xbf16>
    tpu.vector_store %arg8[%c72, %c0_30], %65 {strides = array<i32>} : memref<152x512xbf16, #tpu.memory_space<vmem>>, vector<8x512xbf16>,
    %c0_31 = arith.constant 0 : index
    %c0_32 = arith.constant 0 : index
    %67 = vector.load %arg2[%c0_31, %c0_32] : memref<8x80xbf16, #tpu.memory_space<vmem>>, vector<8x80xbf16>
    %c0_33 = arith.constant 0 : index
    %c0_34 = arith.constant 0 : index
    %68 = vector.load %arg8[%c0_33, %c0_34] : memref<152x512xbf16, #tpu.memory_space<vmem>>, vector<80x512xbf16>
    %cst_35 = arith.constant dense<0.000000e+00> : vector<8x512xf32>
    %69 = tpu.matmul %67, %68, %cst_35 {dimension_numbers = #tpu.dot_dimension_numbers<[1], [0], [0], [1], [0, 0, 1, 1], [], []>} : vector<8x80xbf16>, vector<80x512xbf16>, vector<8x512xf32> -> vector<8x512xf32>
    %cst_36 = arith.constant 0.000000e+00 : f32
    %70 = vector.broadcast %cst_36 : f32 to vector<8x512xf32>
    %71 = arith.maximumf %69, %70 : vector<8x512xf32>
    %c17_i32_37 = arith.constant 17 : i32
    %72 = tpu.dynamic_rotate %71 by %c17_i32_37 dim 1 : vector<8x512xf32>, i32 -> vector<8x512xf32>
    %c0_38 = arith.constant 0 : index
    %c0_39 = arith.constant 0 : index
    %c0_40 = arith.constant 0 : index
    %73 = vector.load %arg1[%c0_38, %c0_39, %c0_40] : memref<9x16x512xf32, #tpu.memory_space<vmem>>, vector<1x16x512xf32>
    %74 = vector.shape_cast %73 : vector<1x16x512xf32> to vector<16x512xf32>
    %75 = vector.extract_strided_slice %74 {offsets = [0, 0], sizes = [8, 512], strides = [1, 1]} : vector<16x512xf32> to vector<8x512xf32>
    %76 = arith.mulf %72, %75 : vector<8x512xf32>
    %77 = arith.truncf %76 : vector<8x512xf32> to vector<8x512xbf16>
    %c8_41 = arith.constant 8 : index
    %c0_42 = arith.constant 0 : index
    %78 = vector.load %arg8[%c8_41, %c0_42] : memref<152x512xbf16, #tpu.memory_space<vmem>>, vector<8x512xbf16>
    tpu.vector_store %arg8[%c8_41, %c0_42], %77 {strides = array<i32>} : memref<152x512xbf16, #tpu.memory_space<vmem>>, vector<8x512xbf16>,
    %c16_i32_43 = arith.constant 16 : i32
    %79 = tpu.dynamic_rotate %71 by %c16_i32_43 dim 1 : vector<8x512xf32>, i32 -> vector<8x512xf32>
    %c1_44 = arith.constant 1 : index
    %c0_45 = arith.constant 0 : index
    %c0_46 = arith.constant 0 : index
    %80 = vector.load %arg1[%c1_44, %c0_45, %c0_46] : memref<9x16x512xf32, #tpu.memory_space<vmem>>, vector<1x16x512xf32>
    %81 = vector.shape_cast %80 : vector<1x16x512xf32> to vector<16x512xf32>
    %82 = vector.extract_strided_slice %81 {offsets = [0, 0], sizes = [8, 512], strides = [1, 1]} : vector<16x512xf32> to vector<8x512xf32>
    %83 = arith.mulf %79, %82 : vector<8x512xf32>
    %84 = arith.truncf %83 : vector<8x512xf32> to vector<8x512xbf16>
    %c16_47 = arith.constant 16 : index
    %c0_48 = arith.constant 0 : index
    %85 = vector.load %arg8[%c16_47, %c0_48] : memref<152x512xbf16, #tpu.memory_space<vmem>>, vector<8x512xbf16>
    tpu.vector_store %arg8[%c16_47, %c0_48], %84 {strides = array<i32>} : memref<152x512xbf16, #tpu.memory_space<vmem>>, vector<8x512xbf16>,
    %c15_i32_49 = arith.constant 15 : i32
    %86 = tpu.dynamic_rotate %71 by %c15_i32_49 dim 1 : vector<8x512xf32>, i32 -> vector<8x512xf32>
    %c2_50 = arith.constant 2 : index
    %c0_51 = arith.constant 0 : index
    %c0_52 = arith.constant 0 : index
    %87 = vector.load %arg1[%c2_50, %c0_51, %c0_52] : memref<9x16x512xf32, #tpu.memory_space<vmem>>, vector<1x16x512xf32>
    %88 = vector.shape_cast %87 : vector<1x16x512xf32> to vector<16x512xf32>
    %89 = vector.extract_strided_slice %88 {offsets = [0, 0], sizes = [8, 512], strides = [1, 1]} : vector<16x512xf32> to vector<8x512xf32>
    %90 = arith.mulf %86, %89 : vector<8x512xf32>
    %91 = arith.truncf %90 : vector<8x512xf32> to vector<8x512xbf16>
    %c24_53 = arith.constant 24 : index
    %c0_54 = arith.constant 0 : index
    %92 = vector.load %arg8[%c24_53, %c0_54] : memref<152x512xbf16, #tpu.memory_space<vmem>>, vector<8x512xbf16>
    tpu.vector_store %arg8[%c24_53, %c0_54], %91 {strides = array<i32>} : memref<152x512xbf16, #tpu.memory_space<vmem>>, vector<8x512xbf16>,
    %c1_i32_55 = arith.constant 1 : i32
    %93 = tpu.dynamic_rotate %71 by %c1_i32_55 dim 1 : vector<8x512xf32>, i32 -> vector<8x512xf32>
    %c3_56 = arith.constant 3 : index
    %c0_57 = arith.constant 0 : index
    %c0_58 = arith.constant 0 : index
    %94 = vector.load %arg1[%c3_56, %c0_57, %c0_58] : memref<9x16x512xf32, #tpu.memory_space<vmem>>, vector<1x16x512xf32>
    %95 = vector.shape_cast %94 : vector<1x16x512xf32> to vector<16x512xf32>
    %96 = vector.extract_strided_slice %95 {offsets = [0, 0], sizes = [8, 512], strides = [1, 1]} : vector<16x512xf32> to vector<8x512xf32>
    %97 = arith.mulf %93, %96 : vector<8x512xf32>
    %98 = arith.truncf %97 : vector<8x512xf32> to vector<8x512xbf16>
    %c32_59 = arith.constant 32 : index
    %c0_60 = arith.constant 0 : index
    %99 = vector.load %arg8[%c32_59, %c0_60] : memref<152x512xbf16, #tpu.memory_space<vmem>>, vector<8x512xbf16>
    tpu.vector_store %arg8[%c32_59, %c0_60], %98 {strides = array<i32>} : memref<152x512xbf16, #tpu.memory_space<vmem>>, vector<8x512xbf16>,
    %100 = arith.truncf %71 : vector<8x512xf32> to vector<8x512xbf16>
    %c40_61 = arith.constant 40 : index
    %c0_62 = arith.constant 0 : index
    %101 = vector.load %arg8[%c40_61, %c0_62] : memref<152x512xbf16, #tpu.memory_space<vmem>>, vector<8x512xbf16>
    tpu.vector_store %arg8[%c40_61, %c0_62], %100 {strides = array<i32>} : memref<152x512xbf16, #tpu.memory_space<vmem>>, vector<8x512xbf16>,
    %c511_i32_63 = arith.constant 511 : i32
    %102 = tpu.dynamic_rotate %71 by %c511_i32_63 dim 1 : vector<8x512xf32>, i32 -> vector<8x512xf32>
    %c5_64 = arith.constant 5 : index
    %c0_65 = arith.constant 0 : index
    %c0_66 = arith.constant 0 : index
    %103 = vector.load %arg1[%c5_64, %c0_65, %c0_66] : memref<9x16x512xf32, #tpu.memory_space<vmem>>, vector<1x16x512xf32>
    %104 = vector.shape_cast %103 : vector<1x16x512xf32> to vector<16x512xf32>
    %105 = vector.extract_strided_slice %104 {offsets = [0, 0], sizes = [8, 512], strides = [1, 1]} : vector<16x512xf32> to vector<8x512xf32>
    %106 = arith.mulf %102, %105 : vector<8x512xf32>
    %107 = arith.truncf %106 : vector<8x512xf32> to vector<8x512xbf16>
    %c48_67 = arith.constant 48 : index
    %c0_68 = arith.constant 0 : index
    %108 = vector.load %arg8[%c48_67, %c0_68] : memref<152x512xbf16, #tpu.memory_space<vmem>>, vector<8x512xbf16>
    tpu.vector_store %arg8[%c48_67, %c0_68], %107 {strides = array<i32>} : memref<152x512xbf16, #tpu.memory_space<vmem>>, vector<8x512xbf16>,
    %c497_i32_69 = arith.constant 497 : i32
    %109 = tpu.dynamic_rotate %71 by %c497_i32_69 dim 1 : vector<8x512xf32>, i32 -> vector<8x512xf32>
    %c6_70 = arith.constant 6 : index
    %c0_71 = arith.constant 0 : index
    %c0_72 = arith.constant 0 : index
    %110 = vector.load %arg1[%c6_70, %c0_71, %c0_72] : memref<9x16x512xf32, #tpu.memory_space<vmem>>, vector<1x16x512xf32>
    %111 = vector.shape_cast %110 : vector<1x16x512xf32> to vector<16x512xf32>
    %112 = vector.extract_strided_slice %111 {offsets = [0, 0], sizes = [8, 512], strides = [1, 1]} : vector<16x512xf32> to vector<8x512xf32>
    %113 = arith.mulf %109, %112 : vector<8x512xf32>
    %114 = arith.truncf %113 : vector<8x512xf32> to vector<8x512xbf16>
    %c56_73 = arith.constant 56 : index
    %c0_74 = arith.constant 0 : index
    %115 = vector.load %arg8[%c56_73, %c0_74] : memref<152x512xbf16, #tpu.memory_space<vmem>>, vector<8x512xbf16>
    tpu.vector_store %arg8[%c56_73, %c0_74], %114 {strides = array<i32>} : memref<152x512xbf16, #tpu.memory_space<vmem>>, vector<8x512xbf16>,
    %c496_i32_75 = arith.constant 496 : i32
    %116 = tpu.dynamic_rotate %71 by %c496_i32_75 dim 1 : vector<8x512xf32>, i32 -> vector<8x512xf32>
    %c7_76 = arith.constant 7 : index
    %c0_77 = arith.constant 0 : index
    %c0_78 = arith.constant 0 : index
    %117 = vector.load %arg1[%c7_76, %c0_77, %c0_78] : memref<9x16x512xf32, #tpu.memory_space<vmem>>, vector<1x16x512xf32>
    %118 = vector.shape_cast %117 : vector<1x16x512xf32> to vector<16x512xf32>
    %119 = vector.extract_strided_slice %118 {offsets = [0, 0], sizes = [8, 512], strides = [1, 1]} : vector<16x512xf32> to vector<8x512xf32>
    %120 = arith.mulf %116, %119 : vector<8x512xf32>
    %121 = arith.truncf %120 : vector<8x512xf32> to vector<8x512xbf16>
    %c64_79 = arith.constant 64 : index
    %c0_80 = arith.constant 0 : index
    %122 = vector.load %arg8[%c64_79, %c0_80] : memref<152x512xbf16, #tpu.memory_space<vmem>>, vector<8x512xbf16>
    tpu.vector_store %arg8[%c64_79, %c0_80], %121 {strides = array<i32>} : memref<152x512xbf16, #tpu.memory_space<vmem>>, vector<8x512xbf16>,
    %c495_i32_81 = arith.constant 495 : i32
    %123 = tpu.dynamic_rotate %71 by %c495_i32_81 dim 1 : vector<8x512xf32>, i32 -> vector<8x512xf32>
    %c8_82 = arith.constant 8 : index
    %c0_83 = arith.constant 0 : index
    %c0_84 = arith.constant 0 : index
    %124 = vector.load %arg1[%c8_82, %c0_83, %c0_84] : memref<9x16x512xf32, #tpu.memory_space<vmem>>, vector<1x16x512xf32>
    %125 = vector.shape_cast %124 : vector<1x16x512xf32> to vector<16x512xf32>
    %126 = vector.extract_strided_slice %125 {offsets = [0, 0], sizes = [8, 512], strides = [1, 1]} : vector<16x512xf32> to vector<8x512xf32>
    %127 = arith.mulf %123, %126 : vector<8x512xf32>
    %128 = arith.truncf %127 : vector<8x512xf32> to vector<8x512xbf16>
    %c72_85 = arith.constant 72 : index
    %c0_86 = arith.constant 0 : index
    %129 = vector.load %arg8[%c72_85, %c0_86] : memref<152x512xbf16, #tpu.memory_space<vmem>>, vector<8x512xbf16>
    tpu.vector_store %arg8[%c72_85, %c0_86], %128 {strides = array<i32>} : memref<152x512xbf16, #tpu.memory_space<vmem>>, vector<8x512xbf16>,
    %c0_87 = arith.constant 0 : index
    %c0_88 = arith.constant 0 : index
    %130 = vector.load %arg3[%c0_87, %c0_88] : memref<16x80xbf16, #tpu.memory_space<vmem>>, vector<16x80xbf16>
    %c0_89 = arith.constant 0 : index
    %c0_90 = arith.constant 0 : index
    %131 = vector.load %arg8[%c0_89, %c0_90] : memref<152x512xbf16, #tpu.memory_space<vmem>>, vector<80x512xbf16>
    %cst_91 = arith.constant dense<0.000000e+00> : vector<16x512xf32>
    %132 = tpu.matmul %130, %131, %cst_91 {dimension_numbers = #tpu.dot_dimension_numbers<[1], [0], [0], [1], [0, 0, 1, 1], [], []>} : vector<16x80xbf16>, vector<80x512xbf16>, vector<16x512xf32> -> vector<16x512xf32>
    %cst_92 = arith.constant 0.000000e+00 : f32
    %133 = vector.broadcast %cst_92 : f32 to vector<16x512xf32>
    %134 = arith.maximumf %132, %133 : vector<16x512xf32>
    %c17_i32_93 = arith.constant 17 : i32
    %135 = tpu.dynamic_rotate %134 by %c17_i32_93 dim 1 : vector<16x512xf32>, i32 -> vector<16x512xf32>
    %c0_94 = arith.constant 0 : index
    %c0_95 = arith.constant 0 : index
    %c0_96 = arith.constant 0 : index
    %136 = vector.load %arg1[%c0_94, %c0_95, %c0_96] : memref<9x16x512xf32, #tpu.memory_space<vmem>>, vector<1x16x512xf32>
    %137 = vector.shape_cast %136 : vector<1x16x512xf32> to vector<16x512xf32>
    %138 = arith.mulf %135, %137 : vector<16x512xf32>
    %139 = arith.truncf %138 : vector<16x512xf32> to vector<16x512xbf16>
    %c8_97 = arith.constant 8 : index
    %c0_98 = arith.constant 0 : index
    %140 = vector.load %arg8[%c8_97, %c0_98] : memref<152x512xbf16, #tpu.memory_space<vmem>>, vector<16x512xbf16>
    tpu.vector_store %arg8[%c8_97, %c0_98], %139 {strides = array<i32>} : memref<152x512xbf16, #tpu.memory_space<vmem>>, vector<16x512xbf16>,
    %c16_i32_99 = arith.constant 16 : i32
    %141 = tpu.dynamic_rotate %134 by %c16_i32_99 dim 1 : vector<16x512xf32>, i32 -> vector<16x512xf32>
    %c1_100 = arith.constant 1 : index
    %c0_101 = arith.constant 0 : index
    %c0_102 = arith.constant 0 : index
    %142 = vector.load %arg1[%c1_100, %c0_101, %c0_102] : memref<9x16x512xf32, #tpu.memory_space<vmem>>, vector<1x16x512xf32>
    %143 = vector.shape_cast %142 : vector<1x16x512xf32> to vector<16x512xf32>
    %144 = arith.mulf %141, %143 : vector<16x512xf32>
    %145 = arith.truncf %144 : vector<16x512xf32> to vector<16x512xbf16>
    %c24_103 = arith.constant 24 : index
    %c0_104 = arith.constant 0 : index
    %146 = vector.load %arg8[%c24_103, %c0_104] : memref<152x512xbf16, #tpu.memory_space<vmem>>, vector<16x512xbf16>
    tpu.vector_store %arg8[%c24_103, %c0_104], %145 {strides = array<i32>} : memref<152x512xbf16, #tpu.memory_space<vmem>>, vector<16x512xbf16>,
    %c15_i32_105 = arith.constant 15 : i32
    %147 = tpu.dynamic_rotate %134 by %c15_i32_105 dim 1 : vector<16x512xf32>, i32 -> vector<16x512xf32>
    %c2_106 = arith.constant 2 : index
    %c0_107 = arith.constant 0 : index
    %c0_108 = arith.constant 0 : index
    %148 = vector.load %arg1[%c2_106, %c0_107, %c0_108] : memref<9x16x512xf32, #tpu.memory_space<vmem>>, vector<1x16x512xf32>
    %149 = vector.shape_cast %148 : vector<1x16x512xf32> to vector<16x512xf32>
    %150 = arith.mulf %147, %149 : vector<16x512xf32>
    %151 = arith.truncf %150 : vector<16x512xf32> to vector<16x512xbf16>
    %c40_109 = arith.constant 40 : index
    %c0_110 = arith.constant 0 : index
    %152 = vector.load %arg8[%c40_109, %c0_110] : memref<152x512xbf16, #tpu.memory_space<vmem>>, vector<16x512xbf16>
    tpu.vector_store %arg8[%c40_109, %c0_110], %151 {strides = array<i32>} : memref<152x512xbf16, #tpu.memory_space<vmem>>, vector<16x512xbf16>,
    %c1_i32_111 = arith.constant 1 : i32
    %153 = tpu.dynamic_rotate %134 by %c1_i32_111 dim 1 : vector<16x512xf32>, i32 -> vector<16x512xf32>
    %c3_112 = arith.constant 3 : index
    %c0_113 = arith.constant 0 : index
    %c0_114 = arith.constant 0 : index
    %154 = vector.load %arg1[%c3_112, %c0_113, %c0_114] : memref<9x16x512xf32, #tpu.memory_space<vmem>>, vector<1x16x512xf32>
    %155 = vector.shape_cast %154 : vector<1x16x512xf32> to vector<16x512xf32>
    %156 = arith.mulf %153, %155 : vector<16x512xf32>
    %157 = arith.truncf %156 : vector<16x512xf32> to vector<16x512xbf16>
    %c56_115 = arith.constant 56 : index
    %c0_116 = arith.constant 0 : index
    %158 = vector.load %arg8[%c56_115, %c0_116] : memref<152x512xbf16, #tpu.memory_space<vmem>>, vector<16x512xbf16>
    tpu.vector_store %arg8[%c56_115, %c0_116], %157 {strides = array<i32>} : memref<152x512xbf16, #tpu.memory_space<vmem>>, vector<16x512xbf16>,
    %159 = arith.truncf %134 : vector<16x512xf32> to vector<16x512xbf16>
    %c72_117 = arith.constant 72 : index
    %c0_118 = arith.constant 0 : index
    %160 = vector.load %arg8[%c72_117, %c0_118] : memref<152x512xbf16, #tpu.memory_space<vmem>>, vector<16x512xbf16>
    tpu.vector_store %arg8[%c72_117, %c0_118], %159 {strides = array<i32>} : memref<152x512xbf16, #tpu.memory_space<vmem>>, vector<16x512xbf16>,
    %c511_i32_119 = arith.constant 511 : i32
    %161 = tpu.dynamic_rotate %134 by %c511_i32_119 dim 1 : vector<16x512xf32>, i32 -> vector<16x512xf32>
    %c5_120 = arith.constant 5 : index
    %c0_121 = arith.constant 0 : index
    %c0_122 = arith.constant 0 : index
    %162 = vector.load %arg1[%c5_120, %c0_121, %c0_122] : memref<9x16x512xf32, #tpu.memory_space<vmem>>, vector<1x16x512xf32>
    %163 = vector.shape_cast %162 : vector<1x16x512xf32> to vector<16x512xf32>
    %164 = arith.mulf %161, %163 : vector<16x512xf32>
    %165 = arith.truncf %164 : vector<16x512xf32> to vector<16x512xbf16>
    %c88 = arith.constant 88 : index
    %c0_123 = arith.constant 0 : index
    %166 = vector.load %arg8[%c88, %c0_123] : memref<152x512xbf16, #tpu.memory_space<vmem>>, vector<16x512xbf16>
    tpu.vector_store %arg8[%c88, %c0_123], %165 {strides = array<i32>} : memref<152x512xbf16, #tpu.memory_space<vmem>>, vector<16x512xbf16>,
    %c497_i32_124 = arith.constant 497 : i32
    %167 = tpu.dynamic_rotate %134 by %c497_i32_124 dim 1 : vector<16x512xf32>, i32 -> vector<16x512xf32>
    %c6_125 = arith.constant 6 : index
    %c0_126 = arith.constant 0 : index
    %c0_127 = arith.constant 0 : index
    %168 = vector.load %arg1[%c6_125, %c0_126, %c0_127] : memref<9x16x512xf32, #tpu.memory_space<vmem>>, vector<1x16x512xf32>
    %169 = vector.shape_cast %168 : vector<1x16x512xf32> to vector<16x512xf32>
    %170 = arith.mulf %167, %169 : vector<16x512xf32>
    %171 = arith.truncf %170 : vector<16x512xf32> to vector<16x512xbf16>
    %c104 = arith.constant 104 : index
    %c0_128 = arith.constant 0 : index
    %172 = vector.load %arg8[%c104, %c0_128] : memref<152x512xbf16, #tpu.memory_space<vmem>>, vector<16x512xbf16>
    tpu.vector_store %arg8[%c104, %c0_128], %171 {strides = array<i32>} : memref<152x512xbf16, #tpu.memory_space<vmem>>, vector<16x512xbf16>,
    %c496_i32_129 = arith.constant 496 : i32
    %173 = tpu.dynamic_rotate %134 by %c496_i32_129 dim 1 : vector<16x512xf32>, i32 -> vector<16x512xf32>
    %c7_130 = arith.constant 7 : index
    %c0_131 = arith.constant 0 : index
    %c0_132 = arith.constant 0 : index
    %174 = vector.load %arg1[%c7_130, %c0_131, %c0_132] : memref<9x16x512xf32, #tpu.memory_space<vmem>>, vector<1x16x512xf32>
    %175 = vector.shape_cast %174 : vector<1x16x512xf32> to vector<16x512xf32>
    %176 = arith.mulf %173, %175 : vector<16x512xf32>
    %177 = arith.truncf %176 : vector<16x512xf32> to vector<16x512xbf16>
    %c120 = arith.constant 120 : index
    %c0_133 = arith.constant 0 : index
    %178 = vector.load %arg8[%c120, %c0_133] : memref<152x512xbf16, #tpu.memory_space<vmem>>, vector<16x512xbf16>
    tpu.vector_store %arg8[%c120, %c0_133], %177 {strides = array<i32>} : memref<152x512xbf16, #tpu.memory_space<vmem>>, vector<16x512xbf16>,
    %c495_i32_134 = arith.constant 495 : i32
    %179 = tpu.dynamic_rotate %134 by %c495_i32_134 dim 1 : vector<16x512xf32>, i32 -> vector<16x512xf32>
    %c8_135 = arith.constant 8 : index
    %c0_136 = arith.constant 0 : index
    %c0_137 = arith.constant 0 : index
    %180 = vector.load %arg1[%c8_135, %c0_136, %c0_137] : memref<9x16x512xf32, #tpu.memory_space<vmem>>, vector<1x16x512xf32>
    %181 = vector.shape_cast %180 : vector<1x16x512xf32> to vector<16x512xf32>
    %182 = arith.mulf %179, %181 : vector<16x512xf32>
    %183 = arith.truncf %182 : vector<16x512xf32> to vector<16x512xbf16>
    %c136 = arith.constant 136 : index
    %c0_138 = arith.constant 0 : index
    %184 = vector.load %arg8[%c136, %c0_138] : memref<152x512xbf16, #tpu.memory_space<vmem>>, vector<16x512xbf16>
    tpu.vector_store %arg8[%c136, %c0_138], %183 {strides = array<i32>} : memref<152x512xbf16, #tpu.memory_space<vmem>>, vector<16x512xbf16>,
    %c0_139 = arith.constant 0 : index
    %c0_140 = arith.constant 0 : index
    %185 = vector.load %arg4[%c0_139, %c0_140] : memref<16x152xbf16, #tpu.memory_space<vmem>>, vector<16x152xbf16>
    %c0_141 = arith.constant 0 : index
    %c0_142 = arith.constant 0 : index
    %186 = vector.load %arg8[%c0_141, %c0_142] : memref<152x512xbf16, #tpu.memory_space<vmem>>, vector<152x512xbf16>
    %cst_143 = arith.constant dense<0.000000e+00> : vector<16x512xf32>
    %187 = tpu.matmul %185, %186, %cst_143 {dimension_numbers = #tpu.dot_dimension_numbers<[1], [0], [0], [1], [0, 0, 1, 1], [], []>} : vector<16x152xbf16>, vector<152x512xbf16>, vector<16x512xf32> -> vector<16x512xf32>
    %cst_144 = arith.constant 0.000000e+00 : f32
    %188 = vector.broadcast %cst_144 : f32 to vector<16x512xf32>
    %189 = arith.maximumf %187, %188 : vector<16x512xf32>
    %c17_i32_145 = arith.constant 17 : i32
    %190 = tpu.dynamic_rotate %189 by %c17_i32_145 dim 1 : vector<16x512xf32>, i32 -> vector<16x512xf32>
    %c0_146 = arith.constant 0 : index
    %c0_147 = arith.constant 0 : index
    %c0_148 = arith.constant 0 : index
    %191 = vector.load %arg1[%c0_146, %c0_147, %c0_148] : memref<9x16x512xf32, #tpu.memory_space<vmem>>, vector<1x16x512xf32>
    %192 = vector.shape_cast %191 : vector<1x16x512xf32> to vector<16x512xf32>
    %193 = arith.mulf %190, %192 : vector<16x512xf32>
    %194 = arith.truncf %193 : vector<16x512xf32> to vector<16x512xbf16>
    %c8_149 = arith.constant 8 : index
    %c0_150 = arith.constant 0 : index
    %195 = vector.load %arg8[%c8_149, %c0_150] : memref<152x512xbf16, #tpu.memory_space<vmem>>, vector<16x512xbf16>
    tpu.vector_store %arg8[%c8_149, %c0_150], %194 {strides = array<i32>} : memref<152x512xbf16, #tpu.memory_space<vmem>>, vector<16x512xbf16>,
    %c16_i32_151 = arith.constant 16 : i32
    %196 = tpu.dynamic_rotate %189 by %c16_i32_151 dim 1 : vector<16x512xf32>, i32 -> vector<16x512xf32>
    %c1_152 = arith.constant 1 : index
    %c0_153 = arith.constant 0 : index
    %c0_154 = arith.constant 0 : index
    %197 = vector.load %arg1[%c1_152, %c0_153, %c0_154] : memref<9x16x512xf32, #tpu.memory_space<vmem>>, vector<1x16x512xf32>
    %198 = vector.shape_cast %197 : vector<1x16x512xf32> to vector<16x512xf32>
    %199 = arith.mulf %196, %198 : vector<16x512xf32>
    %200 = arith.truncf %199 : vector<16x512xf32> to vector<16x512xbf16>
    %c24_155 = arith.constant 24 : index
    %c0_156 = arith.constant 0 : index
    %201 = vector.load %arg8[%c24_155, %c0_156] : memref<152x512xbf16, #tpu.memory_space<vmem>>, vector<16x512xbf16>
    tpu.vector_store %arg8[%c24_155, %c0_156], %200 {strides = array<i32>} : memref<152x512xbf16, #tpu.memory_space<vmem>>, vector<16x512xbf16>,
    %c15_i32_157 = arith.constant 15 : i32
    %202 = tpu.dynamic_rotate %189 by %c15_i32_157 dim 1 : vector<16x512xf32>, i32 -> vector<16x512xf32>
    %c2_158 = arith.constant 2 : index
    %c0_159 = arith.constant 0 : index
    %c0_160 = arith.constant 0 : index
    %203 = vector.load %arg1[%c2_158, %c0_159, %c0_160] : memref<9x16x512xf32, #tpu.memory_space<vmem>>, vector<1x16x512xf32>
    %204 = vector.shape_cast %203 : vector<1x16x512xf32> to vector<16x512xf32>
    %205 = arith.mulf %202, %204 : vector<16x512xf32>
    %206 = arith.truncf %205 : vector<16x512xf32> to vector<16x512xbf16>
    %c40_161 = arith.constant 40 : index
    %c0_162 = arith.constant 0 : index
    %207 = vector.load %arg8[%c40_161, %c0_162] : memref<152x512xbf16, #tpu.memory_space<vmem>>, vector<16x512xbf16>
    tpu.vector_store %arg8[%c40_161, %c0_162], %206 {strides = array<i32>} : memref<152x512xbf16, #tpu.memory_space<vmem>>, vector<16x512xbf16>,
    %c1_i32_163 = arith.constant 1 : i32
    %208 = tpu.dynamic_rotate %189 by %c1_i32_163 dim 1 : vector<16x512xf32>, i32 -> vector<16x512xf32>
    %c3_164 = arith.constant 3 : index
    %c0_165 = arith.constant 0 : index
    %c0_166 = arith.constant 0 : index
    %209 = vector.load %arg1[%c3_164, %c0_165, %c0_166] : memref<9x16x512xf32, #tpu.memory_space<vmem>>, vector<1x16x512xf32>
    %210 = vector.shape_cast %209 : vector<1x16x512xf32> to vector<16x512xf32>
    %211 = arith.mulf %208, %210 : vector<16x512xf32>
    %212 = arith.truncf %211 : vector<16x512xf32> to vector<16x512xbf16>
    %c56_167 = arith.constant 56 : index
    %c0_168 = arith.constant 0 : index
    %213 = vector.load %arg8[%c56_167, %c0_168] : memref<152x512xbf16, #tpu.memory_space<vmem>>, vector<16x512xbf16>
    tpu.vector_store %arg8[%c56_167, %c0_168], %212 {strides = array<i32>} : memref<152x512xbf16, #tpu.memory_space<vmem>>, vector<16x512xbf16>,
    %214 = arith.truncf %189 : vector<16x512xf32> to vector<16x512xbf16>
    %c72_169 = arith.constant 72 : index
    %c0_170 = arith.constant 0 : index
    %215 = vector.load %arg8[%c72_169, %c0_170] : memref<152x512xbf16, #tpu.memory_space<vmem>>, vector<16x512xbf16>
    tpu.vector_store %arg8[%c72_169, %c0_170], %214 {strides = array<i32>} : memref<152x512xbf16, #tpu.memory_space<vmem>>, vector<16x512xbf16>,
    %c511_i32_171 = arith.constant 511 : i32
    %216 = tpu.dynamic_rotate %189 by %c511_i32_171 dim 1 : vector<16x512xf32>, i32 -> vector<16x512xf32>
    %c5_172 = arith.constant 5 : index
    %c0_173 = arith.constant 0 : index
    %c0_174 = arith.constant 0 : index
    %217 = vector.load %arg1[%c5_172, %c0_173, %c0_174] : memref<9x16x512xf32, #tpu.memory_space<vmem>>, vector<1x16x512xf32>
    %218 = vector.shape_cast %217 : vector<1x16x512xf32> to vector<16x512xf32>
    %219 = arith.mulf %216, %218 : vector<16x512xf32>
    %220 = arith.truncf %219 : vector<16x512xf32> to vector<16x512xbf16>
    %c88_175 = arith.constant 88 : index
    %c0_176 = arith.constant 0 : index
    %221 = vector.load %arg8[%c88_175, %c0_176] : memref<152x512xbf16, #tpu.memory_space<vmem>>, vector<16x512xbf16>
    tpu.vector_store %arg8[%c88_175, %c0_176], %220 {strides = array<i32>} : memref<152x512xbf16, #tpu.memory_space<vmem>>, vector<16x512xbf16>,
    %c497_i32_177 = arith.constant 497 : i32
    %222 = tpu.dynamic_rotate %189 by %c497_i32_177 dim 1 : vector<16x512xf32>, i32 -> vector<16x512xf32>
    %c6_178 = arith.constant 6 : index
    %c0_179 = arith.constant 0 : index
    %c0_180 = arith.constant 0 : index
    %223 = vector.load %arg1[%c6_178, %c0_179, %c0_180] : memref<9x16x512xf32, #tpu.memory_space<vmem>>, vector<1x16x512xf32>
    %224 = vector.shape_cast %223 : vector<1x16x512xf32> to vector<16x512xf32>
    %225 = arith.mulf %222, %224 : vector<16x512xf32>
    %226 = arith.truncf %225 : vector<16x512xf32> to vector<16x512xbf16>
    %c104_181 = arith.constant 104 : index
    %c0_182 = arith.constant 0 : index
    %227 = vector.load %arg8[%c104_181, %c0_182] : memref<152x512xbf16, #tpu.memory_space<vmem>>, vector<16x512xbf16>
    tpu.vector_store %arg8[%c104_181, %c0_182], %226 {strides = array<i32>} : memref<152x512xbf16, #tpu.memory_space<vmem>>, vector<16x512xbf16>,
    %c496_i32_183 = arith.constant 496 : i32
    %228 = tpu.dynamic_rotate %189 by %c496_i32_183 dim 1 : vector<16x512xf32>, i32 -> vector<16x512xf32>
    %c7_184 = arith.constant 7 : index
    %c0_185 = arith.constant 0 : index
    %c0_186 = arith.constant 0 : index
    %229 = vector.load %arg1[%c7_184, %c0_185, %c0_186] : memref<9x16x512xf32, #tpu.memory_space<vmem>>, vector<1x16x512xf32>
    %230 = vector.shape_cast %229 : vector<1x16x512xf32> to vector<16x512xf32>
    %231 = arith.mulf %228, %230 : vector<16x512xf32>
    %232 = arith.truncf %231 : vector<16x512xf32> to vector<16x512xbf16>
    %c120_187 = arith.constant 120 : index
    %c0_188 = arith.constant 0 : index
    %233 = vector.load %arg8[%c120_187, %c0_188] : memref<152x512xbf16, #tpu.memory_space<vmem>>, vector<16x512xbf16>
    tpu.vector_store %arg8[%c120_187, %c0_188], %232 {strides = array<i32>} : memref<152x512xbf16, #tpu.memory_space<vmem>>, vector<16x512xbf16>,
    %c495_i32_189 = arith.constant 495 : i32
    %234 = tpu.dynamic_rotate %189 by %c495_i32_189 dim 1 : vector<16x512xf32>, i32 -> vector<16x512xf32>
    %c8_190 = arith.constant 8 : index
    %c0_191 = arith.constant 0 : index
    %c0_192 = arith.constant 0 : index
    %235 = vector.load %arg1[%c8_190, %c0_191, %c0_192] : memref<9x16x512xf32, #tpu.memory_space<vmem>>, vector<1x16x512xf32>
    %236 = vector.shape_cast %235 : vector<1x16x512xf32> to vector<16x512xf32>
    %237 = arith.mulf %234, %236 : vector<16x512xf32>
    %238 = arith.truncf %237 : vector<16x512xf32> to vector<16x512xbf16>
    %c136_193 = arith.constant 136 : index
    %c0_194 = arith.constant 0 : index
    %239 = vector.load %arg8[%c136_193, %c0_194] : memref<152x512xbf16, #tpu.memory_space<vmem>>, vector<16x512xbf16>
    tpu.vector_store %arg8[%c136_193, %c0_194], %238 {strides = array<i32>} : memref<152x512xbf16, #tpu.memory_space<vmem>>, vector<16x512xbf16>,
    %c0_195 = arith.constant 0 : index
    %c0_196 = arith.constant 0 : index
    %240 = vector.load %arg5[%c0_195, %c0_196] : memref<8x152xbf16, #tpu.memory_space<vmem>>, vector<8x152xbf16>
    %c0_197 = arith.constant 0 : index
    %c0_198 = arith.constant 0 : index
    %241 = vector.load %arg8[%c0_197, %c0_198] : memref<152x512xbf16, #tpu.memory_space<vmem>>, vector<152x512xbf16>
    %cst_199 = arith.constant dense<0.000000e+00> : vector<8x512xf32>
    %242 = tpu.matmul %240, %241, %cst_199 {dimension_numbers = #tpu.dot_dimension_numbers<[1], [0], [0], [1], [0, 0, 1, 1], [], []>} : vector<8x152xbf16>, vector<152x512xbf16>, vector<8x512xf32> -> vector<8x512xf32>
    %cst_200 = arith.constant 0.000000e+00 : f32
    %243 = vector.broadcast %cst_200 : f32 to vector<8x512xf32>
    %244 = arith.maximumf %242, %243 : vector<8x512xf32>
    %c17_i32_201 = arith.constant 17 : i32
    %245 = tpu.dynamic_rotate %244 by %c17_i32_201 dim 1 : vector<8x512xf32>, i32 -> vector<8x512xf32>
    %c0_202 = arith.constant 0 : index
    %c0_203 = arith.constant 0 : index
    %c0_204 = arith.constant 0 : index
    %246 = vector.load %arg1[%c0_202, %c0_203, %c0_204] : memref<9x16x512xf32, #tpu.memory_space<vmem>>, vector<1x16x512xf32>
    %247 = vector.shape_cast %246 : vector<1x16x512xf32> to vector<16x512xf32>
    %248 = vector.extract_strided_slice %247 {offsets = [0, 0], sizes = [8, 512], strides = [1, 1]} : vector<16x512xf32> to vector<8x512xf32>
    %249 = arith.mulf %245, %248 : vector<8x512xf32>
    %250 = arith.truncf %249 : vector<8x512xf32> to vector<8x512xbf16>
    %c8_205 = arith.constant 8 : index
    %c0_206 = arith.constant 0 : index
    %251 = vector.load %arg8[%c8_205, %c0_206] : memref<152x512xbf16, #tpu.memory_space<vmem>>, vector<8x512xbf16>
    tpu.vector_store %arg8[%c8_205, %c0_206], %250 {strides = array<i32>} : memref<152x512xbf16, #tpu.memory_space<vmem>>, vector<8x512xbf16>,
    %c16_i32_207 = arith.constant 16 : i32
    %252 = tpu.dynamic_rotate %244 by %c16_i32_207 dim 1 : vector<8x512xf32>, i32 -> vector<8x512xf32>
    %c1_208 = arith.constant 1 : index
    %c0_209 = arith.constant 0 : index
    %c0_210 = arith.constant 0 : index
    %253 = vector.load %arg1[%c1_208, %c0_209, %c0_210] : memref<9x16x512xf32, #tpu.memory_space<vmem>>, vector<1x16x512xf32>
    %254 = vector.shape_cast %253 : vector<1x16x512xf32> to vector<16x512xf32>
    %255 = vector.extract_strided_slice %254 {offsets = [0, 0], sizes = [8, 512], strides = [1, 1]} : vector<16x512xf32> to vector<8x512xf32>
    %256 = arith.mulf %252, %255 : vector<8x512xf32>
    %257 = arith.truncf %256 : vector<8x512xf32> to vector<8x512xbf16>
    %c16_211 = arith.constant 16 : index
    %c0_212 = arith.constant 0 : index
    %258 = vector.load %arg8[%c16_211, %c0_212] : memref<152x512xbf16, #tpu.memory_space<vmem>>, vector<8x512xbf16>
    tpu.vector_store %arg8[%c16_211, %c0_212], %257 {strides = array<i32>} : memref<152x512xbf16, #tpu.memory_space<vmem>>, vector<8x512xbf16>,
    %c15_i32_213 = arith.constant 15 : i32
    %259 = tpu.dynamic_rotate %244 by %c15_i32_213 dim 1 : vector<8x512xf32>, i32 -> vector<8x512xf32>
    %c2_214 = arith.constant 2 : index
    %c0_215 = arith.constant 0 : index
    %c0_216 = arith.constant 0 : index
    %260 = vector.load %arg1[%c2_214, %c0_215, %c0_216] : memref<9x16x512xf32, #tpu.memory_space<vmem>>, vector<1x16x512xf32>
    %261 = vector.shape_cast %260 : vector<1x16x512xf32> to vector<16x512xf32>
    %262 = vector.extract_strided_slice %261 {offsets = [0, 0], sizes = [8, 512], strides = [1, 1]} : vector<16x512xf32> to vector<8x512xf32>
    %263 = arith.mulf %259, %262 : vector<8x512xf32>
    %264 = arith.truncf %263 : vector<8x512xf32> to vector<8x512xbf16>
    %c24_217 = arith.constant 24 : index
    %c0_218 = arith.constant 0 : index
    %265 = vector.load %arg8[%c24_217, %c0_218] : memref<152x512xbf16, #tpu.memory_space<vmem>>, vector<8x512xbf16>
    tpu.vector_store %arg8[%c24_217, %c0_218], %264 {strides = array<i32>} : memref<152x512xbf16, #tpu.memory_space<vmem>>, vector<8x512xbf16>,
    %c1_i32_219 = arith.constant 1 : i32
    %266 = tpu.dynamic_rotate %244 by %c1_i32_219 dim 1 : vector<8x512xf32>, i32 -> vector<8x512xf32>
    %c3_220 = arith.constant 3 : index
    %c0_221 = arith.constant 0 : index
    %c0_222 = arith.constant 0 : index
    %267 = vector.load %arg1[%c3_220, %c0_221, %c0_222] : memref<9x16x512xf32, #tpu.memory_space<vmem>>, vector<1x16x512xf32>
    %268 = vector.shape_cast %267 : vector<1x16x512xf32> to vector<16x512xf32>
    %269 = vector.extract_strided_slice %268 {offsets = [0, 0], sizes = [8, 512], strides = [1, 1]} : vector<16x512xf32> to vector<8x512xf32>
    %270 = arith.mulf %266, %269 : vector<8x512xf32>
    %271 = arith.truncf %270 : vector<8x512xf32> to vector<8x512xbf16>
    %c32_223 = arith.constant 32 : index
    %c0_224 = arith.constant 0 : index
    %272 = vector.load %arg8[%c32_223, %c0_224] : memref<152x512xbf16, #tpu.memory_space<vmem>>, vector<8x512xbf16>
    tpu.vector_store %arg8[%c32_223, %c0_224], %271 {strides = array<i32>} : memref<152x512xbf16, #tpu.memory_space<vmem>>, vector<8x512xbf16>,
    %273 = arith.truncf %244 : vector<8x512xf32> to vector<8x512xbf16>
    %c40_225 = arith.constant 40 : index
    %c0_226 = arith.constant 0 : index
    %274 = vector.load %arg8[%c40_225, %c0_226] : memref<152x512xbf16, #tpu.memory_space<vmem>>, vector<8x512xbf16>
    tpu.vector_store %arg8[%c40_225, %c0_226], %273 {strides = array<i32>} : memref<152x512xbf16, #tpu.memory_space<vmem>>, vector<8x512xbf16>,
    %c511_i32_227 = arith.constant 511 : i32
    %275 = tpu.dynamic_rotate %244 by %c511_i32_227 dim 1 : vector<8x512xf32>, i32 -> vector<8x512xf32>
    %c5_228 = arith.constant 5 : index
    %c0_229 = arith.constant 0 : index
    %c0_230 = arith.constant 0 : index
    %276 = vector.load %arg1[%c5_228, %c0_229, %c0_230] : memref<9x16x512xf32, #tpu.memory_space<vmem>>, vector<1x16x512xf32>
    %277 = vector.shape_cast %276 : vector<1x16x512xf32> to vector<16x512xf32>
    %278 = vector.extract_strided_slice %277 {offsets = [0, 0], sizes = [8, 512], strides = [1, 1]} : vector<16x512xf32> to vector<8x512xf32>
    %279 = arith.mulf %275, %278 : vector<8x512xf32>
    %280 = arith.truncf %279 : vector<8x512xf32> to vector<8x512xbf16>
    %c48_231 = arith.constant 48 : index
    %c0_232 = arith.constant 0 : index
    %281 = vector.load %arg8[%c48_231, %c0_232] : memref<152x512xbf16, #tpu.memory_space<vmem>>, vector<8x512xbf16>
    tpu.vector_store %arg8[%c48_231, %c0_232], %280 {strides = array<i32>} : memref<152x512xbf16, #tpu.memory_space<vmem>>, vector<8x512xbf16>,
    %c497_i32_233 = arith.constant 497 : i32
    %282 = tpu.dynamic_rotate %244 by %c497_i32_233 dim 1 : vector<8x512xf32>, i32 -> vector<8x512xf32>
    %c6_234 = arith.constant 6 : index
    %c0_235 = arith.constant 0 : index
    %c0_236 = arith.constant 0 : index
    %283 = vector.load %arg1[%c6_234, %c0_235, %c0_236] : memref<9x16x512xf32, #tpu.memory_space<vmem>>, vector<1x16x512xf32>
    %284 = vector.shape_cast %283 : vector<1x16x512xf32> to vector<16x512xf32>
    %285 = vector.extract_strided_slice %284 {offsets = [0, 0], sizes = [8, 512], strides = [1, 1]} : vector<16x512xf32> to vector<8x512xf32>
    %286 = arith.mulf %282, %285 : vector<8x512xf32>
    %287 = arith.truncf %286 : vector<8x512xf32> to vector<8x512xbf16>
    %c56_237 = arith.constant 56 : index
    %c0_238 = arith.constant 0 : index
    %288 = vector.load %arg8[%c56_237, %c0_238] : memref<152x512xbf16, #tpu.memory_space<vmem>>, vector<8x512xbf16>
    tpu.vector_store %arg8[%c56_237, %c0_238], %287 {strides = array<i32>} : memref<152x512xbf16, #tpu.memory_space<vmem>>, vector<8x512xbf16>,
    %c496_i32_239 = arith.constant 496 : i32
    %289 = tpu.dynamic_rotate %244 by %c496_i32_239 dim 1 : vector<8x512xf32>, i32 -> vector<8x512xf32>
    %c7_240 = arith.constant 7 : index
    %c0_241 = arith.constant 0 : index
    %c0_242 = arith.constant 0 : index
    %290 = vector.load %arg1[%c7_240, %c0_241, %c0_242] : memref<9x16x512xf32, #tpu.memory_space<vmem>>, vector<1x16x512xf32>
    %291 = vector.shape_cast %290 : vector<1x16x512xf32> to vector<16x512xf32>
    %292 = vector.extract_strided_slice %291 {offsets = [0, 0], sizes = [8, 512], strides = [1, 1]} : vector<16x512xf32> to vector<8x512xf32>
    %293 = arith.mulf %289, %292 : vector<8x512xf32>
    %294 = arith.truncf %293 : vector<8x512xf32> to vector<8x512xbf16>
    %c64_243 = arith.constant 64 : index
    %c0_244 = arith.constant 0 : index
    %295 = vector.load %arg8[%c64_243, %c0_244] : memref<152x512xbf16, #tpu.memory_space<vmem>>, vector<8x512xbf16>
    tpu.vector_store %arg8[%c64_243, %c0_244], %294 {strides = array<i32>} : memref<152x512xbf16, #tpu.memory_space<vmem>>, vector<8x512xbf16>,
    %c495_i32_245 = arith.constant 495 : i32
    %296 = tpu.dynamic_rotate %244 by %c495_i32_245 dim 1 : vector<8x512xf32>, i32 -> vector<8x512xf32>
    %c8_246 = arith.constant 8 : index
    %c0_247 = arith.constant 0 : index
    %c0_248 = arith.constant 0 : index
    %297 = vector.load %arg1[%c8_246, %c0_247, %c0_248] : memref<9x16x512xf32, #tpu.memory_space<vmem>>, vector<1x16x512xf32>
    %298 = vector.shape_cast %297 : vector<1x16x512xf32> to vector<16x512xf32>
    %299 = vector.extract_strided_slice %298 {offsets = [0, 0], sizes = [8, 512], strides = [1, 1]} : vector<16x512xf32> to vector<8x512xf32>
    %300 = arith.mulf %296, %299 : vector<8x512xf32>
    %301 = arith.truncf %300 : vector<8x512xf32> to vector<8x512xbf16>
    %c72_249 = arith.constant 72 : index
    %c0_250 = arith.constant 0 : index
    %302 = vector.load %arg8[%c72_249, %c0_250] : memref<152x512xbf16, #tpu.memory_space<vmem>>, vector<8x512xbf16>
    tpu.vector_store %arg8[%c72_249, %c0_250], %301 {strides = array<i32>} : memref<152x512xbf16, #tpu.memory_space<vmem>>, vector<8x512xbf16>,
    %c0_251 = arith.constant 0 : index
    %c0_252 = arith.constant 0 : index
    %303 = vector.load %arg6[%c0_251, %c0_252] : memref<8x80xbf16, #tpu.memory_space<vmem>>, vector<8x80xbf16>
    %c0_253 = arith.constant 0 : index
    %c0_254 = arith.constant 0 : index
    %304 = vector.load %arg8[%c0_253, %c0_254] : memref<152x512xbf16, #tpu.memory_space<vmem>>, vector<80x512xbf16>
    %cst_255 = arith.constant dense<0.000000e+00> : vector<8x512xf32>
    %305 = tpu.matmul %303, %304, %cst_255 {dimension_numbers = #tpu.dot_dimension_numbers<[1], [0], [0], [1], [0, 0, 1, 1], [], []>} : vector<8x80xbf16>, vector<80x512xbf16>, vector<8x512xf32> -> vector<8x512xf32>
    %c0_256 = arith.constant 0 : index
    %c0_257 = arith.constant 0 : index
    %306 = vector.load %arg7[%c0_256, %c0_257] : memref<8x512xf32, #tpu.memory_space<vmem>>, vector<8x512xf32>
    tpu.vector_store %arg7[%c0_256, %c0_257], %305 {strides = array<i32>} : memref<8x512xf32, #tpu.memory_space<vmem>>, vector<8x512xf32>,
    return
  }
}

</mosaic_0001>

<llo_original>
// kernel: tpu_custom_call.1
$region0: #{tpu_custom_call.1}
  #allocation0 [shape = 'u32[]', space=smem, size = 0x4, offset = 0x4, fixed_abs, tag = 'smem constant byte address 0x4 - core index']
  #allocation1 [shape = 'u32[144,128]{1,0:T(1,128)}', space=vmem, size = 0x12000, scoped, tag = 'internal scratch']
  #allocation2 [shape = 'bf16[152,512]{1,0:T(8,128)(2,1)}', space=vmem, size = 0x26000, scoped, tag = 'scratch operand']
  %s0 = inlined_call_operand.hbm [shape: f32[8,512], index: 0, kind: input, shape index: {}]
  %s1 = inlined_call_operand.hbm [shape: f32[9,16,512], index: 1, kind: input, shape index: {}]
  %s2 = inlined_call_operand.hbm [shape: bf16[8,80], index: 2, kind: input, shape index: {}]
  %s3 = inlined_call_operand.hbm [shape: bf16[16,80], index: 3, kind: input, shape index: {}]
  %s4 = inlined_call_operand.hbm [shape: bf16[16,152], index: 4, kind: input, shape index: {}]
  %s5 = inlined_call_operand.vmem [shape: bf16[8,152], index: 5, kind: input, shape index: {}]
  %s6 = inlined_call_operand.hbm [shape: bf16[8,80], index: 6, kind: input, shape index: {}]
  %s7 = inlined_call_operand.hbm [shape: f32[8,512], index: 7, kind: output, shape index: {}]
  %s8 = sld [smem:[#allocation0]]
  $region62: #{tpu_custom_call.1} parent=0
    _
  %s10 = ssub.s32 1, %s8
  %s11 = scalar_select 0, %s10, %s8
  $region1: #{tpu_custom_call.1} parent=0
    #allocation3 [shape = 'u8[16384]{0}', space=vmem, size = 0x4000, scoped, tag = 'input window, operand 0, single buffered']
    #allocation4 [shape = 's32[1]{0}', space=sflag, size = 0x4, scoped, tag = 'scoped memory for tpu_custom_call.1']
    #allocation5 [shape = 's32[1]{0}', space=sflag, size = 0x4, scoped, tag = 'scoped memory for tpu_custom_call.1']
    #allocation6 [shape = 'u8[294912]{0}', space=vmem, size = 0x48000, scoped, tag = 'input window, operand 1, single buffered']
    #allocation7 [shape = 's32[1]{0}', space=sflag, size = 0x4, scoped, tag = 'scoped memory for tpu_custom_call.1']
    #allocation8 [shape = 'u8[2048]{0}', space=vmem, size = 0x800, scoped, tag = 'input window, operand 2, single buffered']
    #allocation9 [shape = 'u8[4096]{0}', space=vmem, size = 0x1000, scoped, tag = 'input window, operand 3, single buffered']
    #allocation10 [shape = 's32[1]{0}', space=sflag, size = 0x4, scoped, tag = 'scoped memory for tpu_custom_call.1']
    #allocation11 [shape = 'u8[8192]{0}', space=vmem, size = 0x2000, scoped, tag = 'input window, operand 4, single buffered']
    #allocation12 [shape = 'u8[2048]{0}', space=vmem, size = 0x800, scoped, tag = 'input window, operand 6, single buffered']
    #allocation13 [shape = 's32[1]{0}', space=sflag, size = 0x4, scoped, tag = 'scoped memory for tpu_custom_call.1']
    #allocation14 [shape = 'u8[16384]{0}', space=vmem, size = 0x4000, scoped, tag = 'output window, operand 0, single buffered']
    %12 = vsyncpa [#allocation4], 0
    %13 = vsyncpa [#allocation7], 0
    %14 = vsyncpa [#allocation10], 0
    %15 = vsyncpa [#allocation13], 0
    %16 = vsyncpa [#allocation5], 0
    // Predicated region
    $region2: #{tpu_custom_call.1} parent=1 // pred_check
      _
    $region3: #{tpu_custom_call.1} parent=1 // pred_check_branch
      %18 = sbr.rel (0) target = $region5
    $region4: #{tpu_custom_call.1} parent=1 // pred_region
      %s20 = ssub.s32 512, 512
      %21 = vsyncadd [#allocation4], %s20
      %s23 = sshll.u32 [#allocation3], 4
      %s24 = int_to_ptr.vmem [resolvable:$true] %s23
      %26 = dma.hbm_to_vmem [thread:$0]  %s0, 512, %s24, [#allocation4]
    $region5: #{tpu_custom_call.1} parent=1 // pred_fallthru
      _
    // Predicated region
    $region6: #{tpu_custom_call.1} parent=1 // pred_check
      _
    $region7: #{tpu_custom_call.1} parent=1 // pred_check_branch
      %28 = sbr.rel (0) target = $region9
    $region8: #{tpu_custom_call.1} parent=1 // pred_region
      %s30 = ssub.s32 9216, 9216
      %31 = vsyncadd [#allocation7], %s30
      %s32 = sshll.u32 [#allocation6], 4
      %s33 = int_to_ptr.vmem [resolvable:$true] %s32
      %38 = dma.hbm_to_vmem [thread:$0]  %s1, 9216, %s33, [#allocation7], 512, 512, 32
    $region9: #{tpu_custom_call.1} parent=1 // pred_fallthru
      _
    // Predicated region
    $region10: #{tpu_custom_call.1} parent=1 // pred_check
      _
    $region11: #{tpu_custom_call.1} parent=1 // pred_check_branch
      %40 = sbr.rel (0) target = $region13
    $region12: #{tpu_custom_call.1} parent=1 // pred_region
      %s42 = ssub.s32 64, 64
      %43 = vsyncadd [#allocation7], %s42
      %s45 = sshll.u32 [#allocation8], 4
      %s46 = int_to_ptr.vmem [resolvable:$true] %s45
      %48 = dma.hbm_to_vmem [thread:$0]  %s2, 64, %s46, [#allocation7]
    $region13: #{tpu_custom_call.1} parent=1 // pred_fallthru
      _
    // Predicated region
    $region14: #{tpu_custom_call.1} parent=1 // pred_check
      _
    $region15: #{tpu_custom_call.1} parent=1 // pred_check_branch
      %50 = sbr.rel (0) target = $region17
    $region16: #{tpu_custom_call.1} parent=1 // pred_region
      %s52 = ssub.s32 128, 128
      %53 = vsyncadd [#allocation10], %s52
      %s54 = sshll.u32 [#allocation9], 4
      %s55 = int_to_ptr.vmem [resolvable:$true] %s54
      %60 = dma.hbm_to_vmem [thread:$0]  %s3, 128, %s55, [#allocation10], 64, 64, 4
    $region17: #{tpu_custom_call.1} parent=1 // pred_fallthru
      _
    // Predicated region
    $region18: #{tpu_custom_call.1} parent=1 // pred_check
      _
    $region19: #{tpu_custom_call.1} parent=1 // pred_check_branch
      %62 = sbr.rel (0) target = $region21
    $region20: #{tpu_custom_call.1} parent=1 // pred_region
      %s64 = ssub.s32 256, 256
      %65 = vsyncadd [#allocation10], %s64
      %s66 = sshll.u32 [#allocation11], 4
      %s67 = int_to_ptr.vmem [resolvable:$true] %s66
      %72 = dma.hbm_to_vmem [thread:$0]  %s4, 256, %s67, [#allocation10], 128, 128, 8
    $region21: #{tpu_custom_call.1} parent=1 // pred_fallthru
      _
    // Predicated region
    $region22: #{tpu_custom_call.1} parent=1 // pred_check
      _
    $region23: #{tpu_custom_call.1} parent=1 // pred_check_branch
      %74 = sbr.rel (0) target = $region25
    $region24: #{tpu_custom_call.1} parent=1 // pred_region
      _
    $region25: #{tpu_custom_call.1} parent=1 // pred_fallthru
      _
    // Predicated region
    $region26: #{tpu_custom_call.1} parent=1 // pred_check
      _
    $region27: #{tpu_custom_call.1} parent=1 // pred_check_branch
      %76 = sbr.rel (0) target = $region29
    $region28: #{tpu_custom_call.1} parent=1 // pred_region
      %s78 = ssub.s32 64, 64
      %79 = vsyncadd [#allocation13], %s78
      %s81 = sshll.u32 [#allocation12], 4
      %s82 = int_to_ptr.vmem [resolvable:$true] %s81
      %84 = dma.hbm_to_vmem [thread:$0]  %s6, 64, %s82, [#allocation13]
    $region29: #{tpu_custom_call.1} parent=1 // pred_fallthru
      _
    // Predicated region
    $region30: #{tpu_custom_call.1} parent=1 // pred_check
      _
    $region31: #{tpu_custom_call.1} parent=1 // pred_check_branch
      %86 = sbr.rel (0) target = $region33
    $region32: #{tpu_custom_call.1} parent=1 // pred_region
      %87 = dma.done [#allocation4], 512
    $region33: #{tpu_custom_call.1} parent=1 // pred_fallthru
      _
    // Predicated region
    $region34: #{tpu_custom_call.1} parent=1 // pred_check
      _
    $region35: #{tpu_custom_call.1} parent=1 // pred_check_branch
      %89 = sbr.rel (0) target = $region37
    $region36: #{tpu_custom_call.1} parent=1 // pred_region
      %90 = dma.done [#allocation7], 9216
    $region37: #{tpu_custom_call.1} parent=1 // pred_fallthru
      _
    // Predicated region
    $region38: #{tpu_custom_call.1} parent=1 // pred_check
      _
    $region39: #{tpu_custom_call.1} parent=1 // pred_check_branch
      %92 = sbr.rel (0) target = $region41
    $region40: #{tpu_custom_call.1} parent=1 // pred_region
      %93 = dma.done [#allocation7], 64
    $region41: #{tpu_custom_call.1} parent=1 // pred_fallthru
      _
    // Predicated region
    $region42: #{tpu_custom_call.1} parent=1 // pred_check
      _
    $region43: #{tpu_custom_call.1} parent=1 // pred_check_branch
      %95 = sbr.rel (0) target = $region45
    $region44: #{tpu_custom_call.1} parent=1 // pred_region
      %96 = dma.done [#allocation10], 128
    $region45: #{tpu_custom_call.1} parent=1 // pred_fallthru
      _
    // Predicated region
    $region46: #{tpu_custom_call.1} parent=1 // pred_check
      _
    $region47: #{tpu_custom_call.1} parent=1 // pred_check_branch
      %98 = sbr.rel (0) target = $region49
    $region48: #{tpu_custom_call.1} parent=1 // pred_region
      %99 = dma.done [#allocation10], 256
    $region49: #{tpu_custom_call.1} parent=1 // pred_fallthru
      _
    // Predicated region
    $region50: #{tpu_custom_call.1} parent=1 // pred_check
      _
    $region51: #{tpu_custom_call.1} parent=1 // pred_check_branch
      %101 = sbr.rel (0) target = $region53
    $region52: #{tpu_custom_call.1} parent=1 // pred_region
      %102 = dma.done [#allocation13], 64
    $region53: #{tpu_custom_call.1} parent=1 // pred_fallthru
      _
    %v104 = vlaneseq
    %v105 = vshrl.u32 %v104, 7
    %vm106 = vcmp.eq.s32.totalorder %v105, 0
    %v107 = vsel %vm106, 1.0, 0.0
    %v108 = vpack.c.bf16 %v107, %v107
    %v111 = vunpack.c.l.s4 839922192
    %v112 = vunpack.c.0.s8 %v111
    %v113 = vlaneseq
    %v114 = vshrl.u32 %v113, 7
    %v115 = vsub.s32 %v112, %v114
    %v116 = vrot.slane %v108, %v115
    %118 = vst [vmem:[#allocation2] sm:$0xff] %v116
    %119 = vst [vmem:[#allocation2 + $0x8] sm:$0xff] %v116
    %v120 = vld [vmem:[#allocation3] sm:$0xff]
    %v121 = vld [vmem:[#allocation3 + $0x8] sm:$0xff]
    %v122 = vld [vmem:[#allocation3 + $0x10] sm:$0xff]
    %v123 = vld [vmem:[#allocation3 + $0x18] sm:$0xff]
    %124 = vrot.lane.b32.xlu0 %v120, 17
    %v125 = vpop.permute.xlu0 %124
    %126 = vrot.lane.b32.xlu0 %v121, 17
    %v127 = vpop.permute.xlu0 %126
    %128 = vrot.lane.b32.xlu0 %v122, 17
    %v129 = vpop.permute.xlu0 %128
    %130 = vrot.lane.b32.xlu0 %v123, 17
    %v131 = vpop.permute.xlu0 %130
    %v132 = vlaneseq
    %v133 = vand.u32 %v132, 127
    %vm134 = vcmp.lt.s32.totalorder %v133, 17
    %v135 = vsel %vm134, %v129, %v131
    %v136 = vsel %vm134, %v127, %v129
    %v137 = vsel %vm134, %v125, %v127
    %v138 = vsel %vm134, %v131, %v125
    %v139 = vld [vmem:[#allocation6] sm:$0xff]
    %v140 = vld [vmem:[#allocation6 + $0x8] sm:$0xff]
    %v141 = vld [vmem:[#allocation6 + $0x10] sm:$0xff]
    %v142 = vld [vmem:[#allocation6 + $0x18] sm:$0xff]
    %v143 = vmul.f32 %v138, %v139
    %v144 = vmul.f32 %v137, %v140
    %v145 = vmul.f32 %v136, %v141
    %v146 = vmul.f32 %v135, %v142
    %v147 = vpack.c.bf16 %v143, %v143
    %v148 = vpack.c.bf16 %v144, %v144
    %v149 = vpack.c.bf16 %v145, %v145
    %v150 = vpack.c.bf16 %v146, %v146
    %v155 = vunpack.c.l.b16 %v147
    %v156 = vunpack.c.l.b16 %v148
    %v157 = vunpack.c.l.b16 %v149
    %v158 = vunpack.c.l.b16 %v150
    %v159 = vpack.c.b16 %v156, %v155
    %v160 = vpack.c.b16 %v158, %v157
    %163 = vst [vmem:[#allocation2 + $0x10] sm:$0xff] %v159
    %164 = vst [vmem:[#allocation2 + $0x18] sm:$0xff] %v160
    %165 = vrot.lane.b32.xlu0 %v120, 16
    %v166 = vpop.permute.xlu0 %165
    %167 = vrot.lane.b32.xlu0 %v121, 16
    %v168 = vpop.permute.xlu0 %167
    %169 = vrot.lane.b32.xlu0 %v122, 16
    %v170 = vpop.permute.xlu0 %169
    %171 = vrot.lane.b32.xlu0 %v123, 16
    %v172 = vpop.permute.xlu0 %171
    %vm173 = vcmp.lt.s32.totalorder %v133, 16
    %v174 = vsel %vm173, %v170, %v172
    %v175 = vsel %vm173, %v168, %v170
    %v176 = vsel %vm173, %v166, %v168
    %v177 = vsel %vm173, %v172, %v166
    %s178 = scalar_lea.vmem [#allocation6], 64
    %v179 = vld [vmem:[%s178] sm:$0xff]
    %v180 = vld [vmem:[%s178 + $0x8] sm:$0xff]
    %v181 = vld [vmem:[%s178 + $0x10] sm:$0xff]
    %v182 = vld [vmem:[%s178 + $0x18] sm:$0xff]
    %v183 = vmul.f32 %v177, %v179
    %v184 = vmul.f32 %v176, %v180
    %v185 = vmul.f32 %v175, %v181
    %v186 = vmul.f32 %v174, %v182
    %v187 = vpack.c.bf16 %v183, %v183
    %v188 = vpack.c.bf16 %v184, %v184
    %v189 = vpack.c.bf16 %v185, %v185
    %v190 = vpack.c.bf16 %v186, %v186
    %v195 = vunpack.c.l.b16 %v187
    %v196 = vunpack.c.l.b16 %v188
    %v197 = vunpack.c.l.b16 %v189
    %v198 = vunpack.c.l.b16 %v190
    %v199 = vpack.c.b16 %v196, %v195
    %v200 = vpack.c.b16 %v198, %v197
    %203 = vst [vmem:[#allocation2 + $0x20] sm:$0xff] %v199
    %204 = vst [vmem:[#allocation2 + $0x28] sm:$0xff] %v200
    %205 = vrot.lane.b32.xlu0 %v120, 15
    %v206 = vpop.permute.xlu0 %205
    %207 = vrot.lane.b32.xlu0 %v121, 15
    %v208 = vpop.permute.xlu0 %207
    %209 = vrot.lane.b32.xlu0 %v122, 15
    %v210 = vpop.permute.xlu0 %209
    %211 = vrot.lane.b32.xlu0 %v123, 15
    %v212 = vpop.permute.xlu0 %211
    %vm213 = vcmp.lt.s32.totalorder %v133, 15
    %v214 = vsel %vm213, %v210, %v212
    %v215 = vsel %vm213, %v208, %v210
    %v216 = vsel %vm213, %v206, %v208
    %v217 = vsel %vm213, %v212, %v206
    %s218 = scalar_lea.vmem [#allocation6], 128
    %v219 = vld [vmem:[%s218] sm:$0xff]
    %v220 = vld [vmem:[%s218 + $0x8] sm:$0xff]
    %v221 = vld [vmem:[%s218 + $0x10] sm:$0xff]
    %v222 = vld [vmem:[%s218 + $0x18] sm:$0xff]
    %v223 = vmul.f32 %v217, %v219
    %v224 = vmul.f32 %v216, %v220
    %v225 = vmul.f32 %v215, %v221
    %v226 = vmul.f32 %v214, %v222
    %v227 = vpack.c.bf16 %v223, %v223
    %v228 = vpack.c.bf16 %v224, %v224
    %v229 = vpack.c.bf16 %v225, %v225
    %v230 = vpack.c.bf16 %v226, %v226
    %v235 = vunpack.c.l.b16 %v227
    %v236 = vunpack.c.l.b16 %v228
    %v237 = vunpack.c.l.b16 %v229
    %v238 = vunpack.c.l.b16 %v230
    %v239 = vpack.c.b16 %v236, %v235
    %v240 = vpack.c.b16 %v238, %v237
    %243 = vst [vmem:[#allocation2 + $0x30] sm:$0xff] %v239
    %244 = vst [vmem:[#allocation2 + $0x38] sm:$0xff] %v240
    %245 = vrot.lane.b32.xlu0 %v120, 1
    %v246 = vpop.permute.xlu0 %245
    %247 = vrot.lane.b32.xlu0 %v121, 1
    %v248 = vpop.permute.xlu0 %247
    %249 = vrot.lane.b32.xlu0 %v122, 1
    %v250 = vpop.permute.xlu0 %249
    %251 = vrot.lane.b32.xlu0 %v123, 1
    %v252 = vpop.permute.xlu0 %251
    %vm253 = vcmp.lt.s32.totalorder %v133, 1
    %v254 = vsel %vm253, %v250, %v252
    %v255 = vsel %vm253, %v248, %v250
    %v256 = vsel %vm253, %v246, %v248
    %v257 = vsel %vm253, %v252, %v246
    %s258 = scalar_lea.vmem [#allocation6], 192
    %v259 = vld [vmem:[%s258] sm:$0xff]
    %v260 = vld [vmem:[%s258 + $0x8] sm:$0xff]
    %v261 = vld [vmem:[%s258 + $0x10] sm:$0xff]
    %v262 = vld [vmem:[%s258 + $0x18] sm:$0xff]
    %v263 = vmul.f32 %v257, %v259
    %v264 = vmul.f32 %v256, %v260
    %v265 = vmul.f32 %v255, %v261
    %v266 = vmul.f32 %v254, %v262
    %v267 = vpack.c.bf16 %v263, %v263
    %v268 = vpack.c.bf16 %v264, %v264
    %v269 = vpack.c.bf16 %v265, %v265
    %v270 = vpack.c.bf16 %v266, %v266
    %v275 = vunpack.c.l.b16 %v267
    %v276 = vunpack.c.l.b16 %v268
    %v277 = vunpack.c.l.b16 %v269
    %v278 = vunpack.c.l.b16 %v270
    %v279 = vpack.c.b16 %v276, %v275
    %v280 = vpack.c.b16 %v278, %v277
    %283 = vst [vmem:[#allocation2 + $0x40] sm:$0xff] %v279
    %284 = vst [vmem:[#allocation2 + $0x48] sm:$0xff] %v280
    %v285 = vpack.c.bf16 %v120, %v120
    %v286 = vpack.c.bf16 %v121, %v121
    %v287 = vpack.c.bf16 %v122, %v122
    %v288 = vpack.c.bf16 %v123, %v123
    %v293 = vunpack.c.l.b16 %v285
    %v294 = vunpack.c.l.b16 %v286
    %v295 = vunpack.c.l.b16 %v287
    %v296 = vunpack.c.l.b16 %v288
    %v297 = vpack.c.b16 %v294, %v293
    %v298 = vpack.c.b16 %v296, %v295
    %301 = vst [vmem:[#allocation2 + $0x50] sm:$0xff] %v297
    %302 = vst [vmem:[#allocation2 + $0x58] sm:$0xff] %v298
    %303 = vrot.lane.b32.xlu0 %v120, 127
    %v304 = vpop.permute.xlu0 %303
    %305 = vrot.lane.b32.xlu0 %v121, 127
    %v306 = vpop.permute.xlu0 %305
    %307 = vrot.lane.b32.xlu0 %v122, 127
    %v308 = vpop.permute.xlu0 %307
    %309 = vrot.lane.b32.xlu0 %v123, 127
    %v310 = vpop.permute.xlu0 %309
    %vm311 = vcmp.lt.s32.totalorder %v133, 127
    %v312 = vsel %vm311, %v308, %v310
    %v313 = vsel %vm311, %v306, %v308
    %v314 = vsel %vm311, %v304, %v306
    %v315 = vsel %vm311, %v310, %v304
    %s316 = scalar_lea.vmem [#allocation6], 320
    %v317 = vld [vmem:[%s316] sm:$0xff]
    %v318 = vld [vmem:[%s316 + $0x8] sm:$0xff]
    %v319 = vld [vmem:[%s316 + $0x10] sm:$0xff]
    %v320 = vld [vmem:[%s316 + $0x18] sm:$0xff]
    %v321 = vmul.f32 %v314, %v317
    %v322 = vmul.f32 %v313, %v318
    %v323 = vmul.f32 %v312, %v319
    %v324 = vmul.f32 %v315, %v320
    %v325 = vpack.c.bf16 %v321, %v321
    %v326 = vpack.c.bf16 %v322, %v322
    %v327 = vpack.c.bf16 %v323, %v323
    %v328 = vpack.c.bf16 %v324, %v324
    %v333 = vunpack.c.l.b16 %v325
    %v334 = vunpack.c.l.b16 %v326
    %v335 = vunpack.c.l.b16 %v327
    %v336 = vunpack.c.l.b16 %v328
    %v337 = vpack.c.b16 %v334, %v333
    %v338 = vpack.c.b16 %v336, %v335
    %341 = vst [vmem:[#allocation2 + $0x60] sm:$0xff] %v337
    %342 = vst [vmem:[#allocation2 + $0x68] sm:$0xff] %v338
    %343 = vrot.lane.b32.xlu0 %v120, 113
    %v344 = vpop.permute.xlu0 %343
    %345 = vrot.lane.b32.xlu0 %v121, 113
    %v346 = vpop.permute.xlu0 %345
    %347 = vrot.lane.b32.xlu0 %v122, 113
    %v348 = vpop.permute.xlu0 %347
    %349 = vrot.lane.b32.xlu0 %v123, 113
    %v350 = vpop.permute.xlu0 %349
    %vm351 = vcmp.lt.s32.totalorder %v133, 113
    %v352 = vsel %vm351, %v348, %v350
    %v353 = vsel %vm351, %v346, %v348
    %v354 = vsel %vm351, %v344, %v346
    %v355 = vsel %vm351, %v350, %v344
    %s356 = scalar_lea.vmem [#allocation6], 384
    %v357 = vld [vmem:[%s356] sm:$0xff]
    %v358 = vld [vmem:[%s356 + $0x8] sm:$0xff]
    %v359 = vld [vmem:[%s356 + $0x10] sm:$0xff]
    %v360 = vld [vmem:[%s356 + $0x18] sm:$0xff]
    %v361 = vmul.f32 %v354, %v357
    %v362 = vmul.f32 %v353, %v358
    %v363 = vmul.f32 %v352, %v359
    %v364 = vmul.f32 %v355, %v360
    %v365 = vpack.c.bf16 %v361, %v361
    %v366 = vpack.c.bf16 %v362, %v362
    %v367 = vpack.c.bf16 %v363, %v363
    %v368 = vpack.c.bf16 %v364, %v364
    %v373 = vunpack.c.l.b16 %v365
    %v374 = vunpack.c.l.b16 %v366
    %v375 = vunpack.c.l.b16 %v367
    %v376 = vunpack.c.l.b16 %v368
    %v377 = vpack.c.b16 %v374, %v373
    %v378 = vpack.c.b16 %v376, %v375
    %381 = vst [vmem:[#allocation2 + $0x70] sm:$0xff] %v377
    %382 = vst [vmem:[#allocation2 + $0x78] sm:$0xff] %v378
    %383 = vrot.lane.b32.xlu0 %v120, 112
    %v384 = vpop.permute.xlu0 %383
    %385 = vrot.lane.b32.xlu0 %v121, 112
    %v386 = vpop.permute.xlu0 %385
    %387 = vrot.lane.b32.xlu0 %v122, 112
    %v388 = vpop.permute.xlu0 %387
    %389 = vrot.lane.b32.xlu0 %v123, 112
    %v390 = vpop.permute.xlu0 %389
    %vm391 = vcmp.lt.s32.totalorder %v133, 112
    %v392 = vsel %vm391, %v388, %v390
    %v393 = vsel %vm391, %v386, %v388
    %v394 = vsel %vm391, %v384, %v386
    %v395 = vsel %vm391, %v390, %v384
    %s396 = scalar_lea.vmem [#allocation6], 448
    %v397 = vld [vmem:[%s396] sm:$0xff]
    %v398 = vld [vmem:[%s396 + $0x8] sm:$0xff]
    %v399 = vld [vmem:[%s396 + $0x10] sm:$0xff]
    %v400 = vld [vmem:[%s396 + $0x18] sm:$0xff]
    %v401 = vmul.f32 %v394, %v397
    %v402 = vmul.f32 %v393, %v398
    %v403 = vmul.f32 %v392, %v399
    %v404 = vmul.f32 %v395, %v400
    %v405 = vpack.c.bf16 %v401, %v401
    %v406 = vpack.c.bf16 %v402, %v402
    %v407 = vpack.c.bf16 %v403, %v403
    %v408 = vpack.c.bf16 %v404, %v404
    %v413 = vunpack.c.l.b16 %v405
    %v414 = vunpack.c.l.b16 %v406
    %v415 = vunpack.c.l.b16 %v407
    %v416 = vunpack.c.l.b16 %v408
    %v417 = vpack.c.b16 %v414, %v413
    %v418 = vpack.c.b16 %v416, %v415
    %421 = vst [vmem:[#allocation2 + $0x80] sm:$0xff] %v417
    %422 = vst [vmem:[#allocation2 + $0x88] sm:$0xff] %v418
    %423 = vrot.lane.b32.xlu0 %v120, 111
    %v424 = vpop.permute.xlu0 %423
    %425 = vrot.lane.b32.xlu0 %v121, 111
    %v426 = vpop.permute.xlu0 %425
    %427 = vrot.lane.b32.xlu0 %v122, 111
    %v428 = vpop.permute.xlu0 %427
    %429 = vrot.lane.b32.xlu0 %v123, 111
    %v430 = vpop.permute.xlu0 %429
    %vm431 = vcmp.lt.s32.totalorder %v133, 111
    %v432 = vsel %vm431, %v428, %v430
    %v433 = vsel %vm431, %v426, %v428
    %v434 = vsel %vm431, %v424, %v426
    %v435 = vsel %vm431, %v430, %v424
    %s436 = scalar_lea.vmem [#allocation6], 512
    %v437 = vld [vmem:[%s436] sm:$0xff]
    %v438 = vld [vmem:[%s436 + $0x8] sm:$0xff]
    %v439 = vld [vmem:[%s436 + $0x10] sm:$0xff]
    %v440 = vld [vmem:[%s436 + $0x18] sm:$0xff]
    %v441 = vmul.f32 %v434, %v437
    %v442 = vmul.f32 %v433, %v438
    %v443 = vmul.f32 %v432, %v439
    %v444 = vmul.f32 %v435, %v440
    %v445 = vpack.c.bf16 %v441, %v441
    %v446 = vpack.c.bf16 %v442, %v442
    %v447 = vpack.c.bf16 %v443, %v443
    %v448 = vpack.c.bf16 %v444, %v444
    %v453 = vunpack.c.l.b16 %v445
    %v454 = vunpack.c.l.b16 %v446
    %v455 = vunpack.c.l.b16 %v447
    %v456 = vunpack.c.l.b16 %v448
    %v457 = vpack.c.b16 %v454, %v453
    %v458 = vpack.c.b16 %v456, %v455
    %461 = vst [vmem:[#allocation2 + $0x90] sm:$0xff] %v457
    %462 = vst [vmem:[#allocation2 + $0x98] sm:$0xff] %v458
    %v463 = vld [vmem:[#allocation8] sm:$0xf]
    %v464 = vld [vmem:[#allocation2] sm:$0xff]
    %v465 = vld [vmem:[#allocation2 + $0x8] sm:$0xff]
    %v466 = vld [vmem:[#allocation2 + $0x10] sm:$0xff]
    %v467 = vld [vmem:[#allocation2 + $0x18] sm:$0xff]
    %v468 = vld [vmem:[#allocation2 + $0x20] sm:$0xff]
    %v469 = vld [vmem:[#allocation2 + $0x28] sm:$0xff]
    %v470 = vld [vmem:[#allocation2 + $0x30] sm:$0xff]
    %v471 = vld [vmem:[#allocation2 + $0x38] sm:$0xff]
    %v472 = vld [vmem:[#allocation2 + $0x40] sm:$0xff]
    %v473 = vld [vmem:[#allocation2 + $0x48] sm:$0xff]
    %v474 = vld [vmem:[#allocation2 + $0x50] sm:$0xff]
    %v475 = vld [vmem:[#allocation2 + $0x58] sm:$0xff]
    %v476 = vld [vmem:[#allocation2 + $0x60] sm:$0xff]
    %v477 = vld [vmem:[#allocation2 + $0x68] sm:$0xff]
    %v478 = vld [vmem:[#allocation2 + $0x70] sm:$0xff]
    %v479 = vld [vmem:[#allocation2 + $0x78] sm:$0xff]
    %v480 = vld [vmem:[#allocation2 + $0x80] sm:$0xff]
    %v481 = vld [vmem:[#allocation2 + $0x88] sm:$0xff]
    %v482 = vld [vmem:[#allocation2 + $0x90] sm:$0xff]
    %v483 = vld [vmem:[#allocation2 + $0x98] sm:$0xff]
    %v504 = vunpack.c.l.b16 %v464
    %v505 = vunpack.c.h.b16 %v464
    %v506 = vunpack.c.l.b16 %v465
    %v507 = vunpack.c.h.b16 %v465
    %v508 = vunpack.c.l.b16 %v466
    %v509 = vunpack.c.h.b16 %v466
    %v510 = vunpack.c.l.b16 %v467
    %v511 = vunpack.c.h.b16 %v467
    %v512 = vunpack.c.l.b16 %v468
    %v513 = vunpack.c.h.b16 %v468
    %v514 = vunpack.c.l.b16 %v469
    %v515 = vunpack.c.h.b16 %v469
    %v516 = vunpack.c.l.b16 %v470
    %v517 = vunpack.c.h.b16 %v470
    %v518 = vunpack.c.l.b16 %v471
    %v519 = vunpack.c.h.b16 %v471
    %v520 = vunpack.c.l.b16 %v472
    %v521 = vunpack.c.h.b16 %v472
    %v522 = vunpack.c.l.b16 %v473
    %v523 = vunpack.c.h.b16 %v473
    %v524 = vunpack.c.l.b16 %v474
    %v525 = vunpack.c.h.b16 %v474
    %v526 = vunpack.c.l.b16 %v475
    %v527 = vunpack.c.h.b16 %v475
    %v528 = vunpack.c.l.b16 %v476
    %v529 = vunpack.c.h.b16 %v476
    %v530 = vunpack.c.l.b16 %v477
    %v531 = vunpack.c.h.b16 %v477
    %v532 = vunpack.c.l.b16 %v478
    %v533 = vunpack.c.h.b16 %v478
    %v534 = vunpack.c.l.b16 %v479
    %v535 = vunpack.c.h.b16 %v479
    %v536 = vunpack.c.l.b16 %v480
    %v537 = vunpack.c.h.b16 %v480
    %v538 = vunpack.c.l.b16 %v481
    %v539 = vunpack.c.h.b16 %v481
    %v540 = vunpack.c.l.b16 %v482
    %v541 = vunpack.c.h.b16 %v482
    %v542 = vunpack.c.l.b16 %v483
    %v543 = vunpack.c.h.b16 %v483
    %v544 = vpack.c.b16 %v508, %v504
    %v545 = vpack.c.b16 %v509, %v505
    %v546 = vpack.c.b16 %v510, %v506
    %v547 = vpack.c.b16 %v511, %v507
    %v548 = vpack.c.b16 %v516, %v512
    %v549 = vpack.c.b16 %v517, %v513
    %v550 = vpack.c.b16 %v518, %v514
    %v551 = vpack.c.b16 %v519, %v515
    %v552 = vpack.c.b16 %v524, %v520
    %v553 = vpack.c.b16 %v525, %v521
    %v554 = vpack.c.b16 %v526, %v522
    %v555 = vpack.c.b16 %v527, %v523
    %v556 = vpack.c.b16 %v532, %v528
    %v557 = vpack.c.b16 %v533, %v529
    %v558 = vpack.c.b16 %v534, %v530
    %v559 = vpack.c.b16 %v535, %v531
    %v560 = vpack.c.b16 %v540, %v536
    %v561 = vpack.c.b16 %v541, %v537
    %v562 = vpack.c.b16 %v542, %v538
    %v563 = vpack.c.b16 %v543, %v539
    %vm584 = vcmask 654336
    %v586 = vsel %vm584, %v463, 0
    %588 = vmatprep.subr.bf16.mxu0 0
    %589 = vmatpush1.bf16.msra.mxu0 0
    %590 = vmatprep.subr.bf16.mxu0 0
    %591 = vmatpush1.bf16.msra.mxu0 0
    %592 = vmatprep.subr.bf16.mxu0 0
    %593 = vmatpush1.bf16.msra.mxu0 0
    %594 = vmatprep.subr.bf16.mxu0 %v561
    %595 = vmatpush1.bf16.msra.mxu0 %v560
    %596 = vmatprep.subr.bf16.mxu0 %v557
    %597 = vmatpush1.bf16.msra.mxu0 %v556
    %598 = vmatprep.subr.bf16.mxu0 %v553
    %599 = vmatpush1.bf16.msra.mxu0 %v552
    %600 = vmatprep.subr.bf16.mxu0 %v549
    %601 = vmatpush1.bf16.msra.mxu0 %v548
    %602 = vmatprep.subr.bf16.mxu0 %v545
    %603 = vmatpush1.bf16.msra.mxu0 %v544
    %604 = vmatprep.subr.bf16.mxu0 0
    %605 = vmatpush2.bf16.msra.mxu0 0
    %606 = vmatprep.subr.bf16.mxu0 0
    %607 = vmatpush2.bf16.msra.mxu0 0
    %608 = vmatprep.subr.bf16.mxu0 0
    %609 = vmatpush2.bf16.msra.mxu0 0
    %610 = vmatprep.subr.bf16.mxu0 0
    %611 = vmatpush2.bf16.msra.mxu0 0
    %612 = vmatprep.subr.bf16.mxu0 0
    %613 = vmatpush2.bf16.msra.mxu0 0
    %614 = vmatprep.subr.bf16.mxu0 0
    %615 = vmatpush2.bf16.msra.mxu0 0
    %616 = vmatprep.subr.bf16.mxu0 0
    %617 = vmatpush2.bf16.msra.mxu0 0
    %618 = vmatprep.subr.bf16.mxu0 0
    %619 = vmatpush2.bf16.msra.mxu0 0
    %620 = vmatprep.mubr.bf16.mxu0 0
    %621 = vmatmul.mubr.bf16.gmra.mxu0 %v586
    %v622 = vpop.f32.mrf.mxu0
    %v623 = vadd.f32 0.0, %v622
    %v624 = vpop.f32.mrf.mxu0
    %v625 = vadd.f32 0.0, %v624
    %v626 = vpop.f32.mrf.mxu0
    %v627 = vpop.f32.mrf.mxu0
    %628 = vdwg.mxu0
    %629 = vmatprep.subr.bf16.mxu0 0
    %630 = vmatpush1.bf16.msra.mxu0 0
    %631 = vmatprep.subr.bf16.mxu0 0
    %632 = vmatpush1.bf16.msra.mxu0 0
    %633 = vmatprep.subr.bf16.mxu0 0
    %634 = vmatpush1.bf16.msra.mxu0 0
    %635 = vmatprep.subr.bf16.mxu0 %v563
    %636 = vmatpush1.bf16.msra.mxu0 %v562
    %637 = vmatprep.subr.bf16.mxu0 %v559
    %638 = vmatpush1.bf16.msra.mxu0 %v558
    %639 = vmatprep.subr.bf16.mxu0 %v555
    %640 = vmatpush1.bf16.msra.mxu0 %v554
    %641 = vmatprep.subr.bf16.mxu0 %v551
    %642 = vmatpush1.bf16.msra.mxu0 %v550
    %643 = vmatprep.subr.bf16.mxu0 %v547
    %644 = vmatpush1.bf16.msra.mxu0 %v546
    %645 = vmatprep.subr.bf16.mxu0 0
    %646 = vmatpush2.bf16.msra.mxu0 0
    %647 = vmatprep.subr.bf16.mxu0 0
    %648 = vmatpush2.bf16.msra.mxu0 0
    %649 = vmatprep.subr.bf16.mxu0 0
    %650 = vmatpush2.bf16.msra.mxu0 0
    %651 = vmatprep.subr.bf16.mxu0 0
    %652 = vmatpush2.bf16.msra.mxu0 0
    %653 = vmatprep.subr.bf16.mxu0 0
    %654 = vmatpush2.bf16.msra.mxu0 0
    %655 = vmatprep.subr.bf16.mxu0 0
    %656 = vmatpush2.bf16.msra.mxu0 0
    %657 = vmatprep.subr.bf16.mxu0 0
    %658 = vmatpush2.bf16.msra.mxu0 0
    %659 = vmatprep.subr.bf16.mxu0 0
    %660 = vmatpush2.bf16.msra.mxu0 0
    %661 = vmatprep.mubr.bf16.mxu0 0
    %662 = vmatmul.mubr.bf16.gmra.mxu0 %v586
    %v663 = vpop.f32.mrf.mxu0
    %v664 = vadd.f32 0.0, %v663
    %v665 = vpop.f32.mrf.mxu0
    %v666 = vadd.f32 0.0, %v665
    %v667 = vpop.f32.mrf.mxu0
    %v668 = vpop.f32.mrf.mxu0
    %669 = vdwg.mxu0
    %v670 = vmax.f32 %v623, 0.0
    %v671 = vmax.f32 %v625, 0.0
    %v672 = vmax.f32 %v664, 0.0
    %v673 = vmax.f32 %v666, 0.0
    %674 = vrot.lane.b32.xlu0 %v670, 17
    %v675 = vpop.permute.xlu0 %674
    %676 = vrot.lane.b32.xlu0 %v671, 17
    %v677 = vpop.permute.xlu0 %676
    %678 = vrot.lane.b32.xlu0 %v672, 17
    %v679 = vpop.permute.xlu0 %678
    %680 = vrot.lane.b32.xlu0 %v673, 17
    %v681 = vpop.permute.xlu0 %680
    %v682 = vsel %vm134, %v679, %v681
    %v683 = vsel %vm134, %v677, %v679
    %v684 = vsel %vm134, %v675, %v677
    %v685 = vsel %vm134, %v681, %v675
    %v686 = vld [vmem:[#allocation6] sm:$0xff]
    %v687 = vld [vmem:[#allocation6 + $0x8] sm:$0xff]
    %v688 = vld [vmem:[#allocation6 + $0x10] sm:$0xff]
    %v689 = vld [vmem:[#allocation6 + $0x18] sm:$0xff]
    %v690 = vmul.f32 %v685, %v686
    %v691 = vmul.f32 %v684, %v687
    %v692 = vmul.f32 %v683, %v688
    %v693 = vmul.f32 %v682, %v689
    %v694 = vpack.c.bf16 %v690, %v690
    %v695 = vpack.c.bf16 %v691, %v691
    %v696 = vpack.c.bf16 %v692, %v692
    %v697 = vpack.c.bf16 %v693, %v693
    %v702 = vunpack.c.l.b16 %v694
    %v703 = vunpack.c.l.b16 %v695
    %v704 = vunpack.c.l.b16 %v696
    %v705 = vunpack.c.l.b16 %v697
    %v706 = vpack.c.b16 %v703, %v702
    %v707 = vpack.c.b16 %v705, %v704
    %710 = vst [vmem:[#allocation2 + $0x10] sm:$0xff] %v706
    %711 = vst [vmem:[#allocation2 + $0x18] sm:$0xff] %v707
    %712 = vrot.lane.b32.xlu0 %v670, 16
    %v713 = vpop.permute.xlu0 %712
    %714 = vrot.lane.b32.xlu0 %v671, 16
    %v715 = vpop.permute.xlu0 %714
    %716 = vrot.lane.b32.xlu0 %v672, 16
    %v717 = vpop.permute.xlu0 %716
    %718 = vrot.lane.b32.xlu0 %v673, 16
    %v719 = vpop.permute.xlu0 %718
    %v720 = vsel %vm173, %v717, %v719
    %v721 = vsel %vm173, %v715, %v717
    %v722 = vsel %vm173, %v713, %v715
    %v723 = vsel %vm173, %v719, %v713
    %v724 = vld [vmem:[%s178] sm:$0xff]
    %v725 = vld [vmem:[%s178 + $0x8] sm:$0xff]
    %v726 = vld [vmem:[%s178 + $0x10] sm:$0xff]
    %v727 = vld [vmem:[%s178 + $0x18] sm:$0xff]
    %v728 = vmul.f32 %v723, %v724
    %v729 = vmul.f32 %v722, %v725
    %v730 = vmul.f32 %v721, %v726
    %v731 = vmul.f32 %v720, %v727
    %v732 = vpack.c.bf16 %v728, %v728
    %v733 = vpack.c.bf16 %v729, %v729
    %v734 = vpack.c.bf16 %v730, %v730
    %v735 = vpack.c.bf16 %v731, %v731
    %v740 = vunpack.c.l.b16 %v732
    %v741 = vunpack.c.l.b16 %v733
    %v742 = vunpack.c.l.b16 %v734
    %v743 = vunpack.c.l.b16 %v735
    %v744 = vpack.c.b16 %v741, %v740
    %v745 = vpack.c.b16 %v743, %v742
    %748 = vst [vmem:[#allocation2 + $0x20] sm:$0xff] %v744
    %749 = vst [vmem:[#allocation2 + $0x28] sm:$0xff] %v745
    %750 = vrot.lane.b32.xlu0 %v670, 15
    %v751 = vpop.permute.xlu0 %750
    %752 = vrot.lane.b32.xlu0 %v671, 15
    %v753 = vpop.permute.xlu0 %752
    %754 = vrot.lane.b32.xlu0 %v672, 15
    %v755 = vpop.permute.xlu0 %754
    %756 = vrot.lane.b32.xlu0 %v673, 15
    %v757 = vpop.permute.xlu0 %756
    %v758 = vsel %vm213, %v755, %v757
    %v759 = vsel %vm213, %v753, %v755
    %v760 = vsel %vm213, %v751, %v753
    %v761 = vsel %vm213, %v757, %v751
    %v762 = vld [vmem:[%s218] sm:$0xff]
    %v763 = vld [vmem:[%s218 + $0x8] sm:$0xff]
    %v764 = vld [vmem:[%s218 + $0x10] sm:$0xff]
    %v765 = vld [vmem:[%s218 + $0x18] sm:$0xff]
    %v766 = vmul.f32 %v761, %v762
    %v767 = vmul.f32 %v760, %v763
    %v768 = vmul.f32 %v759, %v764
    %v769 = vmul.f32 %v758, %v765
    %v770 = vpack.c.bf16 %v766, %v766
    %v771 = vpack.c.bf16 %v767, %v767
    %v772 = vpack.c.bf16 %v768, %v768
    %v773 = vpack.c.bf16 %v769, %v769
    %v778 = vunpack.c.l.b16 %v770
    %v779 = vunpack.c.l.b16 %v771
    %v780 = vunpack.c.l.b16 %v772
    %v781 = vunpack.c.l.b16 %v773
    %v782 = vpack.c.b16 %v779, %v778
    %v783 = vpack.c.b16 %v781, %v780
    %786 = vst [vmem:[#allocation2 + $0x30] sm:$0xff] %v782
    %787 = vst [vmem:[#allocation2 + $0x38] sm:$0xff] %v783
    %788 = vrot.lane.b32.xlu0 %v670, 1
    %v789 = vpop.permute.xlu0 %788
    %790 = vrot.lane.b32.xlu0 %v671, 1
    %v791 = vpop.permute.xlu0 %790
    %792 = vrot.lane.b32.xlu0 %v672, 1
    %v793 = vpop.permute.xlu0 %792
    %794 = vrot.lane.b32.xlu0 %v673, 1
    %v795 = vpop.permute.xlu0 %794
    %v796 = vsel %vm253, %v793, %v795
    %v797 = vsel %vm253, %v791, %v793
    %v798 = vsel %vm253, %v789, %v791
    %v799 = vsel %vm253, %v795, %v789
    %v800 = vld [vmem:[%s258] sm:$0xff]
    %v801 = vld [vmem:[%s258 + $0x8] sm:$0xff]
    %v802 = vld [vmem:[%s258 + $0x10] sm:$0xff]
    %v803 = vld [vmem:[%s258 + $0x18] sm:$0xff]
    %v804 = vmul.f32 %v799, %v800
    %v805 = vmul.f32 %v798, %v801
    %v806 = vmul.f32 %v797, %v802
    %v807 = vmul.f32 %v796, %v803
    %v808 = vpack.c.bf16 %v804, %v804
    %v809 = vpack.c.bf16 %v805, %v805
    %v810 = vpack.c.bf16 %v806, %v806
    %v811 = vpack.c.bf16 %v807, %v807
    %v816 = vunpack.c.l.b16 %v808
    %v817 = vunpack.c.l.b16 %v809
    %v818 = vunpack.c.l.b16 %v810
    %v819 = vunpack.c.l.b16 %v811
    %v820 = vpack.c.b16 %v817, %v816
    %v821 = vpack.c.b16 %v819, %v818
    %824 = vst [vmem:[#allocation2 + $0x40] sm:$0xff] %v820
    %825 = vst [vmem:[#allocation2 + $0x48] sm:$0xff] %v821
    %v826 = vpack.c.bf16 %v670, %v670
    %v827 = vpack.c.bf16 %v671, %v671
    %v828 = vpack.c.bf16 %v672, %v672
    %v829 = vpack.c.bf16 %v673, %v673
    %v834 = vunpack.c.l.b16 %v826
    %v835 = vunpack.c.l.b16 %v827
    %v836 = vunpack.c.l.b16 %v828
    %v837 = vunpack.c.l.b16 %v829
    %v838 = vpack.c.b16 %v835, %v834
    %v839 = vpack.c.b16 %v837, %v836
    %842 = vst [vmem:[#allocation2 + $0x50] sm:$0xff] %v838
    %843 = vst [vmem:[#allocation2 + $0x58] sm:$0xff] %v839
    %844 = vrot.lane.b32.xlu0 %v670, 127
    %v845 = vpop.permute.xlu0 %844
    %846 = vrot.lane.b32.xlu0 %v671, 127
    %v847 = vpop.permute.xlu0 %846
    %848 = vrot.lane.b32.xlu0 %v672, 127
    %v849 = vpop.permute.xlu0 %848
    %850 = vrot.lane.b32.xlu0 %v673, 127
    %v851 = vpop.permute.xlu0 %850
    %v852 = vsel %vm311, %v849, %v851
    %v853 = vsel %vm311, %v847, %v849
    %v854 = vsel %vm311, %v845, %v847
    %v855 = vsel %vm311, %v851, %v845
    %v856 = vld [vmem:[%s316] sm:$0xff]
    %v857 = vld [vmem:[%s316 + $0x8] sm:$0xff]
    %v858 = vld [vmem:[%s316 + $0x10] sm:$0xff]
    %v859 = vld [vmem:[%s316 + $0x18] sm:$0xff]
    %v860 = vmul.f32 %v854, %v856
    %v861 = vmul.f32 %v853, %v857
    %v862 = vmul.f32 %v852, %v858
    %v863 = vmul.f32 %v855, %v859
    %v864 = vpack.c.bf16 %v860, %v860
    %v865 = vpack.c.bf16 %v861, %v861
    %v866 = vpack.c.bf16 %v862, %v862
    %v867 = vpack.c.bf16 %v863, %v863
    %v872 = vunpack.c.l.b16 %v864
    %v873 = vunpack.c.l.b16 %v865
    %v874 = vunpack.c.l.b16 %v866
    %v875 = vunpack.c.l.b16 %v867
    %v876 = vpack.c.b16 %v873, %v872
    %v877 = vpack.c.b16 %v875, %v874
    %880 = vst [vmem:[#allocation2 + $0x60] sm:$0xff] %v876
    %881 = vst [vmem:[#allocation2 + $0x68] sm:$0xff] %v877
    %882 = vrot.lane.b32.xlu0 %v670, 113
    %v883 = vpop.permute.xlu0 %882
    %884 = vrot.lane.b32.xlu0 %v671, 113
    %v885 = vpop.permute.xlu0 %884
    %886 = vrot.lane.b32.xlu0 %v672, 113
    %v887 = vpop.permute.xlu0 %886
    %888 = vrot.lane.b32.xlu0 %v673, 113
    %v889 = vpop.permute.xlu0 %888
    %v890 = vsel %vm351, %v887, %v889
    %v891 = vsel %vm351, %v885, %v887
    %v892 = vsel %vm351, %v883, %v885
    %v893 = vsel %vm351, %v889, %v883
    %v894 = vld [vmem:[%s356] sm:$0xff]
    %v895 = vld [vmem:[%s356 + $0x8] sm:$0xff]
    %v896 = vld [vmem:[%s356 + $0x10] sm:$0xff]
    %v897 = vld [vmem:[%s356 + $0x18] sm:$0xff]
    %v898 = vmul.f32 %v892, %v894
    %v899 = vmul.f32 %v891, %v895
    %v900 = vmul.f32 %v890, %v896
    %v901 = vmul.f32 %v893, %v897
    %v902 = vpack.c.bf16 %v898, %v898
    %v903 = vpack.c.bf16 %v899, %v899
    %v904 = vpack.c.bf16 %v900, %v900
    %v905 = vpack.c.bf16 %v901, %v901
    %v910 = vunpack.c.l.b16 %v902
    %v911 = vunpack.c.l.b16 %v903
    %v912 = vunpack.c.l.b16 %v904
    %v913 = vunpack.c.l.b16 %v905
    %v914 = vpack.c.b16 %v911, %v910
    %v915 = vpack.c.b16 %v913, %v912
    %918 = vst [vmem:[#allocation2 + $0x70] sm:$0xff] %v914
    %919 = vst [vmem:[#allocation2 + $0x78] sm:$0xff] %v915
    %920 = vrot.lane.b32.xlu0 %v670, 112
    %v921 = vpop.permute.xlu0 %920
    %922 = vrot.lane.b32.xlu0 %v671, 112
    %v923 = vpop.permute.xlu0 %922
    %924 = vrot.lane.b32.xlu0 %v672, 112
    %v925 = vpop.permute.xlu0 %924
    %926 = vrot.lane.b32.xlu0 %v673, 112
    %v927 = vpop.permute.xlu0 %926
    %v928 = vsel %vm391, %v925, %v927
    %v929 = vsel %vm391, %v923, %v925
    %v930 = vsel %vm391, %v921, %v923
    %v931 = vsel %vm391, %v927, %v921
    %v932 = vld [vmem:[%s396] sm:$0xff]
    %v933 = vld [vmem:[%s396 + $0x8] sm:$0xff]
    %v934 = vld [vmem:[%s396 + $0x10] sm:$0xff]
    %v935 = vld [vmem:[%s396 + $0x18] sm:$0xff]
    %v936 = vmul.f32 %v930, %v932
    %v937 = vmul.f32 %v929, %v933
    %v938 = vmul.f32 %v928, %v934
    %v939 = vmul.f32 %v931, %v935
    %v940 = vpack.c.bf16 %v936, %v936
    %v941 = vpack.c.bf16 %v937, %v937
    %v942 = vpack.c.bf16 %v938, %v938
    %v943 = vpack.c.bf16 %v939, %v939
    %v948 = vunpack.c.l.b16 %v940
    %v949 = vunpack.c.l.b16 %v941
    %v950 = vunpack.c.l.b16 %v942
    %v951 = vunpack.c.l.b16 %v943
    %v952 = vpack.c.b16 %v949, %v948
    %v953 = vpack.c.b16 %v951, %v950
    %956 = vst [vmem:[#allocation2 + $0x80] sm:$0xff] %v952
    %957 = vst [vmem:[#allocation2 + $0x88] sm:$0xff] %v953
    %958 = vrot.lane.b32.xlu0 %v670, 111
    %v959 = vpop.permute.xlu0 %958
    %960 = vrot.lane.b32.xlu0 %v671, 111
    %v961 = vpop.permute.xlu0 %960
    %962 = vrot.lane.b32.xlu0 %v672, 111
    %v963 = vpop.permute.xlu0 %962
    %964 = vrot.lane.b32.xlu0 %v673, 111
    %v965 = vpop.permute.xlu0 %964
    %v966 = vsel %vm431, %v963, %v965
    %v967 = vsel %vm431, %v961, %v963
    %v968 = vsel %vm431, %v959, %v961
    %v969 = vsel %vm431, %v965, %v959
    %v970 = vld [vmem:[%s436] sm:$0xff]
    %v971 = vld [vmem:[%s436 + $0x8] sm:$0xff]
    %v972 = vld [vmem:[%s436 + $0x10] sm:$0xff]
    %v973 = vld [vmem:[%s436 + $0x18] sm:$0xff]
    %v974 = vmul.f32 %v968, %v970
    %v975 = vmul.f32 %v967, %v971
    %v976 = vmul.f32 %v966, %v972
    %v977 = vmul.f32 %v969, %v973
    %v978 = vpack.c.bf16 %v974, %v974
    %v979 = vpack.c.bf16 %v975, %v975
    %v980 = vpack.c.bf16 %v976, %v976
    %v981 = vpack.c.bf16 %v977, %v977
    %v986 = vunpack.c.l.b16 %v978
    %v987 = vunpack.c.l.b16 %v979
    %v988 = vunpack.c.l.b16 %v980
    %v989 = vunpack.c.l.b16 %v981
    %v990 = vpack.c.b16 %v987, %v986
    %v991 = vpack.c.b16 %v989, %v988
    %994 = vst [vmem:[#allocation2 + $0x90] sm:$0xff] %v990
    %995 = vst [vmem:[#allocation2 + $0x98] sm:$0xff] %v991
    %v996 = vld [vmem:[#allocation9] sm:$0xf]
    %v997 = vld [vmem:[#allocation9 + $0x4] sm:$0xf]
    %v998 = vld [vmem:[#allocation2] sm:$0xff]
    %v999 = vld [vmem:[#allocation2 + $0x8] sm:$0xff]
    %v1000 = vld [vmem:[#allocation2 + $0x10] sm:$0xff]
    %v1001 = vld [vmem:[#allocation2 + $0x18] sm:$0xff]
    %v1002 = vld [vmem:[#allocation2 + $0x20] sm:$0xff]
    %v1003 = vld [vmem:[#allocation2 + $0x28] sm:$0xff]
    %v1004 = vld [vmem:[#allocation2 + $0x30] sm:$0xff]
    %v1005 = vld [vmem:[#allocation2 + $0x38] sm:$0xff]
    %v1006 = vld [vmem:[#allocation2 + $0x40] sm:$0xff]
    %v1007 = vld [vmem:[#allocation2 + $0x48] sm:$0xff]
    %v1008 = vld [vmem:[#allocation2 + $0x50] sm:$0xff]
    %v1009 = vld [vmem:[#allocation2 + $0x58] sm:$0xff]
    %v1010 = vld [vmem:[#allocation2 + $0x60] sm:$0xff]
    %v1011 = vld [vmem:[#allocation2 + $0x68] sm:$0xff]
    %v1012 = vld [vmem:[#allocation2 + $0x70] sm:$0xff]
    %v1013 = vld [vmem:[#allocation2 + $0x78] sm:$0xff]
    %v1014 = vld [vmem:[#allocation2 + $0x80] sm:$0xff]
    %v1015 = vld [vmem:[#allocation2 + $0x88] sm:$0xff]
    %v1016 = vld [vmem:[#allocation2 + $0x90] sm:$0xff]
    %v1017 = vld [vmem:[#allocation2 + $0x98] sm:$0xff]
    %v1020 = vunpack.c.l.b16 %v996
    %v1021 = vunpack.c.l.b16 %v997
    %v1022 = vpack.c.b16 %v1021, %v1020
    %v1043 = vunpack.c.l.b16 %v998
    %v1044 = vunpack.c.h.b16 %v998
    %v1045 = vunpack.c.l.b16 %v999
    %v1046 = vunpack.c.h.b16 %v999
    %v1047 = vunpack.c.l.b16 %v1000
    %v1048 = vunpack.c.h.b16 %v1000
    %v1049 = vunpack.c.l.b16 %v1001
    %v1050 = vunpack.c.h.b16 %v1001
    %v1051 = vunpack.c.l.b16 %v1002
    %v1052 = vunpack.c.h.b16 %v1002
    %v1053 = vunpack.c.l.b16 %v1003
    %v1054 = vunpack.c.h.b16 %v1003
    %v1055 = vunpack.c.l.b16 %v1004
    %v1056 = vunpack.c.h.b16 %v1004
    %v1057 = vunpack.c.l.b16 %v1005
    %v1058 = vunpack.c.h.b16 %v1005
    %v1059 = vunpack.c.l.b16 %v1006
    %v1060 = vunpack.c.h.b16 %v1006
    %v1061 = vunpack.c.l.b16 %v1007
    %v1062 = vunpack.c.h.b16 %v1007
    %v1063 = vunpack.c.l.b16 %v1008
    %v1064 = vunpack.c.h.b16 %v1008
    %v1065 = vunpack.c.l.b16 %v1009
    %v1066 = vunpack.c.h.b16 %v1009
    %v1067 = vunpack.c.l.b16 %v1010
    %v1068 = vunpack.c.h.b16 %v1010
    %v1069 = vunpack.c.l.b16 %v1011
    %v1070 = vunpack.c.h.b16 %v1011
    %v1071 = vunpack.c.l.b16 %v1012
    %v1072 = vunpack.c.h.b16 %v1012
    %v1073 = vunpack.c.l.b16 %v1013
    %v1074 = vunpack.c.h.b16 %v1013
    %v1075 = vunpack.c.l.b16 %v1014
    %v1076 = vunpack.c.h.b16 %v1014
    %v1077 = vunpack.c.l.b16 %v1015
    %v1078 = vunpack.c.h.b16 %v1015
    %v1079 = vunpack.c.l.b16 %v1016
    %v1080 = vunpack.c.h.b16 %v1016
    %v1081 = vunpack.c.l.b16 %v1017
    %v1082 = vunpack.c.h.b16 %v1017
    %v1083 = vpack.c.b16 %v1047, %v1043
    %v1084 = vpack.c.b16 %v1048, %v1044
    %v1085 = vpack.c.b16 %v1049, %v1045
    %v1086 = vpack.c.b16 %v1050, %v1046
    %v1087 = vpack.c.b16 %v1055, %v1051
    %v1088 = vpack.c.b16 %v1056, %v1052
    %v1089 = vpack.c.b16 %v1057, %v1053
    %v1090 = vpack.c.b16 %v1058, %v1054
    %v1091 = vpack.c.b16 %v1063, %v1059
    %v1092 = vpack.c.b16 %v1064, %v1060
    %v1093 = vpack.c.b16 %v1065, %v1061
    %v1094 = vpack.c.b16 %v1066, %v1062
    %v1095 = vpack.c.b16 %v1071, %v1067
    %v1096 = vpack.c.b16 %v1072, %v1068
    %v1097 = vpack.c.b16 %v1073, %v1069
    %v1098 = vpack.c.b16 %v1074, %v1070
    %v1099 = vpack.c.b16 %v1079, %v1075
    %v1100 = vpack.c.b16 %v1080, %v1076
    %v1101 = vpack.c.b16 %v1081, %v1077
    %v1102 = vpack.c.b16 %v1082, %v1078
    %v1124 = vsel %vm584, %v1022, 0
    %1126 = vmatprep.subr.bf16.mxu0 0
    %1127 = vmatpush1.bf16.msra.mxu0 0
    %1128 = vmatprep.subr.bf16.mxu0 0
    %1129 = vmatpush1.bf16.msra.mxu0 0
    %1130 = vmatprep.subr.bf16.mxu0 0
    %1131 = vmatpush1.bf16.msra.mxu0 0
    %1132 = vmatprep.subr.bf16.mxu0 %v1100
    %1133 = vmatpush1.bf16.msra.mxu0 %v1099
    %1134 = vmatprep.subr.bf16.mxu0 %v1096
    %1135 = vmatpush1.bf16.msra.mxu0 %v1095
    %1136 = vmatprep.subr.bf16.mxu0 %v1092
    %1137 = vmatpush1.bf16.msra.mxu0 %v1091
    %1138 = vmatprep.subr.bf16.mxu0 %v1088
    %1139 = vmatpush1.bf16.msra.mxu0 %v1087
    %1140 = vmatprep.subr.bf16.mxu0 %v1084
    %1141 = vmatpush1.bf16.msra.mxu0 %v1083
    %1142 = vmatprep.subr.bf16.mxu0 0
    %1143 = vmatpush2.bf16.msra.mxu0 0
    %1144 = vmatprep.subr.bf16.mxu0 0
    %1145 = vmatpush2.bf16.msra.mxu0 0
    %1146 = vmatprep.subr.bf16.mxu0 0
    %1147 = vmatpush2.bf16.msra.mxu0 0
    %1148 = vmatprep.subr.bf16.mxu0 0
    %1149 = vmatpush2.bf16.msra.mxu0 0
    %1150 = vmatprep.subr.bf16.mxu0 0
    %1151 = vmatpush2.bf16.msra.mxu0 0
    %1152 = vmatprep.subr.bf16.mxu0 0
    %1153 = vmatpush2.bf16.msra.mxu0 0
    %1154 = vmatprep.subr.bf16.mxu0 0
    %1155 = vmatpush2.bf16.msra.mxu0 0
    %1156 = vmatprep.subr.bf16.mxu0 0
    %1157 = vmatpush2.bf16.msra.mxu0 0
    %1158 = vmatprep.mubr.bf16.mxu0 0
    %1159 = vmatmul.mubr.bf16.gmra.mxu0 %v1124
    %v1160 = vpop.f32.mrf.mxu0
    %v1161 = vadd.f32 0.0, %v1160
    %v1162 = vpop.f32.mrf.mxu0
    %v1163 = vadd.f32 0.0, %v1162
    %v1164 = vpop.f32.mrf.mxu0
    %v1165 = vadd.f32 0.0, %v1164
    %v1166 = vpop.f32.mrf.mxu0
    %v1167 = vadd.f32 0.0, %v1166
    %1168 = vdwg.mxu0
    %1169 = vmatprep.subr.bf16.mxu0 0
    %1170 = vmatpush1.bf16.msra.mxu0 0
    %1171 = vmatprep.subr.bf16.mxu0 0
    %1172 = vmatpush1.bf16.msra.mxu0 0
    %1173 = vmatprep.subr.bf16.mxu0 0
    %1174 = vmatpush1.bf16.msra.mxu0 0
    %1175 = vmatprep.subr.bf16.mxu0 %v1102
    %1176 = vmatpush1.bf16.msra.mxu0 %v1101
    %1177 = vmatprep.subr.bf16.mxu0 %v1098
    %1178 = vmatpush1.bf16.msra.mxu0 %v1097
    %1179 = vmatprep.subr.bf16.mxu0 %v1094
    %1180 = vmatpush1.bf16.msra.mxu0 %v1093
    %1181 = vmatprep.subr.bf16.mxu0 %v1090
    %1182 = vmatpush1.bf16.msra.mxu0 %v1089
    %1183 = vmatprep.subr.bf16.mxu0 %v1086
    %1184 = vmatpush1.bf16.msra.mxu0 %v1085
    %1185 = vmatprep.subr.bf16.mxu0 0
    %1186 = vmatpush2.bf16.msra.mxu0 0
    %1187 = vmatprep.subr.bf16.mxu0 0
    %1188 = vmatpush2.bf16.msra.mxu0 0
    %1189 = vmatprep.subr.bf16.mxu0 0
    %1190 = vmatpush2.bf16.msra.mxu0 0
    %1191 = vmatprep.subr.bf16.mxu0 0
    %1192 = vmatpush2.bf16.msra.mxu0 0
    %1193 = vmatprep.subr.bf16.mxu0 0
    %1194 = vmatpush2.bf16.msra.mxu0 0
    %1195 = vmatprep.subr.bf16.mxu0 0
    %1196 = vmatpush2.bf16.msra.mxu0 0
    %1197 = vmatprep.subr.bf16.mxu0 0
    %1198 = vmatpush2.bf16.msra.mxu0 0
    %1199 = vmatprep.subr.bf16.mxu0 0
    %1200 = vmatpush2.bf16.msra.mxu0 0
    %1201 = vmatprep.mubr.bf16.mxu0 0
    %1202 = vmatmul.mubr.bf16.gmra.mxu0 %v1124
    %v1203 = vpop.f32.mrf.mxu0
    %v1204 = vadd.f32 0.0, %v1203
    %v1205 = vpop.f32.mrf.mxu0
    %v1206 = vadd.f32 0.0, %v1205
    %v1207 = vpop.f32.mrf.mxu0
    %v1208 = vadd.f32 0.0, %v1207
    %v1209 = vpop.f32.mrf.mxu0
    %v1210 = vadd.f32 0.0, %v1209
    %1211 = vdwg.mxu0
    %v1212 = vmax.f32 %v1161, 0.0
    %v1213 = vmax.f32 %v1163, 0.0
    %v1214 = vmax.f32 %v1204, 0.0
    %v1215 = vmax.f32 %v1206, 0.0
    %v1216 = vmax.f32 %v1165, 0.0
    %v1217 = vmax.f32 %v1167, 0.0
    %v1218 = vmax.f32 %v1208, 0.0
    %v1219 = vmax.f32 %v1210, 0.0
    %1220 = vrot.lane.b32.xlu0 %v1212, 17
    %v1221 = vpop.permute.xlu0 %1220
    %1222 = vrot.lane.b32.xlu0 %v1216, 17
    %v1223 = vpop.permute.xlu0 %1222
    %1224 = vrot.lane.b32.xlu0 %v1213, 17
    %v1225 = vpop.permute.xlu0 %1224
    %1226 = vrot.lane.b32.xlu0 %v1217, 17
    %v1227 = vpop.permute.xlu0 %1226
    %1228 = vrot.lane.b32.xlu0 %v1214, 17
    %v1229 = vpop.permute.xlu0 %1228
    %1230 = vrot.lane.b32.xlu0 %v1218, 17
    %v1231 = vpop.permute.xlu0 %1230
    %1232 = vrot.lane.b32.xlu0 %v1215, 17
    %v1233 = vpop.permute.xlu0 %1232
    %1234 = vrot.lane.b32.xlu0 %v1219, 17
    %v1235 = vpop.permute.xlu0 %1234
    %v1236 = vsel %vm134, %v1229, %v1233
    %v1237 = vsel %vm134, %v1231, %v1235
    %v1238 = vsel %vm134, %v1225, %v1229
    %v1239 = vsel %vm134, %v1227, %v1231
    %v1240 = vsel %vm134, %v1221, %v1225
    %v1241 = vsel %vm134, %v1223, %v1227
    %v1242 = vsel %vm134, %v1233, %v1221
    %v1243 = vsel %vm134, %v1235, %v1223
    %v1244 = vld [vmem:[#allocation6] sm:$0xff]
    %v1245 = vld [vmem:[#allocation6 + $0x8] sm:$0xff]
    %v1246 = vld [vmem:[#allocation6 + $0x10] sm:$0xff]
    %v1247 = vld [vmem:[#allocation6 + $0x18] sm:$0xff]
    %v1248 = vld [vmem:[#allocation6 + $0x20] sm:$0xff]
    %v1249 = vld [vmem:[#allocation6 + $0x28] sm:$0xff]
    %v1250 = vld [vmem:[#allocation6 + $0x30] sm:$0xff]
    %v1251 = vld [vmem:[#allocation6 + $0x38] sm:$0xff]
    %v1252 = vmul.f32 %v1242, %v1244
    %v1253 = vmul.f32 %v1240, %v1245
    %v1254 = vmul.f32 %v1238, %v1246
    %v1255 = vmul.f32 %v1236, %v1247
    %v1256 = vmul.f32 %v1243, %v1248
    %v1257 = vmul.f32 %v1241, %v1249
    %v1258 = vmul.f32 %v1239, %v1250
    %v1259 = vmul.f32 %v1237, %v1251
    %v1260 = vpack.c.bf16 %v1256, %v1252
    %v1261 = vpack.c.bf16 %v1257, %v1253
    %v1262 = vpack.c.bf16 %v1258, %v1254
    %v1263 = vpack.c.bf16 %v1259, %v1255
    %v1268 = vunpack.c.l.b16 %v1260
    %v1269 = vunpack.c.l.b16 %v1261
    %v1270 = vunpack.c.l.b16 %v1262
    %v1271 = vunpack.c.l.b16 %v1263
    %v1272 = vunpack.c.h.b16 %v1260
    %v1273 = vunpack.c.h.b16 %v1261
    %v1274 = vunpack.c.h.b16 %v1262
    %v1275 = vunpack.c.h.b16 %v1263
    %v1276 = vpack.c.b16 %v1269, %v1268
    %v1277 = vpack.c.b16 %v1271, %v1270
    %v1278 = vpack.c.b16 %v1273, %v1272
    %v1279 = vpack.c.b16 %v1275, %v1274
    %1284 = vst [vmem:[#allocation2 + $0x10] sm:$0xff] %v1276
    %1285 = vst [vmem:[#allocation2 + $0x18] sm:$0xff] %v1277
    %1286 = vst [vmem:[#allocation2 + $0x20] sm:$0xff] %v1278
    %1287 = vst [vmem:[#allocation2 + $0x28] sm:$0xff] %v1279
    %1288 = vrot.lane.b32.xlu0 %v1212, 16
    %v1289 = vpop.permute.xlu0 %1288
    %1290 = vrot.lane.b32.xlu0 %v1216, 16
    %v1291 = vpop.permute.xlu0 %1290
    %1292 = vrot.lane.b32.xlu0 %v1213, 16
    %v1293 = vpop.permute.xlu0 %1292
    %1294 = vrot.lane.b32.xlu0 %v1217, 16
    %v1295 = vpop.permute.xlu0 %1294
    %1296 = vrot.lane.b32.xlu0 %v1214, 16
    %v1297 = vpop.permute.xlu0 %1296
    %1298 = vrot.lane.b32.xlu0 %v1218, 16
    %v1299 = vpop.permute.xlu0 %1298
    %1300 = vrot.lane.b32.xlu0 %v1215, 16
    %v1301 = vpop.permute.xlu0 %1300
    %1302 = vrot.lane.b32.xlu0 %v1219, 16
    %v1303 = vpop.permute.xlu0 %1302
    %v1304 = vsel %vm173, %v1297, %v1301
    %v1305 = vsel %vm173, %v1299, %v1303
    %v1306 = vsel %vm173, %v1293, %v1297
    %v1307 = vsel %vm173, %v1295, %v1299
    %v1308 = vsel %vm173, %v1289, %v1293
    %v1309 = vsel %vm173, %v1291, %v1295
    %v1310 = vsel %vm173, %v1301, %v1289
    %v1311 = vsel %vm173, %v1303, %v1291
    %v1312 = vld [vmem:[%s178] sm:$0xff]
    %v1313 = vld [vmem:[%s178 + $0x8] sm:$0xff]
    %v1314 = vld [vmem:[%s178 + $0x10] sm:$0xff]
    %v1315 = vld [vmem:[%s178 + $0x18] sm:$0xff]
    %v1316 = vld [vmem:[%s178 + $0x20] sm:$0xff]
    %v1317 = vld [vmem:[%s178 + $0x28] sm:$0xff]
    %v1318 = vld [vmem:[%s178 + $0x30] sm:$0xff]
    %v1319 = vld [vmem:[%s178 + $0x38] sm:$0xff]
    %v1320 = vmul.f32 %v1310, %v1312
    %v1321 = vmul.f32 %v1308, %v1313
    %v1322 = vmul.f32 %v1306, %v1314
    %v1323 = vmul.f32 %v1304, %v1315
    %v1324 = vmul.f32 %v1311, %v1316
    %v1325 = vmul.f32 %v1309, %v1317
    %v1326 = vmul.f32 %v1307, %v1318
    %v1327 = vmul.f32 %v1305, %v1319
    %v1328 = vpack.c.bf16 %v1324, %v1320
    %v1329 = vpack.c.bf16 %v1325, %v1321
    %v1330 = vpack.c.bf16 %v1326, %v1322
    %v1331 = vpack.c.bf16 %v1327, %v1323
    %v1336 = vunpack.c.l.b16 %v1328
    %v1337 = vunpack.c.l.b16 %v1329
    %v1338 = vunpack.c.l.b16 %v1330
    %v1339 = vunpack.c.l.b16 %v1331
    %v1340 = vunpack.c.h.b16 %v1328
    %v1341 = vunpack.c.h.b16 %v1329
    %v1342 = vunpack.c.h.b16 %v1330
    %v1343 = vunpack.c.h.b16 %v1331
    %v1344 = vpack.c.b16 %v1337, %v1336
    %v1345 = vpack.c.b16 %v1339, %v1338
    %v1346 = vpack.c.b16 %v1341, %v1340
    %v1347 = vpack.c.b16 %v1343, %v1342
    %1352 = vst [vmem:[#allocation2 + $0x30] sm:$0xff] %v1344
    %1353 = vst [vmem:[#allocation2 + $0x38] sm:$0xff] %v1345
    %1354 = vst [vmem:[#allocation2 + $0x40] sm:$0xff] %v1346
    %1355 = vst [vmem:[#allocation2 + $0x48] sm:$0xff] %v1347
    %1356 = vrot.lane.b32.xlu0 %v1212, 15
    %v1357 = vpop.permute.xlu0 %1356
    %1358 = vrot.lane.b32.xlu0 %v1216, 15
    %v1359 = vpop.permute.xlu0 %1358
    %1360 = vrot.lane.b32.xlu0 %v1213, 15
    %v1361 = vpop.permute.xlu0 %1360
    %1362 = vrot.lane.b32.xlu0 %v1217, 15
    %v1363 = vpop.permute.xlu0 %1362
    %1364 = vrot.lane.b32.xlu0 %v1214, 15
    %v1365 = vpop.permute.xlu0 %1364
    %1366 = vrot.lane.b32.xlu0 %v1218, 15
    %v1367 = vpop.permute.xlu0 %1366
    %1368 = vrot.lane.b32.xlu0 %v1215, 15
    %v1369 = vpop.permute.xlu0 %1368
    %1370 = vrot.lane.b32.xlu0 %v1219, 15
    %v1371 = vpop.permute.xlu0 %1370
    %v1372 = vsel %vm213, %v1365, %v1369
    %v1373 = vsel %vm213, %v1367, %v1371
    %v1374 = vsel %vm213, %v1361, %v1365
    %v1375 = vsel %vm213, %v1363, %v1367
    %v1376 = vsel %vm213, %v1357, %v1361
    %v1377 = vsel %vm213, %v1359, %v1363
    %v1378 = vsel %vm213, %v1369, %v1357
    %v1379 = vsel %vm213, %v1371, %v1359
    %v1380 = vld [vmem:[%s218] sm:$0xff]
    %v1381 = vld [vmem:[%s218 + $0x8] sm:$0xff]
    %v1382 = vld [vmem:[%s218 + $0x10] sm:$0xff]
    %v1383 = vld [vmem:[%s218 + $0x18] sm:$0xff]
    %v1384 = vld [vmem:[%s218 + $0x20] sm:$0xff]
    %v1385 = vld [vmem:[%s218 + $0x28] sm:$0xff]
    %v1386 = vld [vmem:[%s218 + $0x30] sm:$0xff]
    %v1387 = vld [vmem:[%s218 + $0x38] sm:$0xff]
    %v1388 = vmul.f32 %v1378, %v1380
    %v1389 = vmul.f32 %v1376, %v1381
    %v1390 = vmul.f32 %v1374, %v1382
    %v1391 = vmul.f32 %v1372, %v1383
    %v1392 = vmul.f32 %v1379, %v1384
    %v1393 = vmul.f32 %v1377, %v1385
    %v1394 = vmul.f32 %v1375, %v1386
    %v1395 = vmul.f32 %v1373, %v1387
    %v1396 = vpack.c.bf16 %v1392, %v1388
    %v1397 = vpack.c.bf16 %v1393, %v1389
    %v1398 = vpack.c.bf16 %v1394, %v1390
    %v1399 = vpack.c.bf16 %v1395, %v1391
    %v1404 = vunpack.c.l.b16 %v1396
    %v1405 = vunpack.c.l.b16 %v1397
    %v1406 = vunpack.c.l.b16 %v1398
    %v1407 = vunpack.c.l.b16 %v1399
    %v1408 = vunpack.c.h.b16 %v1396
    %v1409 = vunpack.c.h.b16 %v1397
    %v1410 = vunpack.c.h.b16 %v1398
    %v1411 = vunpack.c.h.b16 %v1399
    %v1412 = vpack.c.b16 %v1405, %v1404
    %v1413 = vpack.c.b16 %v1407, %v1406
    %v1414 = vpack.c.b16 %v1409, %v1408
    %v1415 = vpack.c.b16 %v1411, %v1410
    %1420 = vst [vmem:[#allocation2 + $0x50] sm:$0xff] %v1412
    %1421 = vst [vmem:[#allocation2 + $0x58] sm:$0xff] %v1413
    %1422 = vst [vmem:[#allocation2 + $0x60] sm:$0xff] %v1414
    %1423 = vst [vmem:[#allocation2 + $0x68] sm:$0xff] %v1415
    %1424 = vrot.lane.b32.xlu0 %v1212, 1
    %v1425 = vpop.permute.xlu0 %1424
    %1426 = vrot.lane.b32.xlu0 %v1216, 1
    %v1427 = vpop.permute.xlu0 %1426
    %1428 = vrot.lane.b32.xlu0 %v1213, 1
    %v1429 = vpop.permute.xlu0 %1428
    %1430 = vrot.lane.b32.xlu0 %v1217, 1
    %v1431 = vpop.permute.xlu0 %1430
    %1432 = vrot.lane.b32.xlu0 %v1214, 1
    %v1433 = vpop.permute.xlu0 %1432
    %1434 = vrot.lane.b32.xlu0 %v1218, 1
    %v1435 = vpop.permute.xlu0 %1434
    %1436 = vrot.lane.b32.xlu0 %v1215, 1
    %v1437 = vpop.permute.xlu0 %1436
    %1438 = vrot.lane.b32.xlu0 %v1219, 1
    %v1439 = vpop.permute.xlu0 %1438
    %v1440 = vsel %vm253, %v1433, %v1437
    %v1441 = vsel %vm253, %v1435, %v1439
    %v1442 = vsel %vm253, %v1429, %v1433
    %v1443 = vsel %vm253, %v1431, %v1435
    %v1444 = vsel %vm253, %v1425, %v1429
    %v1445 = vsel %vm253, %v1427, %v1431
    %v1446 = vsel %vm253, %v1437, %v1425
    %v1447 = vsel %vm253, %v1439, %v1427
    %v1448 = vld [vmem:[%s258] sm:$0xff]
    %v1449 = vld [vmem:[%s258 + $0x8] sm:$0xff]
    %v1450 = vld [vmem:[%s258 + $0x10] sm:$0xff]
    %v1451 = vld [vmem:[%s258 + $0x18] sm:$0xff]
    %v1452 = vld [vmem:[%s258 + $0x20] sm:$0xff]
    %v1453 = vld [vmem:[%s258 + $0x28] sm:$0xff]
    %v1454 = vld [vmem:[%s258 + $0x30] sm:$0xff]
    %v1455 = vld [vmem:[%s258 + $0x38] sm:$0xff]
    %v1456 = vmul.f32 %v1446, %v1448
    %v1457 = vmul.f32 %v1444, %v1449
    %v1458 = vmul.f32 %v1442, %v1450
    %v1459 = vmul.f32 %v1440, %v1451
    %v1460 = vmul.f32 %v1447, %v1452
    %v1461 = vmul.f32 %v1445, %v1453
    %v1462 = vmul.f32 %v1443, %v1454
    %v1463 = vmul.f32 %v1441, %v1455
    %v1464 = vpack.c.bf16 %v1460, %v1456
    %v1465 = vpack.c.bf16 %v1461, %v1457
    %v1466 = vpack.c.bf16 %v1462, %v1458
    %v1467 = vpack.c.bf16 %v1463, %v1459
    %v1472 = vunpack.c.l.b16 %v1464
    %v1473 = vunpack.c.l.b16 %v1465
    %v1474 = vunpack.c.l.b16 %v1466
    %v1475 = vunpack.c.l.b16 %v1467
    %v1476 = vunpack.c.h.b16 %v1464
    %v1477 = vunpack.c.h.b16 %v1465
    %v1478 = vunpack.c.h.b16 %v1466
    %v1479 = vunpack.c.h.b16 %v1467
    %v1480 = vpack.c.b16 %v1473, %v1472
    %v1481 = vpack.c.b16 %v1475, %v1474
    %v1482 = vpack.c.b16 %v1477, %v1476
    %v1483 = vpack.c.b16 %v1479, %v1478
    %1488 = vst [vmem:[#allocation2 + $0x70] sm:$0xff] %v1480
    %1489 = vst [vmem:[#allocation2 + $0x78] sm:$0xff] %v1481
    %1490 = vst [vmem:[#allocation2 + $0x80] sm:$0xff] %v1482
    %1491 = vst [vmem:[#allocation2 + $0x88] sm:$0xff] %v1483
    %v1492 = vpack.c.bf16 %v1216, %v1212
    %v1493 = vpack.c.bf16 %v1217, %v1213
    %v1494 = vpack.c.bf16 %v1218, %v1214
    %v1495 = vpack.c.bf16 %v1219, %v1215
    %v1500 = vunpack.c.l.b16 %v1492
    %v1501 = vunpack.c.l.b16 %v1493
    %v1502 = vunpack.c.l.b16 %v1494
    %v1503 = vunpack.c.l.b16 %v1495
    %v1504 = vunpack.c.h.b16 %v1492
    %v1505 = vunpack.c.h.b16 %v1493
    %v1506 = vunpack.c.h.b16 %v1494
    %v1507 = vunpack.c.h.b16 %v1495
    %v1508 = vpack.c.b16 %v1501, %v1500
    %v1509 = vpack.c.b16 %v1503, %v1502
    %v1510 = vpack.c.b16 %v1505, %v1504
    %v1511 = vpack.c.b16 %v1507, %v1506
    %1516 = vst [vmem:[#allocation2 + $0x90] sm:$0xff] %v1508
    %1517 = vst [vmem:[#allocation2 + $0x98] sm:$0xff] %v1509
    %1518 = vst [vmem:[#allocation2 + $0xa0] sm:$0xff] %v1510
    %1519 = vst [vmem:[#allocation2 + $0xa8] sm:$0xff] %v1511
    %1520 = vrot.lane.b32.xlu0 %v1212, 127
    %v1521 = vpop.permute.xlu0 %1520
    %1522 = vrot.lane.b32.xlu0 %v1216, 127
    %v1523 = vpop.permute.xlu0 %1522
    %1524 = vrot.lane.b32.xlu0 %v1213, 127
    %v1525 = vpop.permute.xlu0 %1524
    %1526 = vrot.lane.b32.xlu0 %v1217, 127
    %v1527 = vpop.permute.xlu0 %1526
    %1528 = vrot.lane.b32.xlu0 %v1214, 127
    %v1529 = vpop.permute.xlu0 %1528
    %1530 = vrot.lane.b32.xlu0 %v1218, 127
    %v1531 = vpop.permute.xlu0 %1530
    %1532 = vrot.lane.b32.xlu0 %v1215, 127
    %v1533 = vpop.permute.xlu0 %1532
    %1534 = vrot.lane.b32.xlu0 %v1219, 127
    %v1535 = vpop.permute.xlu0 %1534
    %v1536 = vsel %vm311, %v1529, %v1533
    %v1537 = vsel %vm311, %v1531, %v1535
    %v1538 = vsel %vm311, %v1525, %v1529
    %v1539 = vsel %vm311, %v1527, %v1531
    %v1540 = vsel %vm311, %v1521, %v1525
    %v1541 = vsel %vm311, %v1523, %v1527
    %v1542 = vsel %vm311, %v1533, %v1521
    %v1543 = vsel %vm311, %v1535, %v1523
    %v1544 = vld [vmem:[%s316] sm:$0xff]
    %v1545 = vld [vmem:[%s316 + $0x8] sm:$0xff]
    %v1546 = vld [vmem:[%s316 + $0x10] sm:$0xff]
    %v1547 = vld [vmem:[%s316 + $0x18] sm:$0xff]
    %v1548 = vld [vmem:[%s316 + $0x20] sm:$0xff]
    %v1549 = vld [vmem:[%s316 + $0x28] sm:$0xff]
    %v1550 = vld [vmem:[%s316 + $0x30] sm:$0xff]
    %v1551 = vld [vmem:[%s316 + $0x38] sm:$0xff]
    %v1552 = vmul.f32 %v1540, %v1544
    %v1553 = vmul.f32 %v1538, %v1545
    %v1554 = vmul.f32 %v1536, %v1546
    %v1555 = vmul.f32 %v1542, %v1547
    %v1556 = vmul.f32 %v1541, %v1548
    %v1557 = vmul.f32 %v1539, %v1549
    %v1558 = vmul.f32 %v1537, %v1550
    %v1559 = vmul.f32 %v1543, %v1551
    %v1560 = vpack.c.bf16 %v1556, %v1552
    %v1561 = vpack.c.bf16 %v1557, %v1553
    %v1562 = vpack.c.bf16 %v1558, %v1554
    %v1563 = vpack.c.bf16 %v1559, %v1555
    %v1568 = vunpack.c.l.b16 %v1560
    %v1569 = vunpack.c.l.b16 %v1561
    %v1570 = vunpack.c.l.b16 %v1562
    %v1571 = vunpack.c.l.b16 %v1563
    %v1572 = vunpack.c.h.b16 %v1560
    %v1573 = vunpack.c.h.b16 %v1561
    %v1574 = vunpack.c.h.b16 %v1562
    %v1575 = vunpack.c.h.b16 %v1563
    %v1576 = vpack.c.b16 %v1569, %v1568
    %v1577 = vpack.c.b16 %v1571, %v1570
    %v1578 = vpack.c.b16 %v1573, %v1572
    %v1579 = vpack.c.b16 %v1575, %v1574
    %1584 = vst [vmem:[#allocation2 + $0xb0] sm:$0xff] %v1576
    %1585 = vst [vmem:[#allocation2 + $0xb8] sm:$0xff] %v1577
    %1586 = vst [vmem:[#allocation2 + $0xc0] sm:$0xff] %v1578
    %1587 = vst [vmem:[#allocation2 + $0xc8] sm:$0xff] %v1579
    %1588 = vrot.lane.b32.xlu0 %v1212, 113
    %v1589 = vpop.permute.xlu0 %1588
    %1590 = vrot.lane.b32.xlu0 %v1216, 113
    %v1591 = vpop.permute.xlu0 %1590
    %1592 = vrot.lane.b32.xlu0 %v1213, 113
    %v1593 = vpop.permute.xlu0 %1592
    %1594 = vrot.lane.b32.xlu0 %v1217, 113
    %v1595 = vpop.permute.xlu0 %1594
    %1596 = vrot.lane.b32.xlu0 %v1214, 113
    %v1597 = vpop.permute.xlu0 %1596
    %1598 = vrot.lane.b32.xlu0 %v1218, 113
    %v1599 = vpop.permute.xlu0 %1598
    %1600 = vrot.lane.b32.xlu0 %v1215, 113
    %v1601 = vpop.permute.xlu0 %1600
    %1602 = vrot.lane.b32.xlu0 %v1219, 113
    %v1603 = vpop.permute.xlu0 %1602
    %v1604 = vsel %vm351, %v1597, %v1601
    %v1605 = vsel %vm351, %v1599, %v1603
    %v1606 = vsel %vm351, %v1593, %v1597
    %v1607 = vsel %vm351, %v1595, %v1599
    %v1608 = vsel %vm351, %v1589, %v1593
    %v1609 = vsel %vm351, %v1591, %v1595
    %v1610 = vsel %vm351, %v1601, %v1589
    %v1611 = vsel %vm351, %v1603, %v1591
    %v1612 = vld [vmem:[%s356] sm:$0xff]
    %v1613 = vld [vmem:[%s356 + $0x8] sm:$0xff]
    %v1614 = vld [vmem:[%s356 + $0x10] sm:$0xff]
    %v1615 = vld [vmem:[%s356 + $0x18] sm:$0xff]
    %v1616 = vld [vmem:[%s356 + $0x20] sm:$0xff]
    %v1617 = vld [vmem:[%s356 + $0x28] sm:$0xff]
    %v1618 = vld [vmem:[%s356 + $0x30] sm:$0xff]
    %v1619 = vld [vmem:[%s356 + $0x38] sm:$0xff]
    %v1620 = vmul.f32 %v1608, %v1612
    %v1621 = vmul.f32 %v1606, %v1613
    %v1622 = vmul.f32 %v1604, %v1614
    %v1623 = vmul.f32 %v1610, %v1615
    %v1624 = vmul.f32 %v1609, %v1616
    %v1625 = vmul.f32 %v1607, %v1617
    %v1626 = vmul.f32 %v1605, %v1618
    %v1627 = vmul.f32 %v1611, %v1619
    %v1628 = vpack.c.bf16 %v1624, %v1620
    %v1629 = vpack.c.bf16 %v1625, %v1621
    %v1630 = vpack.c.bf16 %v1626, %v1622
    %v1631 = vpack.c.bf16 %v1627, %v1623
    %v1636 = vunpack.c.l.b16 %v1628
    %v1637 = vunpack.c.l.b16 %v1629
    %v1638 = vunpack.c.l.b16 %v1630
    %v1639 = vunpack.c.l.b16 %v1631
    %v1640 = vunpack.c.h.b16 %v1628
    %v1641 = vunpack.c.h.b16 %v1629
    %v1642 = vunpack.c.h.b16 %v1630
    %v1643 = vunpack.c.h.b16 %v1631
    %v1644 = vpack.c.b16 %v1637, %v1636
    %v1645 = vpack.c.b16 %v1639, %v1638
    %v1646 = vpack.c.b16 %v1641, %v1640
    %v1647 = vpack.c.b16 %v1643, %v1642
    %1652 = vst [vmem:[#allocation2 + $0xd0] sm:$0xff] %v1644
    %1653 = vst [vmem:[#allocation2 + $0xd8] sm:$0xff] %v1645
    %1654 = vst [vmem:[#allocation2 + $0xe0] sm:$0xff] %v1646
    %1655 = vst [vmem:[#allocation2 + $0xe8] sm:$0xff] %v1647
    %1656 = vrot.lane.b32.xlu0 %v1212, 112
    %v1657 = vpop.permute.xlu0 %1656
    %1658 = vrot.lane.b32.xlu0 %v1216, 112
    %v1659 = vpop.permute.xlu0 %1658
    %1660 = vrot.lane.b32.xlu0 %v1213, 112
    %v1661 = vpop.permute.xlu0 %1660
    %1662 = vrot.lane.b32.xlu0 %v1217, 112
    %v1663 = vpop.permute.xlu0 %1662
    %1664 = vrot.lane.b32.xlu0 %v1214, 112
    %v1665 = vpop.permute.xlu0 %1664
    %1666 = vrot.lane.b32.xlu0 %v1218, 112
    %v1667 = vpop.permute.xlu0 %1666
    %1668 = vrot.lane.b32.xlu0 %v1215, 112
    %v1669 = vpop.permute.xlu0 %1668
    %1670 = vrot.lane.b32.xlu0 %v1219, 112
    %v1671 = vpop.permute.xlu0 %1670
    %v1672 = vsel %vm391, %v1665, %v1669
    %v1673 = vsel %vm391, %v1667, %v1671
    %v1674 = vsel %vm391, %v1661, %v1665
    %v1675 = vsel %vm391, %v1663, %v1667
    %v1676 = vsel %vm391, %v1657, %v1661
    %v1677 = vsel %vm391, %v1659, %v1663
    %v1678 = vsel %vm391, %v1669, %v1657
    %v1679 = vsel %vm391, %v1671, %v1659
    %v1680 = vld [vmem:[%s396] sm:$0xff]
    %v1681 = vld [vmem:[%s396 + $0x8] sm:$0xff]
    %v1682 = vld [vmem:[%s396 + $0x10] sm:$0xff]
    %v1683 = vld [vmem:[%s396 + $0x18] sm:$0xff]
    %v1684 = vld [vmem:[%s396 + $0x20] sm:$0xff]
    %v1685 = vld [vmem:[%s396 + $0x28] sm:$0xff]
    %v1686 = vld [vmem:[%s396 + $0x30] sm:$0xff]
    %v1687 = vld [vmem:[%s396 + $0x38] sm:$0xff]
    %v1688 = vmul.f32 %v1676, %v1680
    %v1689 = vmul.f32 %v1674, %v1681
    %v1690 = vmul.f32 %v1672, %v1682
    %v1691 = vmul.f32 %v1678, %v1683
    %v1692 = vmul.f32 %v1677, %v1684
    %v1693 = vmul.f32 %v1675, %v1685
    %v1694 = vmul.f32 %v1673, %v1686
    %v1695 = vmul.f32 %v1679, %v1687
    %v1696 = vpack.c.bf16 %v1692, %v1688
    %v1697 = vpack.c.bf16 %v1693, %v1689
    %v1698 = vpack.c.bf16 %v1694, %v1690
    %v1699 = vpack.c.bf16 %v1695, %v1691
    %v1704 = vunpack.c.l.b16 %v1696
    %v1705 = vunpack.c.l.b16 %v1697
    %v1706 = vunpack.c.l.b16 %v1698
    %v1707 = vunpack.c.l.b16 %v1699
    %v1708 = vunpack.c.h.b16 %v1696
    %v1709 = vunpack.c.h.b16 %v1697
    %v1710 = vunpack.c.h.b16 %v1698
    %v1711 = vunpack.c.h.b16 %v1699
    %v1712 = vpack.c.b16 %v1705, %v1704
    %v1713 = vpack.c.b16 %v1707, %v1706
    %v1714 = vpack.c.b16 %v1709, %v1708
    %v1715 = vpack.c.b16 %v1711, %v1710
    %1720 = vst [vmem:[#allocation2 + $0xf0] sm:$0xff] %v1712
    %1721 = vst [vmem:[#allocation2 + $0xf8] sm:$0xff] %v1713
    %1722 = vst [vmem:[#allocation2 + $0x100] sm:$0xff] %v1714
    %1723 = vst [vmem:[#allocation2 + $0x108] sm:$0xff] %v1715
    %1724 = vrot.lane.b32.xlu0 %v1212, 111
    %v1725 = vpop.permute.xlu0 %1724
    %1726 = vrot.lane.b32.xlu0 %v1216, 111
    %v1727 = vpop.permute.xlu0 %1726
    %1728 = vrot.lane.b32.xlu0 %v1213, 111
    %v1729 = vpop.permute.xlu0 %1728
    %1730 = vrot.lane.b32.xlu0 %v1217, 111
    %v1731 = vpop.permute.xlu0 %1730
    %1732 = vrot.lane.b32.xlu0 %v1214, 111
    %v1733 = vpop.permute.xlu0 %1732
    %1734 = vrot.lane.b32.xlu0 %v1218, 111
    %v1735 = vpop.permute.xlu0 %1734
    %1736 = vrot.lane.b32.xlu0 %v1215, 111
    %v1737 = vpop.permute.xlu0 %1736
    %1738 = vrot.lane.b32.xlu0 %v1219, 111
    %v1739 = vpop.permute.xlu0 %1738
    %v1740 = vsel %vm431, %v1733, %v1737
    %v1741 = vsel %vm431, %v1735, %v1739
    %v1742 = vsel %vm431, %v1729, %v1733
    %v1743 = vsel %vm431, %v1731, %v1735
    %v1744 = vsel %vm431, %v1725, %v1729
    %v1745 = vsel %vm431, %v1727, %v1731
    %v1746 = vsel %vm431, %v1737, %v1725
    %v1747 = vsel %vm431, %v1739, %v1727
    %v1748 = vld [vmem:[%s436] sm:$0xff]
    %v1749 = vld [vmem:[%s436 + $0x8] sm:$0xff]
    %v1750 = vld [vmem:[%s436 + $0x10] sm:$0xff]
    %v1751 = vld [vmem:[%s436 + $0x18] sm:$0xff]
    %v1752 = vld [vmem:[%s436 + $0x20] sm:$0xff]
    %v1753 = vld [vmem:[%s436 + $0x28] sm:$0xff]
    %v1754 = vld [vmem:[%s436 + $0x30] sm:$0xff]
    %v1755 = vld [vmem:[%s436 + $0x38] sm:$0xff]
    %v1756 = vmul.f32 %v1744, %v1748
    %v1757 = vmul.f32 %v1742, %v1749
    %v1758 = vmul.f32 %v1740, %v1750
    %v1759 = vmul.f32 %v1746, %v1751
    %v1760 = vmul.f32 %v1745, %v1752
    %v1761 = vmul.f32 %v1743, %v1753
    %v1762 = vmul.f32 %v1741, %v1754
    %v1763 = vmul.f32 %v1747, %v1755
    %v1764 = vpack.c.bf16 %v1760, %v1756
    %v1765 = vpack.c.bf16 %v1761, %v1757
    %v1766 = vpack.c.bf16 %v1762, %v1758
    %v1767 = vpack.c.bf16 %v1763, %v1759
    %v1772 = vunpack.c.l.b16 %v1764
    %v1773 = vunpack.c.l.b16 %v1765
    %v1774 = vunpack.c.l.b16 %v1766
    %v1775 = vunpack.c.l.b16 %v1767
    %v1776 = vunpack.c.h.b16 %v1764
    %v1777 = vunpack.c.h.b16 %v1765
    %v1778 = vunpack.c.h.b16 %v1766
    %v1779 = vunpack.c.h.b16 %v1767
    %v1780 = vpack.c.b16 %v1773, %v1772
    %v1781 = vpack.c.b16 %v1775, %v1774
    %v1782 = vpack.c.b16 %v1777, %v1776
    %v1783 = vpack.c.b16 %v1779, %v1778
    %1788 = vst [vmem:[#allocation2 + $0x110] sm:$0xff] %v1780
    %1789 = vst [vmem:[#allocation2 + $0x118] sm:$0xff] %v1781
    %1790 = vst [vmem:[#allocation2 + $0x120] sm:$0xff] %v1782
    %1791 = vst [vmem:[#allocation2 + $0x128] sm:$0xff] %v1783
    %v1792 = vld [vmem:[#allocation11] sm:$0xff]
    %v1793 = vld [vmem:[#allocation11 + $0x8] sm:$0xff]
    %v1794 = vld [vmem:[#allocation2] sm:$0xff]
    %v1795 = vld [vmem:[#allocation2 + $0x8] sm:$0xff]
    %v1796 = vld [vmem:[#allocation2 + $0x10] sm:$0xff]
    %v1797 = vld [vmem:[#allocation2 + $0x18] sm:$0xff]
    %v1798 = vld [vmem:[#allocation2 + $0x20] sm:$0xff]
    %v1799 = vld [vmem:[#allocation2 + $0x28] sm:$0xff]
    %v1800 = vld [vmem:[#allocation2 + $0x30] sm:$0xff]
    %v1801 = vld [vmem:[#allocation2 + $0x38] sm:$0xff]
    %v1802 = vld [vmem:[#allocation2 + $0x40] sm:$0xff]
    %v1803 = vld [vmem:[#allocation2 + $0x48] sm:$0xff]
    %v1804 = vld [vmem:[#allocation2 + $0x50] sm:$0xff]
    %v1805 = vld [vmem:[#allocation2 + $0x58] sm:$0xff]
    %v1806 = vld [vmem:[#allocation2 + $0x60] sm:$0xff]
    %v1807 = vld [vmem:[#allocation2 + $0x68] sm:$0xff]
    %v1808 = vld [vmem:[#allocation2 + $0x70] sm:$0xff]
    %v1809 = vld [vmem:[#allocation2 + $0x78] sm:$0xff]
    %v1810 = vld [vmem:[#allocation2 + $0x80] sm:$0xff]
    %v1811 = vld [vmem:[#allocation2 + $0x88] sm:$0xff]
    %v1812 = vld [vmem:[#allocation2 + $0x90] sm:$0xff]
    %v1813 = vld [vmem:[#allocation2 + $0x98] sm:$0xff]
    %v1814 = vld [vmem:[#allocation2 + $0xa0] sm:$0xff]
    %v1815 = vld [vmem:[#allocation2 + $0xa8] sm:$0xff]
    %v1816 = vld [vmem:[#allocation2 + $0xb0] sm:$0xff]
    %v1817 = vld [vmem:[#allocation2 + $0xb8] sm:$0xff]
    %v1818 = vld [vmem:[#allocation2 + $0xc0] sm:$0xff]
    %v1819 = vld [vmem:[#allocation2 + $0xc8] sm:$0xff]
    %v1820 = vld [vmem:[#allocation2 + $0xd0] sm:$0xff]
    %v1821 = vld [vmem:[#allocation2 + $0xd8] sm:$0xff]
    %v1822 = vld [vmem:[#allocation2 + $0xe0] sm:$0xff]
    %v1823 = vld [vmem:[#allocation2 + $0xe8] sm:$0xff]
    %v1824 = vld [vmem:[#allocation2 + $0xf0] sm:$0xff]
    %v1825 = vld [vmem:[#allocation2 + $0xf8] sm:$0xff]
    %v1826 = vld [vmem:[#allocation2 + $0x100] sm:$0xff]
    %v1827 = vld [vmem:[#allocation2 + $0x108] sm:$0xff]
    %v1828 = vld [vmem:[#allocation2 + $0x110] sm:$0xff]
    %v1829 = vld [vmem:[#allocation2 + $0x118] sm:$0xff]
    %v1830 = vld [vmem:[#allocation2 + $0x120] sm:$0xff]
    %v1831 = vld [vmem:[#allocation2 + $0x128] sm:$0xff]
    %v1834 = vunpack.c.l.b16 %v1792
    %v1835 = vunpack.c.h.b16 %v1792
    %v1836 = vunpack.c.l.b16 %v1793
    %v1837 = vunpack.c.h.b16 %v1793
    %v1838 = vpack.c.b16 %v1836, %v1834
    %v1839 = vpack.c.b16 %v1837, %v1835
    %v1879 = vunpack.c.l.b16 %v1794
    %v1880 = vunpack.c.h.b16 %v1794
    %v1881 = vunpack.c.l.b16 %v1795
    %v1882 = vunpack.c.h.b16 %v1795
    %v1883 = vunpack.c.l.b16 %v1796
    %v1884 = vunpack.c.h.b16 %v1796
    %v1885 = vunpack.c.l.b16 %v1797
    %v1886 = vunpack.c.h.b16 %v1797
    %v1887 = vunpack.c.l.b16 %v1798
    %v1888 = vunpack.c.h.b16 %v1798
    %v1889 = vunpack.c.l.b16 %v1799
    %v1890 = vunpack.c.h.b16 %v1799
    %v1891 = vunpack.c.l.b16 %v1800
    %v1892 = vunpack.c.h.b16 %v1800
    %v1893 = vunpack.c.l.b16 %v1801
    %v1894 = vunpack.c.h.b16 %v1801
    %v1895 = vunpack.c.l.b16 %v1802
    %v1896 = vunpack.c.h.b16 %v1802
    %v1897 = vunpack.c.l.b16 %v1803
    %v1898 = vunpack.c.h.b16 %v1803
    %v1899 = vunpack.c.l.b16 %v1804
    %v1900 = vunpack.c.h.b16 %v1804
    %v1901 = vunpack.c.l.b16 %v1805
    %v1902 = vunpack.c.h.b16 %v1805
    %v1903 = vunpack.c.l.b16 %v1806
    %v1904 = vunpack.c.h.b16 %v1806
    %v1905 = vunpack.c.l.b16 %v1807
    %v1906 = vunpack.c.h.b16 %v1807
    %v1907 = vunpack.c.l.b16 %v1808
    %v1908 = vunpack.c.h.b16 %v1808
    %v1909 = vunpack.c.l.b16 %v1809
    %v1910 = vunpack.c.h.b16 %v1809
    %v1911 = vunpack.c.l.b16 %v1810
    %v1912 = vunpack.c.h.b16 %v1810
    %v1913 = vunpack.c.l.b16 %v1811
    %v1914 = vunpack.c.h.b16 %v1811
    %v1915 = vunpack.c.l.b16 %v1812
    %v1916 = vunpack.c.h.b16 %v1812
    %v1917 = vunpack.c.l.b16 %v1813
    %v1918 = vunpack.c.h.b16 %v1813
    %v1919 = vunpack.c.l.b16 %v1814
    %v1920 = vunpack.c.h.b16 %v1814
    %v1921 = vunpack.c.l.b16 %v1815
    %v1922 = vunpack.c.h.b16 %v1815
    %v1923 = vunpack.c.l.b16 %v1816
    %v1924 = vunpack.c.h.b16 %v1816
    %v1925 = vunpack.c.l.b16 %v1817
    %v1926 = vunpack.c.h.b16 %v1817
    %v1927 = vunpack.c.l.b16 %v1818
    %v1928 = vunpack.c.h.b16 %v1818
    %v1929 = vunpack.c.l.b16 %v1819
    %v1930 = vunpack.c.h.b16 %v1819
    %v1931 = vunpack.c.l.b16 %v1820
    %v1932 = vunpack.c.h.b16 %v1820
    %v1933 = vunpack.c.l.b16 %v1821
    %v1934 = vunpack.c.h.b16 %v1821
    %v1935 = vunpack.c.l.b16 %v1822
    %v1936 = vunpack.c.h.b16 %v1822
    %v1937 = vunpack.c.l.b16 %v1823
    %v1938 = vunpack.c.h.b16 %v1823
    %v1939 = vunpack.c.l.b16 %v1824
    %v1940 = vunpack.c.h.b16 %v1824
    %v1941 = vunpack.c.l.b16 %v1825
    %v1942 = vunpack.c.h.b16 %v1825
    %v1943 = vunpack.c.l.b16 %v1826
    %v1944 = vunpack.c.h.b16 %v1826
    %v1945 = vunpack.c.l.b16 %v1827
    %v1946 = vunpack.c.h.b16 %v1827
    %v1947 = vunpack.c.l.b16 %v1828
    %v1948 = vunpack.c.h.b16 %v1828
    %v1949 = vunpack.c.l.b16 %v1829
    %v1950 = vunpack.c.h.b16 %v1829
    %v1951 = vunpack.c.l.b16 %v1830
    %v1952 = vunpack.c.h.b16 %v1830
    %v1953 = vunpack.c.l.b16 %v1831
    %v1954 = vunpack.c.h.b16 %v1831
    %v1955 = vpack.c.b16 %v1883, %v1879
    %v1956 = vpack.c.b16 %v1884, %v1880
    %v1957 = vpack.c.b16 %v1885, %v1881
    %v1958 = vpack.c.b16 %v1886, %v1882
    %v1959 = vpack.c.b16 %v1891, %v1887
    %v1960 = vpack.c.b16 %v1892, %v1888
    %v1961 = vpack.c.b16 %v1893, %v1889
    %v1962 = vpack.c.b16 %v1894, %v1890
    %v1963 = vpack.c.b16 %v1899, %v1895
    %v1964 = vpack.c.b16 %v1900, %v1896
    %v1965 = vpack.c.b16 %v1901, %v1897
    %v1966 = vpack.c.b16 %v1902, %v1898
    %v1967 = vpack.c.b16 %v1907, %v1903
    %v1968 = vpack.c.b16 %v1908, %v1904
    %v1969 = vpack.c.b16 %v1909, %v1905
    %v1970 = vpack.c.b16 %v1910, %v1906
    %v1971 = vpack.c.b16 %v1915, %v1911
    %v1972 = vpack.c.b16 %v1916, %v1912
    %v1973 = vpack.c.b16 %v1917, %v1913
    %v1974 = vpack.c.b16 %v1918, %v1914
    %v1975 = vpack.c.b16 %v1923, %v1919
    %v1976 = vpack.c.b16 %v1924, %v1920
    %v1977 = vpack.c.b16 %v1925, %v1921
    %v1978 = vpack.c.b16 %v1926, %v1922
    %v1979 = vpack.c.b16 %v1931, %v1927
    %v1980 = vpack.c.b16 %v1932, %v1928
    %v1981 = vpack.c.b16 %v1933, %v1929
    %v1982 = vpack.c.b16 %v1934, %v1930
    %v1983 = vpack.c.b16 %v1939, %v1935
    %v1984 = vpack.c.b16 %v1940, %v1936
    %v1985 = vpack.c.b16 %v1941, %v1937
    %v1986 = vpack.c.b16 %v1942, %v1938
    %v1987 = vpack.c.b16 %v1947, %v1943
    %v1988 = vpack.c.b16 %v1948, %v1944
    %v1989 = vpack.c.b16 %v1949, %v1945
    %v1990 = vpack.c.b16 %v1950, %v1946
    %v1991 = vpack.c.b16 %v1951, %v1951
    %v1992 = vpack.c.b16 %v1952, %v1952
    %v1993 = vpack.c.b16 %v1953, %v1953
    %v1994 = vpack.c.b16 %v1954, %v1954
    %vm2031 = vcmask 195584
    %v2033 = vsel %vm2031, %v1839, 0
    %vm2035 = vcmask 1043456
    %v2037 = vsel %vm2035, %v1991, 0
    %v2040 = vsel %vm2035, %v1992, 0
    %v2043 = vsel %vm2035, %v1993, 0
    %v2046 = vsel %vm2035, %v1994, 0
    %2048 = vmatprep.subr.bf16.mxu0 %v1984
    %2049 = vmatpush1.bf16.msra.mxu0 %v1983
    %2050 = vmatprep.subr.bf16.mxu0 %v1980
    %2051 = vmatpush1.bf16.msra.mxu0 %v1979
    %2052 = vmatprep.subr.bf16.mxu0 %v1976
    %2053 = vmatpush1.bf16.msra.mxu0 %v1975
    %2054 = vmatprep.subr.bf16.mxu0 %v1972
    %2055 = vmatpush1.bf16.msra.mxu0 %v1971
    %2056 = vmatprep.subr.bf16.mxu0 %v1968
    %2057 = vmatpush1.bf16.msra.mxu0 %v1967
    %2058 = vmatprep.subr.bf16.mxu0 %v1964
    %2059 = vmatpush1.bf16.msra.mxu0 %v1963
    %2060 = vmatprep.subr.bf16.mxu0 %v1960
    %2061 = vmatpush1.bf16.msra.mxu0 %v1959
    %2062 = vmatprep.subr.bf16.mxu0 %v1956
    %2063 = vmatpush1.bf16.msra.mxu0 %v1955
    %2064 = vmatprep.subr.bf16.mxu0 0
    %2065 = vmatpush2.bf16.msra.mxu0 0
    %2066 = vmatprep.subr.bf16.mxu0 0
    %2067 = vmatpush2.bf16.msra.mxu0 0
    %2068 = vmatprep.subr.bf16.mxu0 0
    %2069 = vmatpush2.bf16.msra.mxu0 0
    %2070 = vmatprep.subr.bf16.mxu0 0
    %2071 = vmatpush2.bf16.msra.mxu0 0
    %2072 = vmatprep.subr.bf16.mxu0 0
    %2073 = vmatpush2.bf16.msra.mxu0 0
    %2074 = vmatprep.subr.bf16.mxu0 0
    %2075 = vmatpush2.bf16.msra.mxu0 0
    %2076 = vmatprep.subr.bf16.mxu0 %v2040
    %2077 = vmatpush2.bf16.msra.mxu0 %v2037
    %2078 = vmatprep.subr.bf16.mxu0 %v1988
    %2079 = vmatpush2.bf16.msra.mxu0 %v1987
    %2080 = vmatprep.mubr.bf16.mxu0 %v2033
    %2081 = vmatmul.mubr.bf16.gmra.mxu0 %v1838
    %v2082 = vpop.f32.mrf.mxu0
    %v2083 = vadd.f32 0.0, %v2082
    %v2084 = vpop.f32.mrf.mxu0
    %v2085 = vadd.f32 0.0, %v2084
    %v2086 = vpop.f32.mrf.mxu0
    %v2087 = vadd.f32 0.0, %v2086
    %v2088 = vpop.f32.mrf.mxu0
    %v2089 = vadd.f32 0.0, %v2088
    %2090 = vdwg.mxu0
    %2091 = vmatprep.subr.bf16.mxu0 %v1986
    %2092 = vmatpush1.bf16.msra.mxu0 %v1985
    %2093 = vmatprep.subr.bf16.mxu0 %v1982
    %2094 = vmatpush1.bf16.msra.mxu0 %v1981
    %2095 = vmatprep.subr.bf16.mxu0 %v1978
    %2096 = vmatpush1.bf16.msra.mxu0 %v1977
    %2097 = vmatprep.subr.bf16.mxu0 %v1974
    %2098 = vmatpush1.bf16.msra.mxu0 %v1973
    %2099 = vmatprep.subr.bf16.mxu0 %v1970
    %2100 = vmatpush1.bf16.msra.mxu0 %v1969
    %2101 = vmatprep.subr.bf16.mxu0 %v1966
    %2102 = vmatpush1.bf16.msra.mxu0 %v1965
    %2103 = vmatprep.subr.bf16.mxu0 %v1962
    %2104 = vmatpush1.bf16.msra.mxu0 %v1961
    %2105 = vmatprep.subr.bf16.mxu0 %v1958
    %2106 = vmatpush1.bf16.msra.mxu0 %v1957
    %2107 = vmatprep.subr.bf16.mxu0 0
    %2108 = vmatpush2.bf16.msra.mxu0 0
    %2109 = vmatprep.subr.bf16.mxu0 0
    %2110 = vmatpush2.bf16.msra.mxu0 0
    %2111 = vmatprep.subr.bf16.mxu0 0
    %2112 = vmatpush2.bf16.msra.mxu0 0
    %2113 = vmatprep.subr.bf16.mxu0 0
    %2114 = vmatpush2.bf16.msra.mxu0 0
    %2115 = vmatprep.subr.bf16.mxu0 0
    %2116 = vmatpush2.bf16.msra.mxu0 0
    %2117 = vmatprep.subr.bf16.mxu0 0
    %2118 = vmatpush2.bf16.msra.mxu0 0
    %2119 = vmatprep.subr.bf16.mxu0 %v2046
    %2120 = vmatpush2.bf16.msra.mxu0 %v2043
    %2121 = vmatprep.subr.bf16.mxu0 %v1990
    %2122 = vmatpush2.bf16.msra.mxu0 %v1989
    %2123 = vmatprep.mubr.bf16.mxu0 %v2033
    %2124 = vmatmul.mubr.bf16.gmra.mxu0 %v1838
    %v2125 = vpop.f32.mrf.mxu0
    %v2126 = vadd.f32 0.0, %v2125
    %v2127 = vpop.f32.mrf.mxu0
    %v2128 = vadd.f32 0.0, %v2127
    %v2129 = vpop.f32.mrf.mxu0
    %v2130 = vadd.f32 0.0, %v2129
    %v2131 = vpop.f32.mrf.mxu0
    %v2132 = vadd.f32 0.0, %v2131
    %2133 = vdwg.mxu0
    %v2134 = vmax.f32 %v2083, 0.0
    %v2135 = vmax.f32 %v2085, 0.0
    %v2136 = vmax.f32 %v2126, 0.0
    %v2137 = vmax.f32 %v2128, 0.0
    %v2138 = vmax.f32 %v2087, 0.0
    %v2139 = vmax.f32 %v2089, 0.0
    %v2140 = vmax.f32 %v2130, 0.0
    %v2141 = vmax.f32 %v2132, 0.0
    %2142 = vrot.lane.b32.xlu0 %v2134, 17
    %v2143 = vpop.permute.xlu0 %2142
    %2144 = vrot.lane.b32.xlu0 %v2138, 17
    %v2145 = vpop.permute.xlu0 %2144
    %2146 = vrot.lane.b32.xlu0 %v2135, 17
    %v2147 = vpop.permute.xlu0 %2146
    %2148 = vrot.lane.b32.xlu0 %v2139, 17
    %v2149 = vpop.permute.xlu0 %2148
    %2150 = vrot.lane.b32.xlu0 %v2136, 17
    %v2151 = vpop.permute.xlu0 %2150
    %2152 = vrot.lane.b32.xlu0 %v2140, 17
    %v2153 = vpop.permute.xlu0 %2152
    %2154 = vrot.lane.b32.xlu0 %v2137, 17
    %v2155 = vpop.permute.xlu0 %2154
    %2156 = vrot.lane.b32.xlu0 %v2141, 17
    %v2157 = vpop.permute.xlu0 %2156
    %v2158 = vsel %vm134, %v2151, %v2155
    %v2159 = vsel %vm134, %v2153, %v2157
    %v2160 = vsel %vm134, %v2147, %v2151
    %v2161 = vsel %vm134, %v2149, %v2153
    %v2162 = vsel %vm134, %v2143, %v2147
    %v2163 = vsel %vm134, %v2145, %v2149
    %v2164 = vsel %vm134, %v2155, %v2143
    %v2165 = vsel %vm134, %v2157, %v2145
    %v2166 = vld [vmem:[#allocation6] sm:$0xff]
    %v2167 = vld [vmem:[#allocation6 + $0x8] sm:$0xff]
    %v2168 = vld [vmem:[#allocation6 + $0x10] sm:$0xff]
    %v2169 = vld [vmem:[#allocation6 + $0x18] sm:$0xff]
    %v2170 = vld [vmem:[#allocation6 + $0x20] sm:$0xff]
    %v2171 = vld [vmem:[#allocation6 + $0x28] sm:$0xff]
    %v2172 = vld [vmem:[#allocation6 + $0x30] sm:$0xff]
    %v2173 = vld [vmem:[#allocation6 + $0x38] sm:$0xff]
    %v2174 = vmul.f32 %v2164, %v2166
    %v2175 = vmul.f32 %v2162, %v2167
    %v2176 = vmul.f32 %v2160, %v2168
    %v2177 = vmul.f32 %v2158, %v2169
    %v2178 = vmul.f32 %v2165, %v2170
    %v2179 = vmul.f32 %v2163, %v2171
    %v2180 = vmul.f32 %v2161, %v2172
    %v2181 = vmul.f32 %v2159, %v2173
    %v2182 = vpack.c.bf16 %v2178, %v2174
    %v2183 = vpack.c.bf16 %v2179, %v2175
    %v2184 = vpack.c.bf16 %v2180, %v2176
    %v2185 = vpack.c.bf16 %v2181, %v2177
    %v2190 = vunpack.c.l.b16 %v2182
    %v2191 = vunpack.c.l.b16 %v2183
    %v2192 = vunpack.c.l.b16 %v2184
    %v2193 = vunpack.c.l.b16 %v2185
    %v2194 = vunpack.c.h.b16 %v2182
    %v2195 = vunpack.c.h.b16 %v2183
    %v2196 = vunpack.c.h.b16 %v2184
    %v2197 = vunpack.c.h.b16 %v2185
    %v2198 = vpack.c.b16 %v2191, %v2190
    %v2199 = vpack.c.b16 %v2193, %v2192
    %v2200 = vpack.c.b16 %v2195, %v2194
    %v2201 = vpack.c.b16 %v2197, %v2196
    %2206 = vst [vmem:[#allocation2 + $0x10] sm:$0xff] %v2198
    %2207 = vst [vmem:[#allocation2 + $0x18] sm:$0xff] %v2199
    %2208 = vst [vmem:[#allocation2 + $0x20] sm:$0xff] %v2200
    %2209 = vst [vmem:[#allocation2 + $0x28] sm:$0xff] %v2201
    %2210 = vrot.lane.b32.xlu0 %v2134, 16
    %v2211 = vpop.permute.xlu0 %2210
    %2212 = vrot.lane.b32.xlu0 %v2138, 16
    %v2213 = vpop.permute.xlu0 %2212
    %2214 = vrot.lane.b32.xlu0 %v2135, 16
    %v2215 = vpop.permute.xlu0 %2214
    %2216 = vrot.lane.b32.xlu0 %v2139, 16
    %v2217 = vpop.permute.xlu0 %2216
    %2218 = vrot.lane.b32.xlu0 %v2136, 16
    %v2219 = vpop.permute.xlu0 %2218
    %2220 = vrot.lane.b32.xlu0 %v2140, 16
    %v2221 = vpop.permute.xlu0 %2220
    %2222 = vrot.lane.b32.xlu0 %v2137, 16
    %v2223 = vpop.permute.xlu0 %2222
    %2224 = vrot.lane.b32.xlu0 %v2141, 16
    %v2225 = vpop.permute.xlu0 %2224
    %v2226 = vsel %vm173, %v2219, %v2223
    %v2227 = vsel %vm173, %v2221, %v2225
    %v2228 = vsel %vm173, %v2215, %v2219
    %v2229 = vsel %vm173, %v2217, %v2221
    %v2230 = vsel %vm173, %v2211, %v2215
    %v2231 = vsel %vm173, %v2213, %v2217
    %v2232 = vsel %vm173, %v2223, %v2211
    %v2233 = vsel %vm173, %v2225, %v2213
    %v2234 = vld [vmem:[%s178] sm:$0xff]
    %v2235 = vld [vmem:[%s178 + $0x8] sm:$0xff]
    %v2236 = vld [vmem:[%s178 + $0x10] sm:$0xff]
    %v2237 = vld [vmem:[%s178 + $0x18] sm:$0xff]
    %v2238 = vld [vmem:[%s178 + $0x20] sm:$0xff]
    %v2239 = vld [vmem:[%s178 + $0x28] sm:$0xff]
    %v2240 = vld [vmem:[%s178 + $0x30] sm:$0xff]
    %v2241 = vld [vmem:[%s178 + $0x38] sm:$0xff]
    %v2242 = vmul.f32 %v2232, %v2234
    %v2243 = vmul.f32 %v2230, %v2235
    %v2244 = vmul.f32 %v2228, %v2236
    %v2245 = vmul.f32 %v2226, %v2237
    %v2246 = vmul.f32 %v2233, %v2238
    %v2247 = vmul.f32 %v2231, %v2239
    %v2248 = vmul.f32 %v2229, %v2240
    %v2249 = vmul.f32 %v2227, %v2241
    %v2250 = vpack.c.bf16 %v2246, %v2242
    %v2251 = vpack.c.bf16 %v2247, %v2243
    %v2252 = vpack.c.bf16 %v2248, %v2244
    %v2253 = vpack.c.bf16 %v2249, %v2245
    %v2258 = vunpack.c.l.b16 %v2250
    %v2259 = vunpack.c.l.b16 %v2251
    %v2260 = vunpack.c.l.b16 %v2252
    %v2261 = vunpack.c.l.b16 %v2253
    %v2262 = vunpack.c.h.b16 %v2250
    %v2263 = vunpack.c.h.b16 %v2251
    %v2264 = vunpack.c.h.b16 %v2252
    %v2265 = vunpack.c.h.b16 %v2253
    %v2266 = vpack.c.b16 %v2259, %v2258
    %v2267 = vpack.c.b16 %v2261, %v2260
    %v2268 = vpack.c.b16 %v2263, %v2262
    %v2269 = vpack.c.b16 %v2265, %v2264
    %2274 = vst [vmem:[#allocation2 + $0x30] sm:$0xff] %v2266
    %2275 = vst [vmem:[#allocation2 + $0x38] sm:$0xff] %v2267
    %2276 = vst [vmem:[#allocation2 + $0x40] sm:$0xff] %v2268
    %2277 = vst [vmem:[#allocation2 + $0x48] sm:$0xff] %v2269
    %2278 = vrot.lane.b32.xlu0 %v2134, 15
    %v2279 = vpop.permute.xlu0 %2278
    %2280 = vrot.lane.b32.xlu0 %v2138, 15
    %v2281 = vpop.permute.xlu0 %2280
    %2282 = vrot.lane.b32.xlu0 %v2135, 15
    %v2283 = vpop.permute.xlu0 %2282
    %2284 = vrot.lane.b32.xlu0 %v2139, 15
    %v2285 = vpop.permute.xlu0 %2284
    %2286 = vrot.lane.b32.xlu0 %v2136, 15
    %v2287 = vpop.permute.xlu0 %2286
    %2288 = vrot.lane.b32.xlu0 %v2140, 15
    %v2289 = vpop.permute.xlu0 %2288
    %2290 = vrot.lane.b32.xlu0 %v2137, 15
    %v2291 = vpop.permute.xlu0 %2290
    %2292 = vrot.lane.b32.xlu0 %v2141, 15
    %v2293 = vpop.permute.xlu0 %2292
    %v2294 = vsel %vm213, %v2287, %v2291
    %v2295 = vsel %vm213, %v2289, %v2293
    %v2296 = vsel %vm213, %v2283, %v2287
    %v2297 = vsel %vm213, %v2285, %v2289
    %v2298 = vsel %vm213, %v2279, %v2283
    %v2299 = vsel %vm213, %v2281, %v2285
    %v2300 = vsel %vm213, %v2291, %v2279
    %v2301 = vsel %vm213, %v2293, %v2281
    %v2302 = vld [vmem:[%s218] sm:$0xff]
    %v2303 = vld [vmem:[%s218 + $0x8] sm:$0xff]
    %v2304 = vld [vmem:[%s218 + $0x10] sm:$0xff]
    %v2305 = vld [vmem:[%s218 + $0x18] sm:$0xff]
    %v2306 = vld [vmem:[%s218 + $0x20] sm:$0xff]
    %v2307 = vld [vmem:[%s218 + $0x28] sm:$0xff]
    %v2308 = vld [vmem:[%s218 + $0x30] sm:$0xff]
    %v2309 = vld [vmem:[%s218 + $0x38] sm:$0xff]
    %v2310 = vmul.f32 %v2300, %v2302
    %v2311 = vmul.f32 %v2298, %v2303
    %v2312 = vmul.f32 %v2296, %v2304
    %v2313 = vmul.f32 %v2294, %v2305
    %v2314 = vmul.f32 %v2301, %v2306
    %v2315 = vmul.f32 %v2299, %v2307
    %v2316 = vmul.f32 %v2297, %v2308
    %v2317 = vmul.f32 %v2295, %v2309
    %v2318 = vpack.c.bf16 %v2314, %v2310
    %v2319 = vpack.c.bf16 %v2315, %v2311
    %v2320 = vpack.c.bf16 %v2316, %v2312
    %v2321 = vpack.c.bf16 %v2317, %v2313
    %v2326 = vunpack.c.l.b16 %v2318
    %v2327 = vunpack.c.l.b16 %v2319
    %v2328 = vunpack.c.l.b16 %v2320
    %v2329 = vunpack.c.l.b16 %v2321
    %v2330 = vunpack.c.h.b16 %v2318
    %v2331 = vunpack.c.h.b16 %v2319
    %v2332 = vunpack.c.h.b16 %v2320
    %v2333 = vunpack.c.h.b16 %v2321
    %v2334 = vpack.c.b16 %v2327, %v2326
    %v2335 = vpack.c.b16 %v2329, %v2328
    %v2336 = vpack.c.b16 %v2331, %v2330
    %v2337 = vpack.c.b16 %v2333, %v2332
    %2342 = vst [vmem:[#allocation2 + $0x50] sm:$0xff] %v2334
    %2343 = vst [vmem:[#allocation2 + $0x58] sm:$0xff] %v2335
    %2344 = vst [vmem:[#allocation2 + $0x60] sm:$0xff] %v2336
    %2345 = vst [vmem:[#allocation2 + $0x68] sm:$0xff] %v2337
    %2346 = vrot.lane.b32.xlu0 %v2134, 1
    %v2347 = vpop.permute.xlu0 %2346
    %2348 = vrot.lane.b32.xlu0 %v2138, 1
    %v2349 = vpop.permute.xlu0 %2348
    %2350 = vrot.lane.b32.xlu0 %v2135, 1
    %v2351 = vpop.permute.xlu0 %2350
    %2352 = vrot.lane.b32.xlu0 %v2139, 1
    %v2353 = vpop.permute.xlu0 %2352
    %2354 = vrot.lane.b32.xlu0 %v2136, 1
    %v2355 = vpop.permute.xlu0 %2354
    %2356 = vrot.lane.b32.xlu0 %v2140, 1
    %v2357 = vpop.permute.xlu0 %2356
    %2358 = vrot.lane.b32.xlu0 %v2137, 1
    %v2359 = vpop.permute.xlu0 %2358
    %2360 = vrot.lane.b32.xlu0 %v2141, 1
    %v2361 = vpop.permute.xlu0 %2360
    %v2362 = vsel %vm253, %v2355, %v2359
    %v2363 = vsel %vm253, %v2357, %v2361
    %v2364 = vsel %vm253, %v2351, %v2355
    %v2365 = vsel %vm253, %v2353, %v2357
    %v2366 = vsel %vm253, %v2347, %v2351
    %v2367 = vsel %vm253, %v2349, %v2353
    %v2368 = vsel %vm253, %v2359, %v2347
    %v2369 = vsel %vm253, %v2361, %v2349
    %v2370 = vld [vmem:[%s258] sm:$0xff]
    %v2371 = vld [vmem:[%s258 + $0x8] sm:$0xff]
    %v2372 = vld [vmem:[%s258 + $0x10] sm:$0xff]
    %v2373 = vld [vmem:[%s258 + $0x18] sm:$0xff]
    %v2374 = vld [vmem:[%s258 + $0x20] sm:$0xff]
    %v2375 = vld [vmem:[%s258 + $0x28] sm:$0xff]
    %v2376 = vld [vmem:[%s258 + $0x30] sm:$0xff]
    %v2377 = vld [vmem:[%s258 + $0x38] sm:$0xff]
    %v2378 = vmul.f32 %v2368, %v2370
    %v2379 = vmul.f32 %v2366, %v2371
    %v2380 = vmul.f32 %v2364, %v2372
    %v2381 = vmul.f32 %v2362, %v2373
    %v2382 = vmul.f32 %v2369, %v2374
    %v2383 = vmul.f32 %v2367, %v2375
    %v2384 = vmul.f32 %v2365, %v2376
    %v2385 = vmul.f32 %v2363, %v2377
    %v2386 = vpack.c.bf16 %v2382, %v2378
    %v2387 = vpack.c.bf16 %v2383, %v2379
    %v2388 = vpack.c.bf16 %v2384, %v2380
    %v2389 = vpack.c.bf16 %v2385, %v2381
    %v2394 = vunpack.c.l.b16 %v2386
    %v2395 = vunpack.c.l.b16 %v2387
    %v2396 = vunpack.c.l.b16 %v2388
    %v2397 = vunpack.c.l.b16 %v2389
    %v2398 = vunpack.c.h.b16 %v2386
    %v2399 = vunpack.c.h.b16 %v2387
    %v2400 = vunpack.c.h.b16 %v2388
    %v2401 = vunpack.c.h.b16 %v2389
    %v2402 = vpack.c.b16 %v2395, %v2394
    %v2403 = vpack.c.b16 %v2397, %v2396
    %v2404 = vpack.c.b16 %v2399, %v2398
    %v2405 = vpack.c.b16 %v2401, %v2400
    %2410 = vst [vmem:[#allocation2 + $0x70] sm:$0xff] %v2402
    %2411 = vst [vmem:[#allocation2 + $0x78] sm:$0xff] %v2403
    %2412 = vst [vmem:[#allocation2 + $0x80] sm:$0xff] %v2404
    %2413 = vst [vmem:[#allocation2 + $0x88] sm:$0xff] %v2405
    %v2414 = vpack.c.bf16 %v2138, %v2134
    %v2415 = vpack.c.bf16 %v2139, %v2135
    %v2416 = vpack.c.bf16 %v2140, %v2136
    %v2417 = vpack.c.bf16 %v2141, %v2137
    %v2422 = vunpack.c.l.b16 %v2414
    %v2423 = vunpack.c.l.b16 %v2415
    %v2424 = vunpack.c.l.b16 %v2416
    %v2425 = vunpack.c.l.b16 %v2417
    %v2426 = vunpack.c.h.b16 %v2414
    %v2427 = vunpack.c.h.b16 %v2415
    %v2428 = vunpack.c.h.b16 %v2416
    %v2429 = vunpack.c.h.b16 %v2417
    %v2430 = vpack.c.b16 %v2423, %v2422
    %v2431 = vpack.c.b16 %v2425, %v2424
    %v2432 = vpack.c.b16 %v2427, %v2426
    %v2433 = vpack.c.b16 %v2429, %v2428
    %2438 = vst [vmem:[#allocation2 + $0x90] sm:$0xff] %v2430
    %2439 = vst [vmem:[#allocation2 + $0x98] sm:$0xff] %v2431
    %2440 = vst [vmem:[#allocation2 + $0xa0] sm:$0xff] %v2432
    %2441 = vst [vmem:[#allocation2 + $0xa8] sm:$0xff] %v2433
    %2442 = vrot.lane.b32.xlu0 %v2134, 127
    %v2443 = vpop.permute.xlu0 %2442
    %2444 = vrot.lane.b32.xlu0 %v2138, 127
    %v2445 = vpop.permute.xlu0 %2444
    %2446 = vrot.lane.b32.xlu0 %v2135, 127
    %v2447 = vpop.permute.xlu0 %2446
    %2448 = vrot.lane.b32.xlu0 %v2139, 127
    %v2449 = vpop.permute.xlu0 %2448
    %2450 = vrot.lane.b32.xlu0 %v2136, 127
    %v2451 = vpop.permute.xlu0 %2450
    %2452 = vrot.lane.b32.xlu0 %v2140, 127
    %v2453 = vpop.permute.xlu0 %2452
    %2454 = vrot.lane.b32.xlu0 %v2137, 127
    %v2455 = vpop.permute.xlu0 %2454
    %2456 = vrot.lane.b32.xlu0 %v2141, 127
    %v2457 = vpop.permute.xlu0 %2456
    %v2458 = vsel %vm311, %v2451, %v2455
    %v2459 = vsel %vm311, %v2453, %v2457
    %v2460 = vsel %vm311, %v2447, %v2451
    %v2461 = vsel %vm311, %v2449, %v2453
    %v2462 = vsel %vm311, %v2443, %v2447
    %v2463 = vsel %vm311, %v2445, %v2449
    %v2464 = vsel %vm311, %v2455, %v2443
    %v2465 = vsel %vm311, %v2457, %v2445
    %v2466 = vld [vmem:[%s316] sm:$0xff]
    %v2467 = vld [vmem:[%s316 + $0x8] sm:$0xff]
    %v2468 = vld [vmem:[%s316 + $0x10] sm:$0xff]
    %v2469 = vld [vmem:[%s316 + $0x18] sm:$0xff]
    %v2470 = vld [vmem:[%s316 + $0x20] sm:$0xff]
    %v2471 = vld [vmem:[%s316 + $0x28] sm:$0xff]
    %v2472 = vld [vmem:[%s316 + $0x30] sm:$0xff]
    %v2473 = vld [vmem:[%s316 + $0x38] sm:$0xff]
    %v2474 = vmul.f32 %v2462, %v2466
    %v2475 = vmul.f32 %v2460, %v2467
    %v2476 = vmul.f32 %v2458, %v2468
    %v2477 = vmul.f32 %v2464, %v2469
    %v2478 = vmul.f32 %v2463, %v2470
    %v2479 = vmul.f32 %v2461, %v2471
    %v2480 = vmul.f32 %v2459, %v2472
    %v2481 = vmul.f32 %v2465, %v2473
    %v2482 = vpack.c.bf16 %v2478, %v2474
    %v2483 = vpack.c.bf16 %v2479, %v2475
    %v2484 = vpack.c.bf16 %v2480, %v2476
    %v2485 = vpack.c.bf16 %v2481, %v2477
    %v2490 = vunpack.c.l.b16 %v2482
    %v2491 = vunpack.c.l.b16 %v2483
    %v2492 = vunpack.c.l.b16 %v2484
    %v2493 = vunpack.c.l.b16 %v2485
    %v2494 = vunpack.c.h.b16 %v2482
    %v2495 = vunpack.c.h.b16 %v2483
    %v2496 = vunpack.c.h.b16 %v2484
    %v2497 = vunpack.c.h.b16 %v2485
    %v2498 = vpack.c.b16 %v2491, %v2490
    %v2499 = vpack.c.b16 %v2493, %v2492
    %v2500 = vpack.c.b16 %v2495, %v2494
    %v2501 = vpack.c.b16 %v2497, %v2496
    %2506 = vst [vmem:[#allocation2 + $0xb0] sm:$0xff] %v2498
    %2507 = vst [vmem:[#allocation2 + $0xb8] sm:$0xff] %v2499
    %2508 = vst [vmem:[#allocation2 + $0xc0] sm:$0xff] %v2500
    %2509 = vst [vmem:[#allocation2 + $0xc8] sm:$0xff] %v2501
    %2510 = vrot.lane.b32.xlu0 %v2134, 113
    %v2511 = vpop.permute.xlu0 %2510
    %2512 = vrot.lane.b32.xlu0 %v2138, 113
    %v2513 = vpop.permute.xlu0 %2512
    %2514 = vrot.lane.b32.xlu0 %v2135, 113
    %v2515 = vpop.permute.xlu0 %2514
    %2516 = vrot.lane.b32.xlu0 %v2139, 113
    %v2517 = vpop.permute.xlu0 %2516
    %2518 = vrot.lane.b32.xlu0 %v2136, 113
    %v2519 = vpop.permute.xlu0 %2518
    %2520 = vrot.lane.b32.xlu0 %v2140, 113
    %v2521 = vpop.permute.xlu0 %2520
    %2522 = vrot.lane.b32.xlu0 %v2137, 113
    %v2523 = vpop.permute.xlu0 %2522
    %2524 = vrot.lane.b32.xlu0 %v2141, 113
    %v2525 = vpop.permute.xlu0 %2524
    %v2526 = vsel %vm351, %v2519, %v2523
    %v2527 = vsel %vm351, %v2521, %v2525
    %v2528 = vsel %vm351, %v2515, %v2519
    %v2529 = vsel %vm351, %v2517, %v2521
    %v2530 = vsel %vm351, %v2511, %v2515
    %v2531 = vsel %vm351, %v2513, %v2517
    %v2532 = vsel %vm351, %v2523, %v2511
    %v2533 = vsel %vm351, %v2525, %v2513
    %v2534 = vld [vmem:[%s356] sm:$0xff]
    %v2535 = vld [vmem:[%s356 + $0x8] sm:$0xff]
    %v2536 = vld [vmem:[%s356 + $0x10] sm:$0xff]
    %v2537 = vld [vmem:[%s356 + $0x18] sm:$0xff]
    %v2538 = vld [vmem:[%s356 + $0x20] sm:$0xff]
    %v2539 = vld [vmem:[%s356 + $0x28] sm:$0xff]
    %v2540 = vld [vmem:[%s356 + $0x30] sm:$0xff]
    %v2541 = vld [vmem:[%s356 + $0x38] sm:$0xff]
    %v2542 = vmul.f32 %v2530, %v2534
    %v2543 = vmul.f32 %v2528, %v2535
    %v2544 = vmul.f32 %v2526, %v2536
    %v2545 = vmul.f32 %v2532, %v2537
    %v2546 = vmul.f32 %v2531, %v2538
    %v2547 = vmul.f32 %v2529, %v2539
    %v2548 = vmul.f32 %v2527, %v2540
    %v2549 = vmul.f32 %v2533, %v2541
    %v2550 = vpack.c.bf16 %v2546, %v2542
    %v2551 = vpack.c.bf16 %v2547, %v2543
    %v2552 = vpack.c.bf16 %v2548, %v2544
    %v2553 = vpack.c.bf16 %v2549, %v2545
    %v2558 = vunpack.c.l.b16 %v2550
    %v2559 = vunpack.c.l.b16 %v2551
    %v2560 = vunpack.c.l.b16 %v2552
    %v2561 = vunpack.c.l.b16 %v2553
    %v2562 = vunpack.c.h.b16 %v2550
    %v2563 = vunpack.c.h.b16 %v2551
    %v2564 = vunpack.c.h.b16 %v2552
    %v2565 = vunpack.c.h.b16 %v2553
    %v2566 = vpack.c.b16 %v2559, %v2558
    %v2567 = vpack.c.b16 %v2561, %v2560
    %v2568 = vpack.c.b16 %v2563, %v2562
    %v2569 = vpack.c.b16 %v2565, %v2564
    %2574 = vst [vmem:[#allocation2 + $0xd0] sm:$0xff] %v2566
    %2575 = vst [vmem:[#allocation2 + $0xd8] sm:$0xff] %v2567
    %2576 = vst [vmem:[#allocation2 + $0xe0] sm:$0xff] %v2568
    %2577 = vst [vmem:[#allocation2 + $0xe8] sm:$0xff] %v2569
    %2578 = vrot.lane.b32.xlu0 %v2134, 112
    %v2579 = vpop.permute.xlu0 %2578
    %2580 = vrot.lane.b32.xlu0 %v2138, 112
    %v2581 = vpop.permute.xlu0 %2580
    %2582 = vrot.lane.b32.xlu0 %v2135, 112
    %v2583 = vpop.permute.xlu0 %2582
    %2584 = vrot.lane.b32.xlu0 %v2139, 112
    %v2585 = vpop.permute.xlu0 %2584
    %2586 = vrot.lane.b32.xlu0 %v2136, 112
    %v2587 = vpop.permute.xlu0 %2586
    %2588 = vrot.lane.b32.xlu0 %v2140, 112
    %v2589 = vpop.permute.xlu0 %2588
    %2590 = vrot.lane.b32.xlu0 %v2137, 112
    %v2591 = vpop.permute.xlu0 %2590
    %2592 = vrot.lane.b32.xlu0 %v2141, 112
    %v2593 = vpop.permute.xlu0 %2592
    %v2594 = vsel %vm391, %v2587, %v2591
    %v2595 = vsel %vm391, %v2589, %v2593
    %v2596 = vsel %vm391, %v2583, %v2587
    %v2597 = vsel %vm391, %v2585, %v2589
    %v2598 = vsel %vm391, %v2579, %v2583
    %v2599 = vsel %vm391, %v2581, %v2585
    %v2600 = vsel %vm391, %v2591, %v2579
    %v2601 = vsel %vm391, %v2593, %v2581
    %v2602 = vld [vmem:[%s396] sm:$0xff]
    %v2603 = vld [vmem:[%s396 + $0x8] sm:$0xff]
    %v2604 = vld [vmem:[%s396 + $0x10] sm:$0xff]
    %v2605 = vld [vmem:[%s396 + $0x18] sm:$0xff]
    %v2606 = vld [vmem:[%s396 + $0x20] sm:$0xff]
    %v2607 = vld [vmem:[%s396 + $0x28] sm:$0xff]
    %v2608 = vld [vmem:[%s396 + $0x30] sm:$0xff]
    %v2609 = vld [vmem:[%s396 + $0x38] sm:$0xff]
    %v2610 = vmul.f32 %v2598, %v2602
    %v2611 = vmul.f32 %v2596, %v2603
    %v2612 = vmul.f32 %v2594, %v2604
    %v2613 = vmul.f32 %v2600, %v2605
    %v2614 = vmul.f32 %v2599, %v2606
    %v2615 = vmul.f32 %v2597, %v2607
    %v2616 = vmul.f32 %v2595, %v2608
    %v2617 = vmul.f32 %v2601, %v2609
    %v2618 = vpack.c.bf16 %v2614, %v2610
    %v2619 = vpack.c.bf16 %v2615, %v2611
    %v2620 = vpack.c.bf16 %v2616, %v2612
    %v2621 = vpack.c.bf16 %v2617, %v2613
    %v2626 = vunpack.c.l.b16 %v2618
    %v2627 = vunpack.c.l.b16 %v2619
    %v2628 = vunpack.c.l.b16 %v2620
    %v2629 = vunpack.c.l.b16 %v2621
    %v2630 = vunpack.c.h.b16 %v2618
    %v2631 = vunpack.c.h.b16 %v2619
    %v2632 = vunpack.c.h.b16 %v2620
    %v2633 = vunpack.c.h.b16 %v2621
    %v2634 = vpack.c.b16 %v2627, %v2626
    %v2635 = vpack.c.b16 %v2629, %v2628
    %v2636 = vpack.c.b16 %v2631, %v2630
    %v2637 = vpack.c.b16 %v2633, %v2632
    %2642 = vst [vmem:[#allocation2 + $0xf0] sm:$0xff] %v2634
    %2643 = vst [vmem:[#allocation2 + $0xf8] sm:$0xff] %v2635
    %2644 = vst [vmem:[#allocation2 + $0x100] sm:$0xff] %v2636
    %2645 = vst [vmem:[#allocation2 + $0x108] sm:$0xff] %v2637
    %2646 = vrot.lane.b32.xlu0 %v2134, 111
    %v2647 = vpop.permute.xlu0 %2646
    %2648 = vrot.lane.b32.xlu0 %v2138, 111
    %v2649 = vpop.permute.xlu0 %2648
    %2650 = vrot.lane.b32.xlu0 %v2135, 111
    %v2651 = vpop.permute.xlu0 %2650
    %2652 = vrot.lane.b32.xlu0 %v2139, 111
    %v2653 = vpop.permute.xlu0 %2652
    %2654 = vrot.lane.b32.xlu0 %v2136, 111
    %v2655 = vpop.permute.xlu0 %2654
    %2656 = vrot.lane.b32.xlu0 %v2140, 111
    %v2657 = vpop.permute.xlu0 %2656
    %2658 = vrot.lane.b32.xlu0 %v2137, 111
    %v2659 = vpop.permute.xlu0 %2658
    %2660 = vrot.lane.b32.xlu0 %v2141, 111
    %v2661 = vpop.permute.xlu0 %2660
    %v2662 = vsel %vm431, %v2655, %v2659
    %v2663 = vsel %vm431, %v2657, %v2661
    %v2664 = vsel %vm431, %v2651, %v2655
    %v2665 = vsel %vm431, %v2653, %v2657
    %v2666 = vsel %vm431, %v2647, %v2651
    %v2667 = vsel %vm431, %v2649, %v2653
    %v2668 = vsel %vm431, %v2659, %v2647
    %v2669 = vsel %vm431, %v2661, %v2649
    %v2670 = vld [vmem:[%s436] sm:$0xff]
    %v2671 = vld [vmem:[%s436 + $0x8] sm:$0xff]
    %v2672 = vld [vmem:[%s436 + $0x10] sm:$0xff]
    %v2673 = vld [vmem:[%s436 + $0x18] sm:$0xff]
    %v2674 = vld [vmem:[%s436 + $0x20] sm:$0xff]
    %v2675 = vld [vmem:[%s436 + $0x28] sm:$0xff]
    %v2676 = vld [vmem:[%s436 + $0x30] sm:$0xff]
    %v2677 = vld [vmem:[%s436 + $0x38] sm:$0xff]
    %v2678 = vmul.f32 %v2666, %v2670
    %v2679 = vmul.f32 %v2664, %v2671
    %v2680 = vmul.f32 %v2662, %v2672
    %v2681 = vmul.f32 %v2668, %v2673
    %v2682 = vmul.f32 %v2667, %v2674
    %v2683 = vmul.f32 %v2665, %v2675
    %v2684 = vmul.f32 %v2663, %v2676
    %v2685 = vmul.f32 %v2669, %v2677
    %v2686 = vpack.c.bf16 %v2682, %v2678
    %v2687 = vpack.c.bf16 %v2683, %v2679
    %v2688 = vpack.c.bf16 %v2684, %v2680
    %v2689 = vpack.c.bf16 %v2685, %v2681
    %v2694 = vunpack.c.l.b16 %v2686
    %v2695 = vunpack.c.l.b16 %v2687
    %v2696 = vunpack.c.l.b16 %v2688
    %v2697 = vunpack.c.l.b16 %v2689
    %v2698 = vunpack.c.h.b16 %v2686
    %v2699 = vunpack.c.h.b16 %v2687
    %v2700 = vunpack.c.h.b16 %v2688
    %v2701 = vunpack.c.h.b16 %v2689
    %v2702 = vpack.c.b16 %v2695, %v2694
    %v2703 = vpack.c.b16 %v2697, %v2696
    %v2704 = vpack.c.b16 %v2699, %v2698
    %v2705 = vpack.c.b16 %v2701, %v2700
    %2710 = vst [vmem:[#allocation2 + $0x110] sm:$0xff] %v2702
    %2711 = vst [vmem:[#allocation2 + $0x118] sm:$0xff] %v2703
    %2712 = vst [vmem:[#allocation2 + $0x120] sm:$0xff] %v2704
    %2713 = vst [vmem:[#allocation2 + $0x128] sm:$0xff] %v2705
    %v2714 = vld [vmem:[%s5] sm:$0xff]
    %v2715 = vld [vmem:[#allocation2] sm:$0xff]
    %v2716 = vld [vmem:[#allocation2 + $0x8] sm:$0xff]
    %v2717 = vld [vmem:[#allocation2 + $0x10] sm:$0xff]
    %v2718 = vld [vmem:[#allocation2 + $0x18] sm:$0xff]
    %v2719 = vld [vmem:[#allocation2 + $0x20] sm:$0xff]
    %v2720 = vld [vmem:[#allocation2 + $0x28] sm:$0xff]
    %v2721 = vld [vmem:[#allocation2 + $0x30] sm:$0xff]
    %v2722 = vld [vmem:[#allocation2 + $0x38] sm:$0xff]
    %v2723 = vld [vmem:[#allocation2 + $0x40] sm:$0xff]
    %v2724 = vld [vmem:[#allocation2 + $0x48] sm:$0xff]
    %v2725 = vld [vmem:[#allocation2 + $0x50] sm:$0xff]
    %v2726 = vld [vmem:[#allocation2 + $0x58] sm:$0xff]
    %v2727 = vld [vmem:[#allocation2 + $0x60] sm:$0xff]
    %v2728 = vld [vmem:[#allocation2 + $0x68] sm:$0xff]
    %v2729 = vld [vmem:[#allocation2 + $0x70] sm:$0xff]
    %v2730 = vld [vmem:[#allocation2 + $0x78] sm:$0xff]
    %v2731 = vld [vmem:[#allocation2 + $0x80] sm:$0xff]
    %v2732 = vld [vmem:[#allocation2 + $0x88] sm:$0xff]
    %v2733 = vld [vmem:[#allocation2 + $0x90] sm:$0xff]
    %v2734 = vld [vmem:[#allocation2 + $0x98] sm:$0xff]
    %v2735 = vld [vmem:[#allocation2 + $0xa0] sm:$0xff]
    %v2736 = vld [vmem:[#allocation2 + $0xa8] sm:$0xff]
    %v2737 = vld [vmem:[#allocation2 + $0xb0] sm:$0xff]
    %v2738 = vld [vmem:[#allocation2 + $0xb8] sm:$0xff]
    %v2739 = vld [vmem:[#allocation2 + $0xc0] sm:$0xff]
    %v2740 = vld [vmem:[#allocation2 + $0xc8] sm:$0xff]
    %v2741 = vld [vmem:[#allocation2 + $0xd0] sm:$0xff]
    %v2742 = vld [vmem:[#allocation2 + $0xd8] sm:$0xff]
    %v2743 = vld [vmem:[#allocation2 + $0xe0] sm:$0xff]
    %v2744 = vld [vmem:[#allocation2 + $0xe8] sm:$0xff]
    %v2745 = vld [vmem:[#allocation2 + $0xf0] sm:$0xff]
    %v2746 = vld [vmem:[#allocation2 + $0xf8] sm:$0xff]
    %v2747 = vld [vmem:[#allocation2 + $0x100] sm:$0xff]
    %v2748 = vld [vmem:[#allocation2 + $0x108] sm:$0xff]
    %v2749 = vld [vmem:[#allocation2 + $0x110] sm:$0xff]
    %v2750 = vld [vmem:[#allocation2 + $0x118] sm:$0xff]
    %v2751 = vld [vmem:[#allocation2 + $0x120] sm:$0xff]
    %v2752 = vld [vmem:[#allocation2 + $0x128] sm:$0xff]
    %v2754 = vunpack.c.l.b16 %v2714
    %v2755 = vunpack.c.h.b16 %v2714
    %v2756 = vpack.c.b16 %v2754, %v2754
    %v2757 = vpack.c.b16 %v2755, %v2755
    %v2797 = vunpack.c.l.b16 %v2715
    %v2798 = vunpack.c.h.b16 %v2715
    %v2799 = vunpack.c.l.b16 %v2716
    %v2800 = vunpack.c.h.b16 %v2716
    %v2801 = vunpack.c.l.b16 %v2717
    %v2802 = vunpack.c.h.b16 %v2717
    %v2803 = vunpack.c.l.b16 %v2718
    %v2804 = vunpack.c.h.b16 %v2718
    %v2805 = vunpack.c.l.b16 %v2719
    %v2806 = vunpack.c.h.b16 %v2719
    %v2807 = vunpack.c.l.b16 %v2720
    %v2808 = vunpack.c.h.b16 %v2720
    %v2809 = vunpack.c.l.b16 %v2721
    %v2810 = vunpack.c.h.b16 %v2721
    %v2811 = vunpack.c.l.b16 %v2722
    %v2812 = vunpack.c.h.b16 %v2722
    %v2813 = vunpack.c.l.b16 %v2723
    %v2814 = vunpack.c.h.b16 %v2723
    %v2815 = vunpack.c.l.b16 %v2724
    %v2816 = vunpack.c.h.b16 %v2724
    %v2817 = vunpack.c.l.b16 %v2725
    %v2818 = vunpack.c.h.b16 %v2725
    %v2819 = vunpack.c.l.b16 %v2726
    %v2820 = vunpack.c.h.b16 %v2726
    %v2821 = vunpack.c.l.b16 %v2727
    %v2822 = vunpack.c.h.b16 %v2727
    %v2823 = vunpack.c.l.b16 %v2728
    %v2824 = vunpack.c.h.b16 %v2728
    %v2825 = vunpack.c.l.b16 %v2729
    %v2826 = vunpack.c.h.b16 %v2729
    %v2827 = vunpack.c.l.b16 %v2730
    %v2828 = vunpack.c.h.b16 %v2730
    %v2829 = vunpack.c.l.b16 %v2731
    %v2830 = vunpack.c.h.b16 %v2731
    %v2831 = vunpack.c.l.b16 %v2732
    %v2832 = vunpack.c.h.b16 %v2732
    %v2833 = vunpack.c.l.b16 %v2733
    %v2834 = vunpack.c.h.b16 %v2733
    %v2835 = vunpack.c.l.b16 %v2734
    %v2836 = vunpack.c.h.b16 %v2734
    %v2837 = vunpack.c.l.b16 %v2735
    %v2838 = vunpack.c.h.b16 %v2735
    %v2839 = vunpack.c.l.b16 %v2736
    %v2840 = vunpack.c.h.b16 %v2736
    %v2841 = vunpack.c.l.b16 %v2737
    %v2842 = vunpack.c.h.b16 %v2737
    %v2843 = vunpack.c.l.b16 %v2738
    %v2844 = vunpack.c.h.b16 %v2738
    %v2845 = vunpack.c.l.b16 %v2739
    %v2846 = vunpack.c.h.b16 %v2739
    %v2847 = vunpack.c.l.b16 %v2740
    %v2848 = vunpack.c.h.b16 %v2740
    %v2849 = vunpack.c.l.b16 %v2741
    %v2850 = vunpack.c.h.b16 %v2741
    %v2851 = vunpack.c.l.b16 %v2742
    %v2852 = vunpack.c.h.b16 %v2742
    %v2853 = vunpack.c.l.b16 %v2743
    %v2854 = vunpack.c.h.b16 %v2743
    %v2855 = vunpack.c.l.b16 %v2744
    %v2856 = vunpack.c.h.b16 %v2744
    %v2857 = vunpack.c.l.b16 %v2745
    %v2858 = vunpack.c.h.b16 %v2745
    %v2859 = vunpack.c.l.b16 %v2746
    %v2860 = vunpack.c.h.b16 %v2746
    %v2861 = vunpack.c.l.b16 %v2747
    %v2862 = vunpack.c.h.b16 %v2747
    %v2863 = vunpack.c.l.b16 %v2748
    %v2864 = vunpack.c.h.b16 %v2748
    %v2865 = vunpack.c.l.b16 %v2749
    %v2866 = vunpack.c.h.b16 %v2749
    %v2867 = vunpack.c.l.b16 %v2750
    %v2868 = vunpack.c.h.b16 %v2750
    %v2869 = vunpack.c.l.b16 %v2751
    %v2870 = vunpack.c.h.b16 %v2751
    %v2871 = vunpack.c.l.b16 %v2752
    %v2872 = vunpack.c.h.b16 %v2752
    %v2873 = vpack.c.b16 %v2801, %v2797
    %v2874 = vpack.c.b16 %v2802, %v2798
    %v2875 = vpack.c.b16 %v2803, %v2799
    %v2876 = vpack.c.b16 %v2804, %v2800
    %v2877 = vpack.c.b16 %v2809, %v2805
    %v2878 = vpack.c.b16 %v2810, %v2806
    %v2879 = vpack.c.b16 %v2811, %v2807
    %v2880 = vpack.c.b16 %v2812, %v2808
    %v2881 = vpack.c.b16 %v2817, %v2813
    %v2882 = vpack.c.b16 %v2818, %v2814
    %v2883 = vpack.c.b16 %v2819, %v2815
    %v2884 = vpack.c.b16 %v2820, %v2816
    %v2885 = vpack.c.b16 %v2825, %v2821
    %v2886 = vpack.c.b16 %v2826, %v2822
    %v2887 = vpack.c.b16 %v2827, %v2823
    %v2888 = vpack.c.b16 %v2828, %v2824
    %v2889 = vpack.c.b16 %v2833, %v2829
    %v2890 = vpack.c.b16 %v2834, %v2830
    %v2891 = vpack.c.b16 %v2835, %v2831
    %v2892 = vpack.c.b16 %v2836, %v2832
    %v2893 = vpack.c.b16 %v2841, %v2837
    %v2894 = vpack.c.b16 %v2842, %v2838
    %v2895 = vpack.c.b16 %v2843, %v2839
    %v2896 = vpack.c.b16 %v2844, %v2840
    %v2897 = vpack.c.b16 %v2849, %v2845
    %v2898 = vpack.c.b16 %v2850, %v2846
    %v2899 = vpack.c.b16 %v2851, %v2847
    %v2900 = vpack.c.b16 %v2852, %v2848
    %v2901 = vpack.c.b16 %v2857, %v2853
    %v2902 = vpack.c.b16 %v2858, %v2854
    %v2903 = vpack.c.b16 %v2859, %v2855
    %v2904 = vpack.c.b16 %v2860, %v2856
    %v2905 = vpack.c.b16 %v2865, %v2861
    %v2906 = vpack.c.b16 %v2866, %v2862
    %v2907 = vpack.c.b16 %v2867, %v2863
    %v2908 = vpack.c.b16 %v2868, %v2864
    %v2909 = vpack.c.b16 %v2869, %v2869
    %v2910 = vpack.c.b16 %v2870, %v2870
    %v2911 = vpack.c.b16 %v2871, %v2871
    %v2912 = vpack.c.b16 %v2872, %v2872
    %v2950 = vsel %vm2031, %v2757, 0
    %v2953 = vsel %vm2035, %v2909, 0
    %v2956 = vsel %vm2035, %v2910, 0
    %v2959 = vsel %vm2035, %v2911, 0
    %v2962 = vsel %vm2035, %v2912, 0
    %2964 = vmatprep.subr.bf16.mxu0 %v2902
    %2965 = vmatpush1.bf16.msra.mxu0 %v2901
    %2966 = vmatprep.subr.bf16.mxu0 %v2898
    %2967 = vmatpush1.bf16.msra.mxu0 %v2897
    %2968 = vmatprep.subr.bf16.mxu0 %v2894
    %2969 = vmatpush1.bf16.msra.mxu0 %v2893
    %2970 = vmatprep.subr.bf16.mxu0 %v2890
    %2971 = vmatpush1.bf16.msra.mxu0 %v2889
    %2972 = vmatprep.subr.bf16.mxu0 %v2886
    %2973 = vmatpush1.bf16.msra.mxu0 %v2885
    %2974 = vmatprep.subr.bf16.mxu0 %v2882
    %2975 = vmatpush1.bf16.msra.mxu0 %v2881
    %2976 = vmatprep.subr.bf16.mxu0 %v2878
    %2977 = vmatpush1.bf16.msra.mxu0 %v2877
    %2978 = vmatprep.subr.bf16.mxu0 %v2874
    %2979 = vmatpush1.bf16.msra.mxu0 %v2873
    %2980 = vmatprep.subr.bf16.mxu0 0
    %2981 = vmatpush2.bf16.msra.mxu0 0
    %2982 = vmatprep.subr.bf16.mxu0 0
    %2983 = vmatpush2.bf16.msra.mxu0 0
    %2984 = vmatprep.subr.bf16.mxu0 0
    %2985 = vmatpush2.bf16.msra.mxu0 0
    %2986 = vmatprep.subr.bf16.mxu0 0
    %2987 = vmatpush2.bf16.msra.mxu0 0
    %2988 = vmatprep.subr.bf16.mxu0 0
    %2989 = vmatpush2.bf16.msra.mxu0 0
    %2990 = vmatprep.subr.bf16.mxu0 0
    %2991 = vmatpush2.bf16.msra.mxu0 0
    %2992 = vmatprep.subr.bf16.mxu0 %v2956
    %2993 = vmatpush2.bf16.msra.mxu0 %v2953
    %2994 = vmatprep.subr.bf16.mxu0 %v2906
    %2995 = vmatpush2.bf16.msra.mxu0 %v2905
    %2996 = vmatprep.mubr.bf16.mxu0 %v2950
    %2997 = vmatmul.mubr.bf16.gmra.mxu0 %v2756
    %v2998 = vpop.f32.mrf.mxu0
    %v2999 = vadd.f32 0.0, %v2998
    %v3000 = vpop.f32.mrf.mxu0
    %v3001 = vadd.f32 0.0, %v3000
    %v3002 = vpop.f32.mrf.mxu0
    %v3003 = vpop.f32.mrf.mxu0
    %3004 = vdwg.mxu0
    %3005 = vmatprep.subr.bf16.mxu0 %v2904
    %3006 = vmatpush1.bf16.msra.mxu0 %v2903
    %3007 = vmatprep.subr.bf16.mxu0 %v2900
    %3008 = vmatpush1.bf16.msra.mxu0 %v2899
    %3009 = vmatprep.subr.bf16.mxu0 %v2896
    %3010 = vmatpush1.bf16.msra.mxu0 %v2895
    %3011 = vmatprep.subr.bf16.mxu0 %v2892
    %3012 = vmatpush1.bf16.msra.mxu0 %v2891
    %3013 = vmatprep.subr.bf16.mxu0 %v2888
    %3014 = vmatpush1.bf16.msra.mxu0 %v2887
    %3015 = vmatprep.subr.bf16.mxu0 %v2884
    %3016 = vmatpush1.bf16.msra.mxu0 %v2883
    %3017 = vmatprep.subr.bf16.mxu0 %v2880
    %3018 = vmatpush1.bf16.msra.mxu0 %v2879
    %3019 = vmatprep.subr.bf16.mxu0 %v2876
    %3020 = vmatpush1.bf16.msra.mxu0 %v2875
    %3021 = vmatprep.subr.bf16.mxu0 0
    %3022 = vmatpush2.bf16.msra.mxu0 0
    %3023 = vmatprep.subr.bf16.mxu0 0
    %3024 = vmatpush2.bf16.msra.mxu0 0
    %3025 = vmatprep.subr.bf16.mxu0 0
    %3026 = vmatpush2.bf16.msra.mxu0 0
    %3027 = vmatprep.subr.bf16.mxu0 0
    %3028 = vmatpush2.bf16.msra.mxu0 0
    %3029 = vmatprep.subr.bf16.mxu0 0
    %3030 = vmatpush2.bf16.msra.mxu0 0
    %3031 = vmatprep.subr.bf16.mxu0 0
    %3032 = vmatpush2.bf16.msra.mxu0 0
    %3033 = vmatprep.subr.bf16.mxu0 %v2962
    %3034 = vmatpush2.bf16.msra.mxu0 %v2959
    %3035 = vmatprep.subr.bf16.mxu0 %v2908
    %3036 = vmatpush2.bf16.msra.mxu0 %v2907
    %3037 = vmatprep.mubr.bf16.mxu0 %v2950
    %3038 = vmatmul.mubr.bf16.gmra.mxu0 %v2756
    %v3039 = vpop.f32.mrf.mxu0
    %v3040 = vadd.f32 0.0, %v3039
    %v3041 = vpop.f32.mrf.mxu0
    %v3042 = vadd.f32 0.0, %v3041
    %v3043 = vpop.f32.mrf.mxu0
    %v3044 = vpop.f32.mrf.mxu0
    %3045 = vdwg.mxu0
    %v3046 = vmax.f32 %v2999, 0.0
    %v3047 = vmax.f32 %v3001, 0.0
    %v3048 = vmax.f32 %v3040, 0.0
    %v3049 = vmax.f32 %v3042, 0.0
    %3050 = vrot.lane.b32.xlu0 %v3046, 17
    %v3051 = vpop.permute.xlu0 %3050
    %3052 = vrot.lane.b32.xlu0 %v3047, 17
    %v3053 = vpop.permute.xlu0 %3052
    %3054 = vrot.lane.b32.xlu0 %v3048, 17
    %v3055 = vpop.permute.xlu0 %3054
    %3056 = vrot.lane.b32.xlu0 %v3049, 17
    %v3057 = vpop.permute.xlu0 %3056
    %v3058 = vsel %vm134, %v3055, %v3057
    %v3059 = vsel %vm134, %v3053, %v3055
    %v3060 = vsel %vm134, %v3051, %v3053
    %v3061 = vsel %vm134, %v3057, %v3051
    %v3062 = vld [vmem:[#allocation6] sm:$0xff]
    %v3063 = vld [vmem:[#allocation6 + $0x8] sm:$0xff]
    %v3064 = vld [vmem:[#allocation6 + $0x10] sm:$0xff]
    %v3065 = vld [vmem:[#allocation6 + $0x18] sm:$0xff]
    %v3066 = vmul.f32 %v3061, %v3062
    %v3067 = vmul.f32 %v3060, %v3063
    %v3068 = vmul.f32 %v3059, %v3064
    %v3069 = vmul.f32 %v3058, %v3065
    %v3070 = vpack.c.bf16 %v3066, %v3066
    %v3071 = vpack.c.bf16 %v3067, %v3067
    %v3072 = vpack.c.bf16 %v3068, %v3068
    %v3073 = vpack.c.bf16 %v3069, %v3069
    %v3078 = vunpack.c.l.b16 %v3070
    %v3079 = vunpack.c.l.b16 %v3071
    %v3080 = vunpack.c.l.b16 %v3072
    %v3081 = vunpack.c.l.b16 %v3073
    %v3082 = vpack.c.b16 %v3079, %v3078
    %v3083 = vpack.c.b16 %v3081, %v3080
    %3086 = vst [vmem:[#allocation2 + $0x10] sm:$0xff] %v3082
    %3087 = vst [vmem:[#allocation2 + $0x18] sm:$0xff] %v3083
    %3088 = vrot.lane.b32.xlu0 %v3046, 16
    %v3089 = vpop.permute.xlu0 %3088
    %3090 = vrot.lane.b32.xlu0 %v3047, 16
    %v3091 = vpop.permute.xlu0 %3090
    %3092 = vrot.lane.b32.xlu0 %v3048, 16
    %v3093 = vpop.permute.xlu0 %3092
    %3094 = vrot.lane.b32.xlu0 %v3049, 16
    %v3095 = vpop.permute.xlu0 %3094
    %v3096 = vsel %vm173, %v3093, %v3095
    %v3097 = vsel %vm173, %v3091, %v3093
    %v3098 = vsel %vm173, %v3089, %v3091
    %v3099 = vsel %vm173, %v3095, %v3089
    %v3100 = vld [vmem:[%s178] sm:$0xff]
    %v3101 = vld [vmem:[%s178 + $0x8] sm:$0xff]
    %v3102 = vld [vmem:[%s178 + $0x10] sm:$0xff]
    %v3103 = vld [vmem:[%s178 + $0x18] sm:$0xff]
    %v3104 = vmul.f32 %v3099, %v3100
    %v3105 = vmul.f32 %v3098, %v3101
    %v3106 = vmul.f32 %v3097, %v3102
    %v3107 = vmul.f32 %v3096, %v3103
    %v3108 = vpack.c.bf16 %v3104, %v3104
    %v3109 = vpack.c.bf16 %v3105, %v3105
    %v3110 = vpack.c.bf16 %v3106, %v3106
    %v3111 = vpack.c.bf16 %v3107, %v3107
    %v3116 = vunpack.c.l.b16 %v3108
    %v3117 = vunpack.c.l.b16 %v3109
    %v3118 = vunpack.c.l.b16 %v3110
    %v3119 = vunpack.c.l.b16 %v3111
    %v3120 = vpack.c.b16 %v3117, %v3116
    %v3121 = vpack.c.b16 %v3119, %v3118
    %3124 = vst [vmem:[#allocation2 + $0x20] sm:$0xff] %v3120
    %3125 = vst [vmem:[#allocation2 + $0x28] sm:$0xff] %v3121
    %3126 = vrot.lane.b32.xlu0 %v3046, 15
    %v3127 = vpop.permute.xlu0 %3126
    %3128 = vrot.lane.b32.xlu0 %v3047, 15
    %v3129 = vpop.permute.xlu0 %3128
    %3130 = vrot.lane.b32.xlu0 %v3048, 15
    %v3131 = vpop.permute.xlu0 %3130
    %3132 = vrot.lane.b32.xlu0 %v3049, 15
    %v3133 = vpop.permute.xlu0 %3132
    %v3134 = vsel %vm213, %v3131, %v3133
    %v3135 = vsel %vm213, %v3129, %v3131
    %v3136 = vsel %vm213, %v3127, %v3129
    %v3137 = vsel %vm213, %v3133, %v3127
    %v3138 = vld [vmem:[%s218] sm:$0xff]
    %v3139 = vld [vmem:[%s218 + $0x8] sm:$0xff]
    %v3140 = vld [vmem:[%s218 + $0x10] sm:$0xff]
    %v3141 = vld [vmem:[%s218 + $0x18] sm:$0xff]
    %v3142 = vmul.f32 %v3137, %v3138
    %v3143 = vmul.f32 %v3136, %v3139
    %v3144 = vmul.f32 %v3135, %v3140
    %v3145 = vmul.f32 %v3134, %v3141
    %v3146 = vpack.c.bf16 %v3142, %v3142
    %v3147 = vpack.c.bf16 %v3143, %v3143
    %v3148 = vpack.c.bf16 %v3144, %v3144
    %v3149 = vpack.c.bf16 %v3145, %v3145
    %v3154 = vunpack.c.l.b16 %v3146
    %v3155 = vunpack.c.l.b16 %v3147
    %v3156 = vunpack.c.l.b16 %v3148
    %v3157 = vunpack.c.l.b16 %v3149
    %v3158 = vpack.c.b16 %v3155, %v3154
    %v3159 = vpack.c.b16 %v3157, %v3156
    %3162 = vst [vmem:[#allocation2 + $0x30] sm:$0xff] %v3158
    %3163 = vst [vmem:[#allocation2 + $0x38] sm:$0xff] %v3159
    %3164 = vrot.lane.b32.xlu0 %v3046, 1
    %v3165 = vpop.permute.xlu0 %3164
    %3166 = vrot.lane.b32.xlu0 %v3047, 1
    %v3167 = vpop.permute.xlu0 %3166
    %3168 = vrot.lane.b32.xlu0 %v3048, 1
    %v3169 = vpop.permute.xlu0 %3168
    %3170 = vrot.lane.b32.xlu0 %v3049, 1
    %v3171 = vpop.permute.xlu0 %3170
    %v3172 = vsel %vm253, %v3169, %v3171
    %v3173 = vsel %vm253, %v3167, %v3169
    %v3174 = vsel %vm253, %v3165, %v3167
    %v3175 = vsel %vm253, %v3171, %v3165
    %v3176 = vld [vmem:[%s258] sm:$0xff]
    %v3177 = vld [vmem:[%s258 + $0x8] sm:$0xff]
    %v3178 = vld [vmem:[%s258 + $0x10] sm:$0xff]
    %v3179 = vld [vmem:[%s258 + $0x18] sm:$0xff]
    %v3180 = vmul.f32 %v3175, %v3176
    %v3181 = vmul.f32 %v3174, %v3177
    %v3182 = vmul.f32 %v3173, %v3178
    %v3183 = vmul.f32 %v3172, %v3179
    %v3184 = vpack.c.bf16 %v3180, %v3180
    %v3185 = vpack.c.bf16 %v3181, %v3181
    %v3186 = vpack.c.bf16 %v3182, %v3182
    %v3187 = vpack.c.bf16 %v3183, %v3183
    %v3192 = vunpack.c.l.b16 %v3184
    %v3193 = vunpack.c.l.b16 %v3185
    %v3194 = vunpack.c.l.b16 %v3186
    %v3195 = vunpack.c.l.b16 %v3187
    %v3196 = vpack.c.b16 %v3193, %v3192
    %v3197 = vpack.c.b16 %v3195, %v3194
    %3200 = vst [vmem:[#allocation2 + $0x40] sm:$0xff] %v3196
    %3201 = vst [vmem:[#allocation2 + $0x48] sm:$0xff] %v3197
    %v3202 = vpack.c.bf16 %v3046, %v3046
    %v3203 = vpack.c.bf16 %v3047, %v3047
    %v3204 = vpack.c.bf16 %v3048, %v3048
    %v3205 = vpack.c.bf16 %v3049, %v3049
    %v3210 = vunpack.c.l.b16 %v3202
    %v3211 = vunpack.c.l.b16 %v3203
    %v3212 = vunpack.c.l.b16 %v3204
    %v3213 = vunpack.c.l.b16 %v3205
    %v3214 = vpack.c.b16 %v3211, %v3210
    %v3215 = vpack.c.b16 %v3213, %v3212
    %3218 = vst [vmem:[#allocation2 + $0x50] sm:$0xff] %v3214
    %3219 = vst [vmem:[#allocation2 + $0x58] sm:$0xff] %v3215
    %3220 = vrot.lane.b32.xlu0 %v3046, 127
    %v3221 = vpop.permute.xlu0 %3220
    %3222 = vrot.lane.b32.xlu0 %v3047, 127
    %v3223 = vpop.permute.xlu0 %3222
    %3224 = vrot.lane.b32.xlu0 %v3048, 127
    %v3225 = vpop.permute.xlu0 %3224
    %3226 = vrot.lane.b32.xlu0 %v3049, 127
    %v3227 = vpop.permute.xlu0 %3226
    %v3228 = vsel %vm311, %v3225, %v3227
    %v3229 = vsel %vm311, %v3223, %v3225
    %v3230 = vsel %vm311, %v3221, %v3223
    %v3231 = vsel %vm311, %v3227, %v3221
    %v3232 = vld [vmem:[%s316] sm:$0xff]
    %v3233 = vld [vmem:[%s316 + $0x8] sm:$0xff]
    %v3234 = vld [vmem:[%s316 + $0x10] sm:$0xff]
    %v3235 = vld [vmem:[%s316 + $0x18] sm:$0xff]
    %v3236 = vmul.f32 %v3230, %v3232
    %v3237 = vmul.f32 %v3229, %v3233
    %v3238 = vmul.f32 %v3228, %v3234
    %v3239 = vmul.f32 %v3231, %v3235
    %v3240 = vpack.c.bf16 %v3236, %v3236
    %v3241 = vpack.c.bf16 %v3237, %v3237
    %v3242 = vpack.c.bf16 %v3238, %v3238
    %v3243 = vpack.c.bf16 %v3239, %v3239
    %v3248 = vunpack.c.l.b16 %v3240
    %v3249 = vunpack.c.l.b16 %v3241
    %v3250 = vunpack.c.l.b16 %v3242
    %v3251 = vunpack.c.l.b16 %v3243
    %v3252 = vpack.c.b16 %v3249, %v3248
    %v3253 = vpack.c.b16 %v3251, %v3250
    %3256 = vst [vmem:[#allocation2 + $0x60] sm:$0xff] %v3252
    %3257 = vst [vmem:[#allocation2 + $0x68] sm:$0xff] %v3253
    %3258 = vrot.lane.b32.xlu0 %v3046, 113
    %v3259 = vpop.permute.xlu0 %3258
    %3260 = vrot.lane.b32.xlu0 %v3047, 113
    %v3261 = vpop.permute.xlu0 %3260
    %3262 = vrot.lane.b32.xlu0 %v3048, 113
    %v3263 = vpop.permute.xlu0 %3262
    %3264 = vrot.lane.b32.xlu0 %v3049, 113
    %v3265 = vpop.permute.xlu0 %3264
    %v3266 = vsel %vm351, %v3263, %v3265
    %v3267 = vsel %vm351, %v3261, %v3263
    %v3268 = vsel %vm351, %v3259, %v3261
    %v3269 = vsel %vm351, %v3265, %v3259
    %v3270 = vld [vmem:[%s356] sm:$0xff]
    %v3271 = vld [vmem:[%s356 + $0x8] sm:$0xff]
    %v3272 = vld [vmem:[%s356 + $0x10] sm:$0xff]
    %v3273 = vld [vmem:[%s356 + $0x18] sm:$0xff]
    %v3274 = vmul.f32 %v3268, %v3270
    %v3275 = vmul.f32 %v3267, %v3271
    %v3276 = vmul.f32 %v3266, %v3272
    %v3277 = vmul.f32 %v3269, %v3273
    %v3278 = vpack.c.bf16 %v3274, %v3274
    %v3279 = vpack.c.bf16 %v3275, %v3275
    %v3280 = vpack.c.bf16 %v3276, %v3276
    %v3281 = vpack.c.bf16 %v3277, %v3277
    %v3286 = vunpack.c.l.b16 %v3278
    %v3287 = vunpack.c.l.b16 %v3279
    %v3288 = vunpack.c.l.b16 %v3280
    %v3289 = vunpack.c.l.b16 %v3281
    %v3290 = vpack.c.b16 %v3287, %v3286
    %v3291 = vpack.c.b16 %v3289, %v3288
    %3294 = vst [vmem:[#allocation2 + $0x70] sm:$0xff] %v3290
    %3295 = vst [vmem:[#allocation2 + $0x78] sm:$0xff] %v3291
    %3296 = vrot.lane.b32.xlu0 %v3046, 112
    %v3297 = vpop.permute.xlu0 %3296
    %3298 = vrot.lane.b32.xlu0 %v3047, 112
    %v3299 = vpop.permute.xlu0 %3298
    %3300 = vrot.lane.b32.xlu0 %v3048, 112
    %v3301 = vpop.permute.xlu0 %3300
    %3302 = vrot.lane.b32.xlu0 %v3049, 112
    %v3303 = vpop.permute.xlu0 %3302
    %v3304 = vsel %vm391, %v3301, %v3303
    %v3305 = vsel %vm391, %v3299, %v3301
    %v3306 = vsel %vm391, %v3297, %v3299
    %v3307 = vsel %vm391, %v3303, %v3297
    %v3308 = vld [vmem:[%s396] sm:$0xff]
    %v3309 = vld [vmem:[%s396 + $0x8] sm:$0xff]
    %v3310 = vld [vmem:[%s396 + $0x10] sm:$0xff]
    %v3311 = vld [vmem:[%s396 + $0x18] sm:$0xff]
    %v3312 = vmul.f32 %v3306, %v3308
    %v3313 = vmul.f32 %v3305, %v3309
    %v3314 = vmul.f32 %v3304, %v3310
    %v3315 = vmul.f32 %v3307, %v3311
    %v3316 = vpack.c.bf16 %v3312, %v3312
    %v3317 = vpack.c.bf16 %v3313, %v3313
    %v3318 = vpack.c.bf16 %v3314, %v3314
    %v3319 = vpack.c.bf16 %v3315, %v3315
    %v3324 = vunpack.c.l.b16 %v3316
    %v3325 = vunpack.c.l.b16 %v3317
    %v3326 = vunpack.c.l.b16 %v3318
    %v3327 = vunpack.c.l.b16 %v3319
    %v3328 = vpack.c.b16 %v3325, %v3324
    %v3329 = vpack.c.b16 %v3327, %v3326
    %3332 = vst [vmem:[#allocation2 + $0x80] sm:$0xff] %v3328
    %3333 = vst [vmem:[#allocation2 + $0x88] sm:$0xff] %v3329
    %3334 = vrot.lane.b32.xlu0 %v3046, 111
    %v3335 = vpop.permute.xlu0 %3334
    %3336 = vrot.lane.b32.xlu0 %v3047, 111
    %v3337 = vpop.permute.xlu0 %3336
    %3338 = vrot.lane.b32.xlu0 %v3048, 111
    %v3339 = vpop.permute.xlu0 %3338
    %3340 = vrot.lane.b32.xlu0 %v3049, 111
    %v3341 = vpop.permute.xlu0 %3340
    %v3342 = vsel %vm431, %v3339, %v3341
    %v3343 = vsel %vm431, %v3337, %v3339
    %v3344 = vsel %vm431, %v3335, %v3337
    %v3345 = vsel %vm431, %v3341, %v3335
    %v3346 = vld [vmem:[%s436] sm:$0xff]
    %v3347 = vld [vmem:[%s436 + $0x8] sm:$0xff]
    %v3348 = vld [vmem:[%s436 + $0x10] sm:$0xff]
    %v3349 = vld [vmem:[%s436 + $0x18] sm:$0xff]
    %v3350 = vmul.f32 %v3344, %v3346
    %v3351 = vmul.f32 %v3343, %v3347
    %v3352 = vmul.f32 %v3342, %v3348
    %v3353 = vmul.f32 %v3345, %v3349
    %v3354 = vpack.c.bf16 %v3350, %v3350
    %v3355 = vpack.c.bf16 %v3351, %v3351
    %v3356 = vpack.c.bf16 %v3352, %v3352
    %v3357 = vpack.c.bf16 %v3353, %v3353
    %v3362 = vunpack.c.l.b16 %v3354
    %v3363 = vunpack.c.l.b16 %v3355
    %v3364 = vunpack.c.l.b16 %v3356
    %v3365 = vunpack.c.l.b16 %v3357
    %v3366 = vpack.c.b16 %v3363, %v3362
    %v3367 = vpack.c.b16 %v3365, %v3364
    %3370 = vst [vmem:[#allocation2 + $0x90] sm:$0xff] %v3366
    %3371 = vst [vmem:[#allocation2 + $0x98] sm:$0xff] %v3367
    %v3372 = vld [vmem:[#allocation12] sm:$0xf]
    %v3373 = vld [vmem:[#allocation2] sm:$0xff]
    %v3374 = vld [vmem:[#allocation2 + $0x8] sm:$0xff]
    %v3375 = vld [vmem:[#allocation2 + $0x10] sm:$0xff]
    %v3376 = vld [vmem:[#allocation2 + $0x18] sm:$0xff]
    %v3377 = vld [vmem:[#allocation2 + $0x20] sm:$0xff]
    %v3378 = vld [vmem:[#allocation2 + $0x28] sm:$0xff]
    %v3379 = vld [vmem:[#allocation2 + $0x30] sm:$0xff]
    %v3380 = vld [vmem:[#allocation2 + $0x38] sm:$0xff]
    %v3381 = vld [vmem:[#allocation2 + $0x40] sm:$0xff]
    %v3382 = vld [vmem:[#allocation2 + $0x48] sm:$0xff]
    %v3383 = vld [vmem:[#allocation2 + $0x50] sm:$0xff]
    %v3384 = vld [vmem:[#allocation2 + $0x58] sm:$0xff]
    %v3385 = vld [vmem:[#allocation2 + $0x60] sm:$0xff]
    %v3386 = vld [vmem:[#allocation2 + $0x68] sm:$0xff]
    %v3387 = vld [vmem:[#allocation2 + $0x70] sm:$0xff]
    %v3388 = vld [vmem:[#allocation2 + $0x78] sm:$0xff]
    %v3389 = vld [vmem:[#allocation2 + $0x80] sm:$0xff]
    %v3390 = vld [vmem:[#allocation2 + $0x88] sm:$0xff]
    %v3391 = vld [vmem:[#allocation2 + $0x90] sm:$0xff]
    %v3392 = vld [vmem:[#allocation2 + $0x98] sm:$0xff]
    %v3413 = vunpack.c.l.b16 %v3373
    %v3414 = vunpack.c.h.b16 %v3373
    %v3415 = vunpack.c.l.b16 %v3374
    %v3416 = vunpack.c.h.b16 %v3374
    %v3417 = vunpack.c.l.b16 %v3375
    %v3418 = vunpack.c.h.b16 %v3375
    %v3419 = vunpack.c.l.b16 %v3376
    %v3420 = vunpack.c.h.b16 %v3376
    %v3421 = vunpack.c.l.b16 %v3377
    %v3422 = vunpack.c.h.b16 %v3377
    %v3423 = vunpack.c.l.b16 %v3378
    %v3424 = vunpack.c.h.b16 %v3378
    %v3425 = vunpack.c.l.b16 %v3379
    %v3426 = vunpack.c.h.b16 %v3379
    %v3427 = vunpack.c.l.b16 %v3380
    %v3428 = vunpack.c.h.b16 %v3380
    %v3429 = vunpack.c.l.b16 %v3381
    %v3430 = vunpack.c.h.b16 %v3381
    %v3431 = vunpack.c.l.b16 %v3382
    %v3432 = vunpack.c.h.b16 %v3382
    %v3433 = vunpack.c.l.b16 %v3383
    %v3434 = vunpack.c.h.b16 %v3383
    %v3435 = vunpack.c.l.b16 %v3384
    %v3436 = vunpack.c.h.b16 %v3384
    %v3437 = vunpack.c.l.b16 %v3385
    %v3438 = vunpack.c.h.b16 %v3385
    %v3439 = vunpack.c.l.b16 %v3386
    %v3440 = vunpack.c.h.b16 %v3386
    %v3441 = vunpack.c.l.b16 %v3387
    %v3442 = vunpack.c.h.b16 %v3387
    %v3443 = vunpack.c.l.b16 %v3388
    %v3444 = vunpack.c.h.b16 %v3388
    %v3445 = vunpack.c.l.b16 %v3389
    %v3446 = vunpack.c.h.b16 %v3389
    %v3447 = vunpack.c.l.b16 %v3390
    %v3448 = vunpack.c.h.b16 %v3390
    %v3449 = vunpack.c.l.b16 %v3391
    %v3450 = vunpack.c.h.b16 %v3391
    %v3451 = vunpack.c.l.b16 %v3392
    %v3452 = vunpack.c.h.b16 %v3392
    %v3453 = vpack.c.b16 %v3417, %v3413
    %v3454 = vpack.c.b16 %v3418, %v3414
    %v3455 = vpack.c.b16 %v3419, %v3415
    %v3456 = vpack.c.b16 %v3420, %v3416
    %v3457 = vpack.c.b16 %v3425, %v3421
    %v3458 = vpack.c.b16 %v3426, %v3422
    %v3459 = vpack.c.b16 %v3427, %v3423
    %v3460 = vpack.c.b16 %v3428, %v3424
    %v3461 = vpack.c.b16 %v3433, %v3429
    %v3462 = vpack.c.b16 %v3434, %v3430
    %v3463 = vpack.c.b16 %v3435, %v3431
    %v3464 = vpack.c.b16 %v3436, %v3432
    %v3465 = vpack.c.b16 %v3441, %v3437
    %v3466 = vpack.c.b16 %v3442, %v3438
    %v3467 = vpack.c.b16 %v3443, %v3439
    %v3468 = vpack.c.b16 %v3444, %v3440
    %v3469 = vpack.c.b16 %v3449, %v3445
    %v3470 = vpack.c.b16 %v3450, %v3446
    %v3471 = vpack.c.b16 %v3451, %v3447
    %v3472 = vpack.c.b16 %v3452, %v3448
    %v3494 = vsel %vm584, %v3372, 0
    %3496 = vmatprep.subr.bf16.mxu0 0
    %3497 = vmatpush1.bf16.msra.mxu0 0
    %3498 = vmatprep.subr.bf16.mxu0 0
    %3499 = vmatpush1.bf16.msra.mxu0 0
    %3500 = vmatprep.subr.bf16.mxu0 0
    %3501 = vmatpush1.bf16.msra.mxu0 0
    %3502 = vmatprep.subr.bf16.mxu0 %v3470
    %3503 = vmatpush1.bf16.msra.mxu0 %v3469
    %3504 = vmatprep.subr.bf16.mxu0 %v3466
    %3505 = vmatpush1.bf16.msra.mxu0 %v3465
    %3506 = vmatprep.subr.bf16.mxu0 %v3462
    %3507 = vmatpush1.bf16.msra.mxu0 %v3461
    %3508 = vmatprep.subr.bf16.mxu0 %v3458
    %3509 = vmatpush1.bf16.msra.mxu0 %v3457
    %3510 = vmatprep.subr.bf16.mxu0 %v3454
    %3511 = vmatpush1.bf16.msra.mxu0 %v3453
    %3512 = vmatprep.subr.bf16.mxu0 0
    %3513 = vmatpush2.bf16.msra.mxu0 0
    %3514 = vmatprep.subr.bf16.mxu0 0
    %3515 = vmatpush2.bf16.msra.mxu0 0
    %3516 = vmatprep.subr.bf16.mxu0 0
    %3517 = vmatpush2.bf16.msra.mxu0 0
    %3518 = vmatprep.subr.bf16.mxu0 0
    %3519 = vmatpush2.bf16.msra.mxu0 0
    %3520 = vmatprep.subr.bf16.mxu0 0
    %3521 = vmatpush2.bf16.msra.mxu0 0
    %3522 = vmatprep.subr.bf16.mxu0 0
    %3523 = vmatpush2.bf16.msra.mxu0 0
    %3524 = vmatprep.subr.bf16.mxu0 0
    %3525 = vmatpush2.bf16.msra.mxu0 0
    %3526 = vmatprep.subr.bf16.mxu0 0
    %3527 = vmatpush2.bf16.msra.mxu0 0
    %3528 = vmatprep.mubr.bf16.mxu0 0
    %3529 = vmatmul.mubr.bf16.gmra.mxu0 %v3494
    %v3530 = vpop.f32.mrf.mxu0
    %v3531 = vadd.f32 0.0, %v3530
    %v3532 = vpop.f32.mrf.mxu0
    %v3533 = vadd.f32 0.0, %v3532
    %v3534 = vpop.f32.mrf.mxu0
    %v3535 = vpop.f32.mrf.mxu0
    %3536 = vdwg.mxu0
    %3537 = vmatprep.subr.bf16.mxu0 0
    %3538 = vmatpush1.bf16.msra.mxu0 0
    %3539 = vmatprep.subr.bf16.mxu0 0
    %3540 = vmatpush1.bf16.msra.mxu0 0
    %3541 = vmatprep.subr.bf16.mxu0 0
    %3542 = vmatpush1.bf16.msra.mxu0 0
    %3543 = vmatprep.subr.bf16.mxu0 %v3472
    %3544 = vmatpush1.bf16.msra.mxu0 %v3471
    %3545 = vmatprep.subr.bf16.mxu0 %v3468
    %3546 = vmatpush1.bf16.msra.mxu0 %v3467
    %3547 = vmatprep.subr.bf16.mxu0 %v3464
    %3548 = vmatpush1.bf16.msra.mxu0 %v3463
    %3549 = vmatprep.subr.bf16.mxu0 %v3460
    %3550 = vmatpush1.bf16.msra.mxu0 %v3459
    %3551 = vmatprep.subr.bf16.mxu0 %v3456
    %3552 = vmatpush1.bf16.msra.mxu0 %v3455
    %3553 = vmatprep.subr.bf16.mxu0 0
    %3554 = vmatpush2.bf16.msra.mxu0 0
    %3555 = vmatprep.subr.bf16.mxu0 0
    %3556 = vmatpush2.bf16.msra.mxu0 0
    %3557 = vmatprep.subr.bf16.mxu0 0
    %3558 = vmatpush2.bf16.msra.mxu0 0
    %3559 = vmatprep.subr.bf16.mxu0 0
    %3560 = vmatpush2.bf16.msra.mxu0 0
    %3561 = vmatprep.subr.bf16.mxu0 0
    %3562 = vmatpush2.bf16.msra.mxu0 0
    %3563 = vmatprep.subr.bf16.mxu0 0
    %3564 = vmatpush2.bf16.msra.mxu0 0
    %3565 = vmatprep.subr.bf16.mxu0 0
    %3566 = vmatpush2.bf16.msra.mxu0 0
    %3567 = vmatprep.subr.bf16.mxu0 0
    %3568 = vmatpush2.bf16.msra.mxu0 0
    %3569 = vmatprep.mubr.bf16.mxu0 0
    %3570 = vmatmul.mubr.bf16.gmra.mxu0 %v3494
    %v3571 = vpop.f32.mrf.mxu0
    %v3572 = vadd.f32 0.0, %v3571
    %v3573 = vpop.f32.mrf.mxu0
    %v3574 = vadd.f32 0.0, %v3573
    %v3575 = vpop.f32.mrf.mxu0
    %v3576 = vpop.f32.mrf.mxu0
    %3577 = vdwg.mxu0
    %3578 = vst [vmem:[#allocation14] sm:$0xff] %v3531
    %3579 = vst [vmem:[#allocation14 + $0x8] sm:$0xff] %v3533
    %3580 = vst [vmem:[#allocation14 + $0x10] sm:$0xff] %v3572
    %3581 = vst [vmem:[#allocation14 + $0x18] sm:$0xff] %v3574
    // Predicated region
    $region54: #{tpu_custom_call.1} parent=1 // pred_check
      _
    $region55: #{tpu_custom_call.1} parent=1 // pred_check_branch
      %3583 = sbr.rel (0) target = $region57
    $region56: #{tpu_custom_call.1} parent=1 // pred_region
      %s3585 = ssub.s32 512, 512
      %3586 = vsyncadd [#allocation5], %s3585
      %s3588 = sshll.u32 [#allocation14], 4
      %s3589 = int_to_ptr.vmem [resolvable:$true] %s3588
      %3591 = dma.vmem_to_hbm [thread:$0]  %s3589, 512, %s7, [#allocation5]
    $region57: #{tpu_custom_call.1} parent=1 // pred_fallthru
      _
    // Predicated region
    $region58: #{tpu_custom_call.1} parent=1 // pred_check
      _
    $region59: #{tpu_custom_call.1} parent=1 // pred_check_branch
      %3593 = sbr.rel (0) target = $region61
    $region60: #{tpu_custom_call.1} parent=1 // pred_region
      %3594 = dma.done [#allocation5], 512
    $region61: #{tpu_custom_call.1} parent=1 // pred_fallthru
      _
    %3595 = vsyncpa [#allocation4], 1
    %3596 = vsyncpa [#allocation7], 1
    %3597 = vsyncpa [#allocation10], 1
    %3598 = vsyncpa [#allocation13], 1
    %3599 = vsyncpa [#allocation5], 1

</llo_original>
